<compile_context>
chip_gen: v6e
topology: v6e:2x2x1
jax: 0.10.0
libtpu: 0.0.40
codegen_flags: <defaults>
</compile_context>

<pallas_src>
import jax
import jax.numpy as jnp
from functools import partial
from jax.experimental import pallas as pl
from jax.experimental.pallas import tpu as pltpu


def cross_attention_kernel(q_ref, k_ref, v_ref,
                           wq_ref, wk_ref, wv_ref, wp_ref, bp_ref,
                           o_ref, *, batch, num_heads):
    # q_ref: (B*N_q, C) bf16; k_ref/v_ref: (B*N_k, C) bf16; weights (C, C) bf16;
    # bias (1, C) f32.
    bn_q, c = q_ref.shape
    bn_k = k_ref.shape[0]
    n_q = bn_q // batch
    n_k = bn_k // batch
    d = c // num_heads

    # Whole-batch projections: bf16 operands, f32 accumulation -> one native bf16
    # MXU matmul each (softmax scale is already folded into wq).
    q = jnp.dot(q_ref[...], wq_ref[...], preferred_element_type=jnp.float32)
    k = jnp.dot(k_ref[...], wk_ref[...], preferred_element_type=jnp.float32)
    v = jnp.dot(v_ref[...], wv_ref[...], preferred_element_type=jnp.float32)

    # Re-expose the batch dim along sublanes (8-aligned split -> layout preserving).
    q3 = q.reshape(batch, n_q, c)
    k3 = k.reshape(batch, n_k, c)
    # P@V runs in bf16: cast the whole V projection once, outside the head loop.
    v3 = v.reshape(batch, n_k, c).astype(jnp.bfloat16)

    # Static head loop (fully unrolled); each step batched over B via 3-D einsums.
    # TODO(synk): on v6e/v7x consider a VPU broadcast-multiply + d-lane reduce for
    #             QK^T instead of a K=4 MXU contraction (benchmark both).
    head_outs = []
    for h in range(num_heads):
        sl = slice(h * d, (h + 1) * d)
        qh = q3[:, :, sl]                                    # (B, N_q, d) f32
        kh = k3[:, :, sl]                                    # (B, N_k, d) f32
        vh = v3[:, :, sl]                                    # (B, N_k, d) bf16

        # QK^T: contract over d directly (no explicit transpose of K), f32.
        s = jnp.einsum('bqd,bkd->bqk', qh, kh,
                       preferred_element_type=jnp.float32)   # (B, N_q, N_k)
        s = s - jnp.max(s, axis=-1, keepdims=True)
        p = jnp.exp(s)
        denom = jnp.sum(p, axis=-1, keepdims=True)           # (B, N_q, 1)

        # P@V with bf16 operands, f32 accumulation.
        acc = jnp.einsum('bqk,bkd->bqd', p.astype(jnp.bfloat16), vh,
                         preferred_element_type=jnp.float32)  # (B, N_q, d)
        # Normalize the small accumulator with the EUP approximate reciprocal
        # (error ~1e-3 relative; below bf16 matmul noise here).
        head_outs.append(acc * pl.reciprocal(denom, approx=True))

    # Assemble the (B*N_q, C) slab in registers -- no VMEM scratch round-trip.
    x = jnp.concatenate(head_outs, axis=-1).reshape(bn_q, c)

    # Fused output projection + bias: bf16 operands, f32 accumulation.
    y = jnp.dot(x.astype(jnp.bfloat16), wp_ref[...],
                preferred_element_type=jnp.float32) + bp_ref[...]
    o_ref[...] = y.astype(o_ref.dtype)


def cross_attention(query, key, value, params, num_heads):
    """query: (B, N_q, C); key/value: (B, N_k, C). Weights are (C_in, C_out)."""
    B, N_q, C = query.shape
    N_k = key.shape[1]
    head_dim = C // num_heads
    scale = head_dim ** (-0.5)

    wq, wk, wv, wp, bp = params
    # Fold the softmax scale into Wq (free), then cast all matmul operands to bf16
    # wrapper-side (MXUs are bf16-native; f32 matmuls cost ~3x the passes).
    wq_b = (wq * scale).astype(jnp.bfloat16)
    wk_b = wk.astype(jnp.bfloat16)
    wv_b = wv.astype(jnp.bfloat16)
    wp_b = wp.astype(jnp.bfloat16)
    bp_f = bp.astype(jnp.float32)

    # Fold batch into the row (sublane) dimension outside the kernel (free views).
    q2 = query.reshape(B * N_q, C).astype(jnp.bfloat16)
    k2 = key.reshape(B * N_k, C).astype(jnp.bfloat16)
    v2 = value.reshape(B * N_k, C).astype(jnp.bfloat16)

    kernel = partial(cross_attention_kernel, batch=B, num_heads=num_heads)

    out2 = pl.pallas_call(
        kernel,
        out_shape=jax.ShapeDtypeStruct((B * N_q, C), query.dtype),
        grid=(1,),
        in_specs=[
            pl.BlockSpec((B * N_q, C), lambda i: (0, 0)),
            pl.BlockSpec((B * N_k, C), lambda i: (0, 0)),
            pl.BlockSpec((B * N_k, C), lambda i: (0, 0)),
            pl.BlockSpec((C, C), lambda i: (0, 0)),
            pl.BlockSpec((C, C), lambda i: (0, 0)),
            pl.BlockSpec((C, C), lambda i: (0, 0)),
            pl.BlockSpec((C, C), lambda i: (0, 0)),
            pl.BlockSpec((1, C), lambda i: (0, 0)),
        ],
        out_specs=pl.BlockSpec((B * N_q, C), lambda i: (0, 0)),
        compiler_params=pltpu.CompilerParams(
            dimension_semantics=("arbitrary",)),
    )(q2, k2, v2, wq_b, wk_b, wv_b, wp_b, bp_f)

    return out2.reshape(B, N_q, C)


def reference(query, key, value, params, num_heads):
    """Pure-JAX f32 replica of the PyTorch forward (dropout = 0)."""
    B, N_q, C = query.shape
    N_k = key.shape[1]
    d = C // num_heads
    scale = d ** (-0.5)
    wq, wk, wv, wp, bp = params

    q = (query @ wq).reshape(B, N_q, num_heads, d).transpose(0, 2, 1, 3)
    k = (key @ wk).reshape(B, N_k, num_heads, d).transpose(0, 2, 1, 3)
    v = (value @ wv).reshape(B, N_k, num_heads, d).transpose(0, 2, 1, 3)

    attn = (q @ jnp.swapaxes(k, -2, -1)) * scale
    attn = jax.nn.softmax(attn, axis=-1)
    x = (attn @ v).transpose(0, 2, 1, 3).reshape(B, N_q, C)
    return x @ wp + bp


if __name__ == "__main__":
    # Small shapes consistent with the module: dim=C=32, num_heads=8 (head_dim=4)
    B, N_q, N_k, C = 2, 8, 16, 32
    num_heads = 8

    key0 = jax.random.PRNGKey(0)
    kq, kk, kv, kwq, kwk, kwv, kwp, kbp = jax.random.split(key0, 8)

    query = jax.random.normal(kq, (B, N_q, C), dtype=jnp.float32)
    key_t = jax.random.normal(kk, (B, N_k, C), dtype=jnp.float32)
    value = jax.random.normal(kv, (B, N_k, C), dtype=jnp.float32)

    # Deterministic parameter init (qkv_bias=False -> no q/k/v biases; proj has bias).
    # Weights stored as (C_in, C_out) == torch_weight.T
    s = 0.05
    wq = s * jax.random.normal(kwq, (C, C), dtype=jnp.float32)
    wk = s * jax.random.normal(kwk, (C, C), dtype=jnp.float32)
    wv = s * jax.random.normal(kwv, (C, C), dtype=jnp.float32)
    wp = s * jax.random.normal(kwp, (C, C), dtype=jnp.float32)
    bp = s * jax.random.normal(kbp, (1, C), dtype=jnp.float32)
    params = (wq, wk, wv, wp, bp)

    out = cross_attention(query, key_t, value, params, num_heads)
    out = jax.block_until_ready(out)

    ref = reference(query, key_t, value, params, num_heads)
    assert out.shape == (B, N_q, C)
    # Tolerance accounts for bf16 matmul operands (f32 accumulation) and the
    # approximate EUP reciprocal in the softmax normalization.
    assert jnp.allclose(out, ref, atol=2e-2, rtol=2e-2), "mismatch vs reference"

    print("KERNEL_OK")
</pallas_src>

<mosaic_0001>
module attributes {stable_mosaic.version = 11 : i64} {
  func.func @cross_attention_kernel(%arg0: i32, %arg1: memref<16x32xbf16, #tpu.memory_space<vmem>>, %arg2: memref<32x32xbf16, #tpu.memory_space<vmem>>, %arg3: memref<32x32xbf16, #tpu.memory_space<vmem>>, %arg4: memref<32x32xbf16, #tpu.memory_space<vmem>>, %arg5: memref<32x32xbf16, #tpu.memory_space<vmem>>, %arg6: memref<32x32xbf16, #tpu.memory_space<vmem>>, %arg7: memref<32x32xbf16, #tpu.memory_space<vmem>>, %arg8: memref<1x32xf32, #tpu.memory_space<vmem>>, %arg9: memref<16x32xf32, #tpu.memory_space<vmem>>) attributes {dimension_semantics = [#tpu.dimension_semantics<arbitrary>], iteration_bounds = array<i64: 1>, scalar_prefetch = 0 : i64, scratch_operands = 0 : i64, tpu.core_type = #tpu.core_type<tc>, window_params = [{pipeline_mode = #tpu.pipeline_mode<synchronous>, transform_indices = @transform_0, window_bounds = array<i64: 16, 32>}, {pipeline_mode = #tpu.pipeline_mode<synchronous>, transform_indices = @transform_1, window_bounds = array<i64: 32, 32>}, {pipeline_mode = #tpu.pipeline_mode<synchronous>, transform_indices = @transform_2, window_bounds = array<i64: 32, 32>}, {pipeline_mode = #tpu.pipeline_mode<synchronous>, transform_indices = @transform_3, window_bounds = array<i64: 32, 32>}, {pipeline_mode = #tpu.pipeline_mode<synchronous>, transform_indices = @transform_4, window_bounds = array<i64: 32, 32>}, {pipeline_mode = #tpu.pipeline_mode<synchronous>, transform_indices = @transform_5, window_bounds = array<i64: 32, 32>}, {pipeline_mode = #tpu.pipeline_mode<synchronous>, transform_indices = @transform_6, window_bounds = array<i64: 32, 32>}, {pipeline_mode = #tpu.pipeline_mode<synchronous>, transform_indices = @transform_7, window_bounds = array<i64: 1, 32>}, {pipeline_mode = #tpu.pipeline_mode<synchronous>, transform_indices = @transform_8, window_bounds = array<i64: 16, 32>}]} {
    %c0 = arith.constant 0 : index
    %c0_0 = arith.constant 0 : index
    %0 = vector.load %arg1[%c0, %c0_0] : memref<16x32xbf16, #tpu.memory_space<vmem>>, vector<16x32xbf16>
    %c0_1 = arith.constant 0 : index
    %c0_2 = arith.constant 0 : index
    %1 = vector.load %arg4[%c0_1, %c0_2] : memref<32x32xbf16, #tpu.memory_space<vmem>>, vector<32x32xbf16>
    %cst = arith.constant dense<0.000000e+00> : vector<16x32xf32>
    %2 = tpu.matmul %0, %1, %cst {dimension_numbers = #tpu.dot_dimension_numbers<[1], [0], [0], [1], [0, 0, 1, 1], [], []>} : vector<16x32xbf16>, vector<32x32xbf16>, vector<16x32xf32> -> vector<16x32xf32>
    %c0_3 = arith.constant 0 : index
    %c0_4 = arith.constant 0 : index
    %3 = vector.load %arg2[%c0_3, %c0_4] : memref<32x32xbf16, #tpu.memory_space<vmem>>, vector<32x32xbf16>
    %c0_5 = arith.constant 0 : index
    %c0_6 = arith.constant 0 : index
    %4 = vector.load %arg5[%c0_5, %c0_6] : memref<32x32xbf16, #tpu.memory_space<vmem>>, vector<32x32xbf16>
    %cst_7 = arith.constant dense<0.000000e+00> : vector<32x32xf32>
    %5 = tpu.matmul %3, %4, %cst_7 {dimension_numbers = #tpu.dot_dimension_numbers<[1], [0], [0], [1], [0, 0, 1, 1], [], []>} : vector<32x32xbf16>, vector<32x32xbf16>, vector<32x32xf32> -> vector<32x32xf32>
    %c0_8 = arith.constant 0 : index
    %c0_9 = arith.constant 0 : index
    %6 = vector.load %arg3[%c0_8, %c0_9] : memref<32x32xbf16, #tpu.memory_space<vmem>>, vector<32x32xbf16>
    %c0_10 = arith.constant 0 : index
    %c0_11 = arith.constant 0 : index
    %7 = vector.load %arg6[%c0_10, %c0_11] : memref<32x32xbf16, #tpu.memory_space<vmem>>, vector<32x32xbf16>
    %cst_12 = arith.constant dense<0.000000e+00> : vector<32x32xf32>
    %8 = tpu.matmul %6, %7, %cst_12 {dimension_numbers = #tpu.dot_dimension_numbers<[1], [0], [0], [1], [0, 0, 1, 1], [], []>} : vector<32x32xbf16>, vector<32x32xbf16>, vector<32x32xf32> -> vector<32x32xf32>
    %9 = vector.shape_cast %2 : vector<16x32xf32> to vector<2x8x32xf32>
    %10 = vector.shape_cast %5 : vector<32x32xf32> to vector<2x16x32xf32>
    %11 = vector.shape_cast %8 : vector<32x32xf32> to vector<2x16x32xf32>
    %12 = arith.truncf %11 : vector<2x16x32xf32> to vector<2x16x32xbf16>
    %13 = vector.extract_strided_slice %9 {offsets = [0, 0, 0], sizes = [2, 8, 4], strides = [1, 1, 1]} : vector<2x8x32xf32> to vector<2x8x4xf32>
    %14 = vector.extract_strided_slice %10 {offsets = [0, 0, 0], sizes = [2, 16, 4], strides = [1, 1, 1]} : vector<2x16x32xf32> to vector<2x16x4xf32>
    %15 = vector.extract_strided_slice %12 {offsets = [0, 0, 0], sizes = [2, 16, 4], strides = [1, 1, 1]} : vector<2x16x32xbf16> to vector<2x16x4xbf16>
    "tpu.trace_start"() <{level = 10 : i32, message = "bqd,bkd->bqk"}> : () -> ()
    %cst_13 = arith.constant dense<0.000000e+00> : vector<2x8x16xf32>
    %16 = tpu.matmul %13, %14, %cst_13 {dimension_numbers = #tpu.dot_dimension_numbers<[2], [2], [1], [1], [0, 0, 0, 1, 1, 1], [0], [0]>} : vector<2x8x4xf32>, vector<2x16x4xf32>, vector<2x8x16xf32> -> vector<2x8x16xf32>
    "tpu.trace_stop"() : () -> ()
    %cst_14 = arith.constant dense<0xFF800000> : vector<2x8xf32>
    %17 = vector.multi_reduction <maximumf>, %16, %cst_14 [2] : vector<2x8x16xf32> to vector<2x8xf32>
    %18 = vector.shape_cast %17 : vector<2x8xf32> to vector<2x8x1xf32>
    %19 = vector.broadcast %18 : vector<2x8x1xf32> to vector<2x8x16xf32>
    %20 = arith.subf %16, %19 : vector<2x8x16xf32>
    %21 = math.exp %20 : vector<2x8x16xf32>
    %cst_15 = arith.constant dense<0.000000e+00> : vector<2x8xf32>
    %22 = vector.multi_reduction <add>, %21, %cst_15 [2] : vector<2x8x16xf32> to vector<2x8xf32>
    %23 = vector.shape_cast %22 : vector<2x8xf32> to vector<2x8x1xf32>
    %24 = arith.truncf %21 : vector<2x8x16xf32> to vector<2x8x16xbf16>
    "tpu.trace_start"() <{level = 10 : i32, message = "bqk,bkd->bqd"}> : () -> ()
    %cst_16 = arith.constant dense<0.000000e+00> : vector<2x8x4xf32>
    %25 = tpu.matmul %24, %15, %cst_16 {dimension_numbers = #tpu.dot_dimension_numbers<[2], [1], [1], [2], [0, 0, 0, 1, 1, 2], [0], [0]>} : vector<2x8x16xbf16>, vector<2x16x4xbf16>, vector<2x8x4xf32> -> vector<2x8x4xf32>
    "tpu.trace_stop"() : () -> ()
    %26 = tpu.reciprocal %23 {approx = true} : vector<2x8x1xf32> -> vector<2x8x1xf32>
    %27 = vector.broadcast %26 : vector<2x8x1xf32> to vector<2x8x4xf32>
    %28 = arith.mulf %25, %27 : vector<2x8x4xf32>
    %29 = vector.extract_strided_slice %9 {offsets = [0, 0, 4], sizes = [2, 8, 4], strides = [1, 1, 1]} : vector<2x8x32xf32> to vector<2x8x4xf32>
    %30 = vector.extract_strided_slice %10 {offsets = [0, 0, 4], sizes = [2, 16, 4], strides = [1, 1, 1]} : vector<2x16x32xf32> to vector<2x16x4xf32>
    %31 = vector.extract_strided_slice %12 {offsets = [0, 0, 4], sizes = [2, 16, 4], strides = [1, 1, 1]} : vector<2x16x32xbf16> to vector<2x16x4xbf16>
    "tpu.trace_start"() <{level = 10 : i32, message = "bqd,bkd->bqk"}> : () -> ()
    %cst_17 = arith.constant dense<0.000000e+00> : vector<2x8x16xf32>
    %32 = tpu.matmul %29, %30, %cst_17 {dimension_numbers = #tpu.dot_dimension_numbers<[2], [2], [1], [1], [0, 0, 0, 1, 1, 1], [0], [0]>} : vector<2x8x4xf32>, vector<2x16x4xf32>, vector<2x8x16xf32> -> vector<2x8x16xf32>
    "tpu.trace_stop"() : () -> ()
    %cst_18 = arith.constant dense<0xFF800000> : vector<2x8xf32>
    %33 = vector.multi_reduction <maximumf>, %32, %cst_18 [2] : vector<2x8x16xf32> to vector<2x8xf32>
    %34 = vector.shape_cast %33 : vector<2x8xf32> to vector<2x8x1xf32>
    %35 = vector.broadcast %34 : vector<2x8x1xf32> to vector<2x8x16xf32>
    %36 = arith.subf %32, %35 : vector<2x8x16xf32>
    %37 = math.exp %36 : vector<2x8x16xf32>
    %cst_19 = arith.constant dense<0.000000e+00> : vector<2x8xf32>
    %38 = vector.multi_reduction <add>, %37, %cst_19 [2] : vector<2x8x16xf32> to vector<2x8xf32>
    %39 = vector.shape_cast %38 : vector<2x8xf32> to vector<2x8x1xf32>
    %40 = arith.truncf %37 : vector<2x8x16xf32> to vector<2x8x16xbf16>
    "tpu.trace_start"() <{level = 10 : i32, message = "bqk,bkd->bqd"}> : () -> ()
    %cst_20 = arith.constant dense<0.000000e+00> : vector<2x8x4xf32>
    %41 = tpu.matmul %40, %31, %cst_20 {dimension_numbers = #tpu.dot_dimension_numbers<[2], [1], [1], [2], [0, 0, 0, 1, 1, 2], [0], [0]>} : vector<2x8x16xbf16>, vector<2x16x4xbf16>, vector<2x8x4xf32> -> vector<2x8x4xf32>
    "tpu.trace_stop"() : () -> ()
    %42 = tpu.reciprocal %39 {approx = true} : vector<2x8x1xf32> -> vector<2x8x1xf32>
    %43 = vector.broadcast %42 : vector<2x8x1xf32> to vector<2x8x4xf32>
    %44 = arith.mulf %41, %43 : vector<2x8x4xf32>
    %45 = vector.extract_strided_slice %9 {offsets = [0, 0, 8], sizes = [2, 8, 4], strides = [1, 1, 1]} : vector<2x8x32xf32> to vector<2x8x4xf32>
    %46 = vector.extract_strided_slice %10 {offsets = [0, 0, 8], sizes = [2, 16, 4], strides = [1, 1, 1]} : vector<2x16x32xf32> to vector<2x16x4xf32>
    %47 = vector.extract_strided_slice %12 {offsets = [0, 0, 8], sizes = [2, 16, 4], strides = [1, 1, 1]} : vector<2x16x32xbf16> to vector<2x16x4xbf16>
    "tpu.trace_start"() <{level = 10 : i32, message = "bqd,bkd->bqk"}> : () -> ()
    %cst_21 = arith.constant dense<0.000000e+00> : vector<2x8x16xf32>
    %48 = tpu.matmul %45, %46, %cst_21 {dimension_numbers = #tpu.dot_dimension_numbers<[2], [2], [1], [1], [0, 0, 0, 1, 1, 1], [0], [0]>} : vector<2x8x4xf32>, vector<2x16x4xf32>, vector<2x8x16xf32> -> vector<2x8x16xf32>
    "tpu.trace_stop"() : () -> ()
    %cst_22 = arith.constant dense<0xFF800000> : vector<2x8xf32>
    %49 = vector.multi_reduction <maximumf>, %48, %cst_22 [2] : vector<2x8x16xf32> to vector<2x8xf32>
    %50 = vector.shape_cast %49 : vector<2x8xf32> to vector<2x8x1xf32>
    %51 = vector.broadcast %50 : vector<2x8x1xf32> to vector<2x8x16xf32>
    %52 = arith.subf %48, %51 : vector<2x8x16xf32>
    %53 = math.exp %52 : vector<2x8x16xf32>
    %cst_23 = arith.constant dense<0.000000e+00> : vector<2x8xf32>
    %54 = vector.multi_reduction <add>, %53, %cst_23 [2] : vector<2x8x16xf32> to vector<2x8xf32>
    %55 = vector.shape_cast %54 : vector<2x8xf32> to vector<2x8x1xf32>
    %56 = arith.truncf %53 : vector<2x8x16xf32> to vector<2x8x16xbf16>
    "tpu.trace_start"() <{level = 10 : i32, message = "bqk,bkd->bqd"}> : () -> ()
    %cst_24 = arith.constant dense<0.000000e+00> : vector<2x8x4xf32>
    %57 = tpu.matmul %56, %47, %cst_24 {dimension_numbers = #tpu.dot_dimension_numbers<[2], [1], [1], [2], [0, 0, 0, 1, 1, 2], [0], [0]>} : vector<2x8x16xbf16>, vector<2x16x4xbf16>, vector<2x8x4xf32> -> vector<2x8x4xf32>
    "tpu.trace_stop"() : () -> ()
    %58 = tpu.reciprocal %55 {approx = true} : vector<2x8x1xf32> -> vector<2x8x1xf32>
    %59 = vector.broadcast %58 : vector<2x8x1xf32> to vector<2x8x4xf32>
    %60 = arith.mulf %57, %59 : vector<2x8x4xf32>
    %61 = vector.extract_strided_slice %9 {offsets = [0, 0, 12], sizes = [2, 8, 4], strides = [1, 1, 1]} : vector<2x8x32xf32> to vector<2x8x4xf32>
    %62 = vector.extract_strided_slice %10 {offsets = [0, 0, 12], sizes = [2, 16, 4], strides = [1, 1, 1]} : vector<2x16x32xf32> to vector<2x16x4xf32>
    %63 = vector.extract_strided_slice %12 {offsets = [0, 0, 12], sizes = [2, 16, 4], strides = [1, 1, 1]} : vector<2x16x32xbf16> to vector<2x16x4xbf16>
    "tpu.trace_start"() <{level = 10 : i32, message = "bqd,bkd->bqk"}> : () -> ()
    %cst_25 = arith.constant dense<0.000000e+00> : vector<2x8x16xf32>
    %64 = tpu.matmul %61, %62, %cst_25 {dimension_numbers = #tpu.dot_dimension_numbers<[2], [2], [1], [1], [0, 0, 0, 1, 1, 1], [0], [0]>} : vector<2x8x4xf32>, vector<2x16x4xf32>, vector<2x8x16xf32> -> vector<2x8x16xf32>
    "tpu.trace_stop"() : () -> ()
    %cst_26 = arith.constant dense<0xFF800000> : vector<2x8xf32>
    %65 = vector.multi_reduction <maximumf>, %64, %cst_26 [2] : vector<2x8x16xf32> to vector<2x8xf32>
    %66 = vector.shape_cast %65 : vector<2x8xf32> to vector<2x8x1xf32>
    %67 = vector.broadcast %66 : vector<2x8x1xf32> to vector<2x8x16xf32>
    %68 = arith.subf %64, %67 : vector<2x8x16xf32>
    %69 = math.exp %68 : vector<2x8x16xf32>
    %cst_27 = arith.constant dense<0.000000e+00> : vector<2x8xf32>
    %70 = vector.multi_reduction <add>, %69, %cst_27 [2] : vector<2x8x16xf32> to vector<2x8xf32>
    %71 = vector.shape_cast %70 : vector<2x8xf32> to vector<2x8x1xf32>
    %72 = arith.truncf %69 : vector<2x8x16xf32> to vector<2x8x16xbf16>
    "tpu.trace_start"() <{level = 10 : i32, message = "bqk,bkd->bqd"}> : () -> ()
    %cst_28 = arith.constant dense<0.000000e+00> : vector<2x8x4xf32>
    %73 = tpu.matmul %72, %63, %cst_28 {dimension_numbers = #tpu.dot_dimension_numbers<[2], [1], [1], [2], [0, 0, 0, 1, 1, 2], [0], [0]>} : vector<2x8x16xbf16>, vector<2x16x4xbf16>, vector<2x8x4xf32> -> vector<2x8x4xf32>
    "tpu.trace_stop"() : () -> ()
    %74 = tpu.reciprocal %71 {approx = true} : vector<2x8x1xf32> -> vector<2x8x1xf32>
    %75 = vector.broadcast %74 : vector<2x8x1xf32> to vector<2x8x4xf32>
    %76 = arith.mulf %73, %75 : vector<2x8x4xf32>
    %77 = vector.extract_strided_slice %9 {offsets = [0, 0, 16], sizes = [2, 8, 4], strides = [1, 1, 1]} : vector<2x8x32xf32> to vector<2x8x4xf32>
    %78 = vector.extract_strided_slice %10 {offsets = [0, 0, 16], sizes = [2, 16, 4], strides = [1, 1, 1]} : vector<2x16x32xf32> to vector<2x16x4xf32>
    %79 = vector.extract_strided_slice %12 {offsets = [0, 0, 16], sizes = [2, 16, 4], strides = [1, 1, 1]} : vector<2x16x32xbf16> to vector<2x16x4xbf16>
    "tpu.trace_start"() <{level = 10 : i32, message = "bqd,bkd->bqk"}> : () -> ()
    %cst_29 = arith.constant dense<0.000000e+00> : vector<2x8x16xf32>
    %80 = tpu.matmul %77, %78, %cst_29 {dimension_numbers = #tpu.dot_dimension_numbers<[2], [2], [1], [1], [0, 0, 0, 1, 1, 1], [0], [0]>} : vector<2x8x4xf32>, vector<2x16x4xf32>, vector<2x8x16xf32> -> vector<2x8x16xf32>
    "tpu.trace_stop"() : () -> ()
    %cst_30 = arith.constant dense<0xFF800000> : vector<2x8xf32>
    %81 = vector.multi_reduction <maximumf>, %80, %cst_30 [2] : vector<2x8x16xf32> to vector<2x8xf32>
    %82 = vector.shape_cast %81 : vector<2x8xf32> to vector<2x8x1xf32>
    %83 = vector.broadcast %82 : vector<2x8x1xf32> to vector<2x8x16xf32>
    %84 = arith.subf %80, %83 : vector<2x8x16xf32>
    %85 = math.exp %84 : vector<2x8x16xf32>
    %cst_31 = arith.constant dense<0.000000e+00> : vector<2x8xf32>
    %86 = vector.multi_reduction <add>, %85, %cst_31 [2] : vector<2x8x16xf32> to vector<2x8xf32>
    %87 = vector.shape_cast %86 : vector<2x8xf32> to vector<2x8x1xf32>
    %88 = arith.truncf %85 : vector<2x8x16xf32> to vector<2x8x16xbf16>
    "tpu.trace_start"() <{level = 10 : i32, message = "bqk,bkd->bqd"}> : () -> ()
    %cst_32 = arith.constant dense<0.000000e+00> : vector<2x8x4xf32>
    %89 = tpu.matmul %88, %79, %cst_32 {dimension_numbers = #tpu.dot_dimension_numbers<[2], [1], [1], [2], [0, 0, 0, 1, 1, 2], [0], [0]>} : vector<2x8x16xbf16>, vector<2x16x4xbf16>, vector<2x8x4xf32> -> vector<2x8x4xf32>
    "tpu.trace_stop"() : () -> ()
    %90 = tpu.reciprocal %87 {approx = true} : vector<2x8x1xf32> -> vector<2x8x1xf32>
    %91 = vector.broadcast %90 : vector<2x8x1xf32> to vector<2x8x4xf32>
    %92 = arith.mulf %89, %91 : vector<2x8x4xf32>
    %93 = vector.extract_strided_slice %9 {offsets = [0, 0, 20], sizes = [2, 8, 4], strides = [1, 1, 1]} : vector<2x8x32xf32> to vector<2x8x4xf32>
    %94 = vector.extract_strided_slice %10 {offsets = [0, 0, 20], sizes = [2, 16, 4], strides = [1, 1, 1]} : vector<2x16x32xf32> to vector<2x16x4xf32>
    %95 = vector.extract_strided_slice %12 {offsets = [0, 0, 20], sizes = [2, 16, 4], strides = [1, 1, 1]} : vector<2x16x32xbf16> to vector<2x16x4xbf16>
    "tpu.trace_start"() <{level = 10 : i32, message = "bqd,bkd->bqk"}> : () -> ()
    %cst_33 = arith.constant dense<0.000000e+00> : vector<2x8x16xf32>
    %96 = tpu.matmul %93, %94, %cst_33 {dimension_numbers = #tpu.dot_dimension_numbers<[2], [2], [1], [1], [0, 0, 0, 1, 1, 1], [0], [0]>} : vector<2x8x4xf32>, vector<2x16x4xf32>, vector<2x8x16xf32> -> vector<2x8x16xf32>
    "tpu.trace_stop"() : () -> ()
    %cst_34 = arith.constant dense<0xFF800000> : vector<2x8xf32>
    %97 = vector.multi_reduction <maximumf>, %96, %cst_34 [2] : vector<2x8x16xf32> to vector<2x8xf32>
    %98 = vector.shape_cast %97 : vector<2x8xf32> to vector<2x8x1xf32>
    %99 = vector.broadcast %98 : vector<2x8x1xf32> to vector<2x8x16xf32>
    %100 = arith.subf %96, %99 : vector<2x8x16xf32>
    %101 = math.exp %100 : vector<2x8x16xf32>
    %cst_35 = arith.constant dense<0.000000e+00> : vector<2x8xf32>
    %102 = vector.multi_reduction <add>, %101, %cst_35 [2] : vector<2x8x16xf32> to vector<2x8xf32>
    %103 = vector.shape_cast %102 : vector<2x8xf32> to vector<2x8x1xf32>
    %104 = arith.truncf %101 : vector<2x8x16xf32> to vector<2x8x16xbf16>
    "tpu.trace_start"() <{level = 10 : i32, message = "bqk,bkd->bqd"}> : () -> ()
    %cst_36 = arith.constant dense<0.000000e+00> : vector<2x8x4xf32>
    %105 = tpu.matmul %104, %95, %cst_36 {dimension_numbers = #tpu.dot_dimension_numbers<[2], [1], [1], [2], [0, 0, 0, 1, 1, 2], [0], [0]>} : vector<2x8x16xbf16>, vector<2x16x4xbf16>, vector<2x8x4xf32> -> vector<2x8x4xf32>
    "tpu.trace_stop"() : () -> ()
    %106 = tpu.reciprocal %103 {approx = true} : vector<2x8x1xf32> -> vector<2x8x1xf32>
    %107 = vector.broadcast %106 : vector<2x8x1xf32> to vector<2x8x4xf32>
    %108 = arith.mulf %105, %107 : vector<2x8x4xf32>
    %109 = vector.extract_strided_slice %9 {offsets = [0, 0, 24], sizes = [2, 8, 4], strides = [1, 1, 1]} : vector<2x8x32xf32> to vector<2x8x4xf32>
    %110 = vector.extract_strided_slice %10 {offsets = [0, 0, 24], sizes = [2, 16, 4], strides = [1, 1, 1]} : vector<2x16x32xf32> to vector<2x16x4xf32>
    %111 = vector.extract_strided_slice %12 {offsets = [0, 0, 24], sizes = [2, 16, 4], strides = [1, 1, 1]} : vector<2x16x32xbf16> to vector<2x16x4xbf16>
    "tpu.trace_start"() <{level = 10 : i32, message = "bqd,bkd->bqk"}> : () -> ()
    %cst_37 = arith.constant dense<0.000000e+00> : vector<2x8x16xf32>
    %112 = tpu.matmul %109, %110, %cst_37 {dimension_numbers = #tpu.dot_dimension_numbers<[2], [2], [1], [1], [0, 0, 0, 1, 1, 1], [0], [0]>} : vector<2x8x4xf32>, vector<2x16x4xf32>, vector<2x8x16xf32> -> vector<2x8x16xf32>
    "tpu.trace_stop"() : () -> ()
    %cst_38 = arith.constant dense<0xFF800000> : vector<2x8xf32>
    %113 = vector.multi_reduction <maximumf>, %112, %cst_38 [2] : vector<2x8x16xf32> to vector<2x8xf32>
    %114 = vector.shape_cast %113 : vector<2x8xf32> to vector<2x8x1xf32>
    %115 = vector.broadcast %114 : vector<2x8x1xf32> to vector<2x8x16xf32>
    %116 = arith.subf %112, %115 : vector<2x8x16xf32>
    %117 = math.exp %116 : vector<2x8x16xf32>
    %cst_39 = arith.constant dense<0.000000e+00> : vector<2x8xf32>
    %118 = vector.multi_reduction <add>, %117, %cst_39 [2] : vector<2x8x16xf32> to vector<2x8xf32>
    %119 = vector.shape_cast %118 : vector<2x8xf32> to vector<2x8x1xf32>
    %120 = arith.truncf %117 : vector<2x8x16xf32> to vector<2x8x16xbf16>
    "tpu.trace_start"() <{level = 10 : i32, message = "bqk,bkd->bqd"}> : () -> ()
    %cst_40 = arith.constant dense<0.000000e+00> : vector<2x8x4xf32>
    %121 = tpu.matmul %120, %111, %cst_40 {dimension_numbers = #tpu.dot_dimension_numbers<[2], [1], [1], [2], [0, 0, 0, 1, 1, 2], [0], [0]>} : vector<2x8x16xbf16>, vector<2x16x4xbf16>, vector<2x8x4xf32> -> vector<2x8x4xf32>
    "tpu.trace_stop"() : () -> ()
    %122 = tpu.reciprocal %119 {approx = true} : vector<2x8x1xf32> -> vector<2x8x1xf32>
    %123 = vector.broadcast %122 : vector<2x8x1xf32> to vector<2x8x4xf32>
    %124 = arith.mulf %121, %123 : vector<2x8x4xf32>
    %125 = vector.extract_strided_slice %9 {offsets = [0, 0, 28], sizes = [2, 8, 4], strides = [1, 1, 1]} : vector<2x8x32xf32> to vector<2x8x4xf32>
    %126 = vector.extract_strided_slice %10 {offsets = [0, 0, 28], sizes = [2, 16, 4], strides = [1, 1, 1]} : vector<2x16x32xf32> to vector<2x16x4xf32>
    %127 = vector.extract_strided_slice %12 {offsets = [0, 0, 28], sizes = [2, 16, 4], strides = [1, 1, 1]} : vector<2x16x32xbf16> to vector<2x16x4xbf16>
    "tpu.trace_start"() <{level = 10 : i32, message = "bqd,bkd->bqk"}> : () -> ()
    %cst_41 = arith.constant dense<0.000000e+00> : vector<2x8x16xf32>
    %128 = tpu.matmul %125, %126, %cst_41 {dimension_numbers = #tpu.dot_dimension_numbers<[2], [2], [1], [1], [0, 0, 0, 1, 1, 1], [0], [0]>} : vector<2x8x4xf32>, vector<2x16x4xf32>, vector<2x8x16xf32> -> vector<2x8x16xf32>
    "tpu.trace_stop"() : () -> ()
    %cst_42 = arith.constant dense<0xFF800000> : vector<2x8xf32>
    %129 = vector.multi_reduction <maximumf>, %128, %cst_42 [2] : vector<2x8x16xf32> to vector<2x8xf32>
    %130 = vector.shape_cast %129 : vector<2x8xf32> to vector<2x8x1xf32>
    %131 = vector.broadcast %130 : vector<2x8x1xf32> to vector<2x8x16xf32>
    %132 = arith.subf %128, %131 : vector<2x8x16xf32>
    %133 = math.exp %132 : vector<2x8x16xf32>
    %cst_43 = arith.constant dense<0.000000e+00> : vector<2x8xf32>
    %134 = vector.multi_reduction <add>, %133, %cst_43 [2] : vector<2x8x16xf32> to vector<2x8xf32>
    %135 = vector.shape_cast %134 : vector<2x8xf32> to vector<2x8x1xf32>
    %136 = arith.truncf %133 : vector<2x8x16xf32> to vector<2x8x16xbf16>
    "tpu.trace_start"() <{level = 10 : i32, message = "bqk,bkd->bqd"}> : () -> ()
    %cst_44 = arith.constant dense<0.000000e+00> : vector<2x8x4xf32>
    %137 = tpu.matmul %136, %127, %cst_44 {dimension_numbers = #tpu.dot_dimension_numbers<[2], [1], [1], [2], [0, 0, 0, 1, 1, 2], [0], [0]>} : vector<2x8x16xbf16>, vector<2x16x4xbf16>, vector<2x8x4xf32> -> vector<2x8x4xf32>
    "tpu.trace_stop"() : () -> ()
    %138 = tpu.reciprocal %135 {approx = true} : vector<2x8x1xf32> -> vector<2x8x1xf32>
    %139 = vector.broadcast %138 : vector<2x8x1xf32> to vector<2x8x4xf32>
    %140 = arith.mulf %137, %139 : vector<2x8x4xf32>
    %141 = tpu.concatenate %28, %44, %60, %76, %92, %108, %124, %140 in 2 : vector<2x8x4xf32>, vector<2x8x4xf32>, vector<2x8x4xf32>, vector<2x8x4xf32>, vector<2x8x4xf32>, vector<2x8x4xf32>, vector<2x8x4xf32>, vector<2x8x4xf32> -> vector<2x8x32xf32>
    %142 = vector.shape_cast %141 : vector<2x8x32xf32> to vector<16x32xf32>
    %143 = arith.truncf %142 : vector<16x32xf32> to vector<16x32xbf16>
    %c0_45 = arith.constant 0 : index
    %c0_46 = arith.constant 0 : index
    %144 = vector.load %arg7[%c0_45, %c0_46] : memref<32x32xbf16, #tpu.memory_space<vmem>>, vector<32x32xbf16>
    %cst_47 = arith.constant dense<0.000000e+00> : vector<16x32xf32>
    %145 = tpu.matmul %143, %144, %cst_47 {dimension_numbers = #tpu.dot_dimension_numbers<[1], [0], [0], [1], [0, 0, 1, 1], [], []>} : vector<16x32xbf16>, vector<32x32xbf16>, vector<16x32xf32> -> vector<16x32xf32>
    %c0_48 = arith.constant 0 : index
    %c0_49 = arith.constant 0 : index
    %146 = vector.load %arg8[%c0_48, %c0_49] : memref<1x32xf32, #tpu.memory_space<vmem>>, vector<1x32xf32>
    %147 = vector.broadcast %146 : vector<1x32xf32> to vector<16x32xf32>
    %148 = arith.addf %145, %147 : vector<16x32xf32>
    %c0_50 = arith.constant 0 : index
    %c0_51 = arith.constant 0 : index
    %149 = vector.load %arg9[%c0_50, %c0_51] : memref<16x32xf32, #tpu.memory_space<vmem>>, vector<16x32xf32>
    tpu.vector_store %arg9[%c0_50, %c0_51], %148 {strides = array<i32>} : memref<16x32xf32, #tpu.memory_space<vmem>>, vector<16x32xf32>,
    return
  }
  func.func @transform_0(%arg0: i32) -> (i32, i32) {
    %c0_i32 = arith.constant 0 : i32
    %c0_i32_0 = arith.constant 0 : i32
    %c0_i32_1 = arith.constant 0 : i32
    return %c0_i32, %c0_i32_0 : i32, i32
  }
  func.func @transform_1(%arg0: i32) -> (i32, i32) {
    %c0_i32 = arith.constant 0 : i32
    %c0_i32_0 = arith.constant 0 : i32
    %c0_i32_1 = arith.constant 0 : i32
    return %c0_i32, %c0_i32_0 : i32, i32
  }
  func.func @transform_2(%arg0: i32) -> (i32, i32) {
    %c0_i32 = arith.constant 0 : i32
    %c0_i32_0 = arith.constant 0 : i32
    %c0_i32_1 = arith.constant 0 : i32
    return %c0_i32, %c0_i32_0 : i32, i32
  }
  func.func @transform_3(%arg0: i32) -> (i32, i32) {
    %c0_i32 = arith.constant 0 : i32
    %c0_i32_0 = arith.constant 0 : i32
    %c0_i32_1 = arith.constant 0 : i32
    return %c0_i32, %c0_i32_0 : i32, i32
  }
  func.func @transform_4(%arg0: i32) -> (i32, i32) {
    %c0_i32 = arith.constant 0 : i32
    %c0_i32_0 = arith.constant 0 : i32
    %c0_i32_1 = arith.constant 0 : i32
    return %c0_i32, %c0_i32_0 : i32, i32
  }
  func.func @transform_5(%arg0: i32) -> (i32, i32) {
    %c0_i32 = arith.constant 0 : i32
    %c0_i32_0 = arith.constant 0 : i32
    %c0_i32_1 = arith.constant 0 : i32
    return %c0_i32, %c0_i32_0 : i32, i32
  }
  func.func @transform_6(%arg0: i32) -> (i32, i32) {
    %c0_i32 = arith.constant 0 : i32
    %c0_i32_0 = arith.constant 0 : i32
    %c0_i32_1 = arith.constant 0 : i32
    return %c0_i32, %c0_i32_0 : i32, i32
  }
  func.func @transform_7(%arg0: i32) -> (i32, i32) {
    %c0_i32 = arith.constant 0 : i32
    %c0_i32_0 = arith.constant 0 : i32
    %c0_i32_1 = arith.constant 0 : i32
    return %c0_i32, %c0_i32_0 : i32, i32
  }
  func.func @transform_8(%arg0: i32) -> (i32, i32) {
    %c0_i32 = arith.constant 0 : i32
    %c0_i32_0 = arith.constant 0 : i32
    %c0_i32_1 = arith.constant 0 : i32
    return %c0_i32, %c0_i32_0 : i32, i32
  }
}

</mosaic_0001>

<llo_original>
// kernel: tpu_custom_call.1
$region0: #{tpu_custom_call.1}
  #allocation0 [shape = 'u32[]', space=smem, size = 0x4, offset = 0x4, fixed_abs, tag = 'smem constant byte address 0x4 - core index']
  #allocation1 [shape = 'u32[144,128]{1,0:T(1,128)}', space=vmem, size = 0x12000, scoped, tag = 'internal scratch']
  %s0 = inlined_call_operand.hbm [shape: bf16[16,32], index: 0, kind: input, shape index: {}]
  %s1 = inlined_call_operand.hbm [shape: bf16[32,32], index: 1, kind: input, shape index: {}]
  %s2 = inlined_call_operand.hbm [shape: bf16[32,32], index: 2, kind: input, shape index: {}]
  %s3 = inlined_call_operand.hbm [shape: bf16[32,32], index: 3, kind: input, shape index: {}]
  %s4 = inlined_call_operand.hbm [shape: bf16[32,32], index: 4, kind: input, shape index: {}]
  %s5 = inlined_call_operand.hbm [shape: bf16[32,32], index: 5, kind: input, shape index: {}]
  %s6 = inlined_call_operand.hbm [shape: bf16[32,32], index: 6, kind: input, shape index: {}]
  %s7 = inlined_call_operand.vmem [shape: f32[1,32], index: 7, kind: input, shape index: {}]
  %s8 = inlined_call_operand.hbm [shape: f32[16,32], index: 8, kind: output, shape index: {}]
  %s9 = sld [smem:[#allocation0]]
  $region70: #{tpu_custom_call.1} parent=0
    _
  %s11 = ssub.s32 1, %s9
  %s12 = scalar_select 0, %s11, %s9
  $region1: #{tpu_custom_call.1} parent=0
    #allocation2 [shape = 'u8[4096]{0}', space=vmem, size = 0x1000, scoped, tag = 'input window, operand 0, single buffered']
    #allocation3 [shape = 's32[1]{0}', space=sflag, size = 0x4, scoped, tag = 'scoped memory for tpu_custom_call.1']
    #allocation4 [shape = 's32[1]{0}', space=sflag, size = 0x4, scoped, tag = 'scoped memory for tpu_custom_call.1']
    #allocation5 [shape = 'u8[8192]{0}', space=vmem, size = 0x2000, scoped, tag = 'input window, operand 1, single buffered']
    #allocation6 [shape = 's32[1]{0}', space=sflag, size = 0x4, scoped, tag = 'scoped memory for tpu_custom_call.1']
    #allocation7 [shape = 'u8[8192]{0}', space=vmem, size = 0x2000, scoped, tag = 'input window, operand 2, single buffered']
    #allocation8 [shape = 'u8[8192]{0}', space=vmem, size = 0x2000, scoped, tag = 'input window, operand 3, single buffered']
    #allocation9 [shape = 's32[1]{0}', space=sflag, size = 0x4, scoped, tag = 'scoped memory for tpu_custom_call.1']
    #allocation10 [shape = 'u8[8192]{0}', space=vmem, size = 0x2000, scoped, tag = 'input window, operand 4, single buffered']
    #allocation11 [shape = 'u8[8192]{0}', space=vmem, size = 0x2000, scoped, tag = 'input window, operand 5, single buffered']
    #allocation12 [shape = 's32[1]{0}', space=sflag, size = 0x4, scoped, tag = 'scoped memory for tpu_custom_call.1']
    #allocation13 [shape = 'u8[8192]{0}', space=vmem, size = 0x2000, scoped, tag = 'input window, operand 6, single buffered']
    #allocation14 [shape = 'u8[8192]{0}', space=vmem, size = 0x2000, scoped, tag = 'output window, operand 0, single buffered']
    %13 = vsyncpa [#allocation3], 0
    %14 = vsyncpa [#allocation6], 0
    %15 = vsyncpa [#allocation9], 0
    %16 = vsyncpa [#allocation12], 0
    %17 = vsyncpa [#allocation4], 0
    // Predicated region
    $region2: #{tpu_custom_call.1} parent=1 // pred_check
      _
    $region3: #{tpu_custom_call.1} parent=1 // pred_check_branch
      %19 = sbr.rel (0) target = $region5
    $region4: #{tpu_custom_call.1} parent=1 // pred_region
      %s21 = ssub.s32 128, 128
      %22 = vsyncadd [#allocation3], %s21
      %s23 = sshll.u32 [#allocation2], 4
      %s24 = int_to_ptr.vmem [resolvable:$true] %s23
      %29 = dma.hbm_to_vmem [thread:$0]  %s0, 128, %s24, [#allocation3], 64, 64, 4
    $region5: #{tpu_custom_call.1} parent=1 // pred_fallthru
      _
    // Predicated region
    $region6: #{tpu_custom_call.1} parent=1 // pred_check
      _
    $region7: #{tpu_custom_call.1} parent=1 // pred_check_branch
      %31 = sbr.rel (0) target = $region9
    $region8: #{tpu_custom_call.1} parent=1 // pred_region
      %s33 = ssub.s32 256, 256
      %34 = vsyncadd [#allocation6], %s33
      %s35 = sshll.u32 [#allocation5], 4
      %s36 = int_to_ptr.vmem [resolvable:$true] %s35
      %41 = dma.hbm_to_vmem [thread:$0]  %s1, 256, %s36, [#allocation6], 64, 64, 4
    $region9: #{tpu_custom_call.1} parent=1 // pred_fallthru
      _
    // Predicated region
    $region10: #{tpu_custom_call.1} parent=1 // pred_check
      _
    $region11: #{tpu_custom_call.1} parent=1 // pred_check_branch
      %43 = sbr.rel (0) target = $region13
    $region12: #{tpu_custom_call.1} parent=1 // pred_region
      %s45 = ssub.s32 256, 256
      %46 = vsyncadd [#allocation6], %s45
      %s47 = sshll.u32 [#allocation7], 4
      %s48 = int_to_ptr.vmem [resolvable:$true] %s47
      %53 = dma.hbm_to_vmem [thread:$0]  %s2, 256, %s48, [#allocation6], 64, 64, 4
    $region13: #{tpu_custom_call.1} parent=1 // pred_fallthru
      _
    // Predicated region
    $region14: #{tpu_custom_call.1} parent=1 // pred_check
      _
    $region15: #{tpu_custom_call.1} parent=1 // pred_check_branch
      %55 = sbr.rel (0) target = $region17
    $region16: #{tpu_custom_call.1} parent=1 // pred_region
      %s57 = ssub.s32 256, 256
      %58 = vsyncadd [#allocation9], %s57
      %s59 = sshll.u32 [#allocation8], 4
      %s60 = int_to_ptr.vmem [resolvable:$true] %s59
      %65 = dma.hbm_to_vmem [thread:$0]  %s3, 256, %s60, [#allocation9], 64, 64, 4
    $region17: #{tpu_custom_call.1} parent=1 // pred_fallthru
      _
    // Predicated region
    $region18: #{tpu_custom_call.1} parent=1 // pred_check
      _
    $region19: #{tpu_custom_call.1} parent=1 // pred_check_branch
      %67 = sbr.rel (0) target = $region21
    $region20: #{tpu_custom_call.1} parent=1 // pred_region
      %s69 = ssub.s32 256, 256
      %70 = vsyncadd [#allocation9], %s69
      %s71 = sshll.u32 [#allocation10], 4
      %s72 = int_to_ptr.vmem [resolvable:$true] %s71
      %77 = dma.hbm_to_vmem [thread:$0]  %s4, 256, %s72, [#allocation9], 64, 64, 4
    $region21: #{tpu_custom_call.1} parent=1 // pred_fallthru
      _
    // Predicated region
    $region22: #{tpu_custom_call.1} parent=1 // pred_check
      _
    $region23: #{tpu_custom_call.1} parent=1 // pred_check_branch
      %79 = sbr.rel (0) target = $region25
    $region24: #{tpu_custom_call.1} parent=1 // pred_region
      %s81 = ssub.s32 256, 256
      %82 = vsyncadd [#allocation12], %s81
      %s83 = sshll.u32 [#allocation11], 4
      %s84 = int_to_ptr.vmem [resolvable:$true] %s83
      %89 = dma.hbm_to_vmem [thread:$0]  %s5, 256, %s84, [#allocation12], 64, 64, 4
    $region25: #{tpu_custom_call.1} parent=1 // pred_fallthru
      _
    // Predicated region
    $region26: #{tpu_custom_call.1} parent=1 // pred_check
      _
    $region27: #{tpu_custom_call.1} parent=1 // pred_check_branch
      %91 = sbr.rel (0) target = $region29
    $region28: #{tpu_custom_call.1} parent=1 // pred_region
      %s93 = ssub.s32 256, 256
      %94 = vsyncadd [#allocation12], %s93
      %s95 = sshll.u32 [#allocation13], 4
      %s96 = int_to_ptr.vmem [resolvable:$true] %s95
      %101 = dma.hbm_to_vmem [thread:$0]  %s6, 256, %s96, [#allocation12], 64, 64, 4
    $region29: #{tpu_custom_call.1} parent=1 // pred_fallthru
      _
    // Predicated region
    $region30: #{tpu_custom_call.1} parent=1 // pred_check
      _
    $region31: #{tpu_custom_call.1} parent=1 // pred_check_branch
      %103 = sbr.rel (0) target = $region33
    $region32: #{tpu_custom_call.1} parent=1 // pred_region
      _
    $region33: #{tpu_custom_call.1} parent=1 // pred_fallthru
      _
    // Predicated region
    $region34: #{tpu_custom_call.1} parent=1 // pred_check
      _
    $region35: #{tpu_custom_call.1} parent=1 // pred_check_branch
      %105 = sbr.rel (0) target = $region37
    $region36: #{tpu_custom_call.1} parent=1 // pred_region
      %106 = dma.done [#allocation3], 128
    $region37: #{tpu_custom_call.1} parent=1 // pred_fallthru
      _
    // Predicated region
    $region38: #{tpu_custom_call.1} parent=1 // pred_check
      _
    $region39: #{tpu_custom_call.1} parent=1 // pred_check_branch
      %108 = sbr.rel (0) target = $region41
    $region40: #{tpu_custom_call.1} parent=1 // pred_region
      %109 = dma.done [#allocation6], 256
    $region41: #{tpu_custom_call.1} parent=1 // pred_fallthru
      _
    // Predicated region
    $region42: #{tpu_custom_call.1} parent=1 // pred_check
      _
    $region43: #{tpu_custom_call.1} parent=1 // pred_check_branch
      %111 = sbr.rel (0) target = $region45
    $region44: #{tpu_custom_call.1} parent=1 // pred_region
      %112 = dma.done [#allocation6], 256
    $region45: #{tpu_custom_call.1} parent=1 // pred_fallthru
      _
    // Predicated region
    $region46: #{tpu_custom_call.1} parent=1 // pred_check
      _
    $region47: #{tpu_custom_call.1} parent=1 // pred_check_branch
      %114 = sbr.rel (0) target = $region49
    $region48: #{tpu_custom_call.1} parent=1 // pred_region
      %115 = dma.done [#allocation9], 256
    $region49: #{tpu_custom_call.1} parent=1 // pred_fallthru
      _
    // Predicated region
    $region50: #{tpu_custom_call.1} parent=1 // pred_check
      _
    $region51: #{tpu_custom_call.1} parent=1 // pred_check_branch
      %117 = sbr.rel (0) target = $region53
    $region52: #{tpu_custom_call.1} parent=1 // pred_region
      %118 = dma.done [#allocation9], 256
    $region53: #{tpu_custom_call.1} parent=1 // pred_fallthru
      _
    // Predicated region
    $region54: #{tpu_custom_call.1} parent=1 // pred_check
      _
    $region55: #{tpu_custom_call.1} parent=1 // pred_check_branch
      %120 = sbr.rel (0) target = $region57
    $region56: #{tpu_custom_call.1} parent=1 // pred_region
      %121 = dma.done [#allocation12], 256
    $region57: #{tpu_custom_call.1} parent=1 // pred_fallthru
      _
    // Predicated region
    $region58: #{tpu_custom_call.1} parent=1 // pred_check
      _
    $region59: #{tpu_custom_call.1} parent=1 // pred_check_branch
      %123 = sbr.rel (0) target = $region61
    $region60: #{tpu_custom_call.1} parent=1 // pred_region
      %124 = dma.done [#allocation12], 256
    $region61: #{tpu_custom_call.1} parent=1 // pred_fallthru
      _
    %v126 = vld [vmem:[#allocation2] sm:$0xf]
    %v127 = vld [vmem:[#allocation2 + $0x4] sm:$0xf]
    %v128 = vld [vmem:[#allocation8] sm:$0xf]
    %v129 = vld [vmem:[#allocation8 + $0x4] sm:$0xf]
    %v130 = vld [vmem:[#allocation8 + $0x8] sm:$0xf]
    %v131 = vld [vmem:[#allocation8 + $0xc] sm:$0xf]
    %v134 = vunpack.c.l.b16 %v126
    %v135 = vunpack.c.l.b16 %v127
    %v136 = vpack.c.b16 %v135, %v134
    %v141 = vunpack.c.l.b16 %v128
    %v142 = vunpack.c.l.b16 %v129
    %v143 = vunpack.c.l.b16 %v130
    %v144 = vunpack.c.l.b16 %v131
    %v145 = vpack.c.b16 %v142, %v141
    %v146 = vpack.c.b16 %v144, %v143
    %vm149 = vcmask 261120
    %v151 = vsel %vm149, %v136, 0
    %153 = vmatprep.subr.bf16.mxu0 0
    %154 = vmatpush1.bf16.msra.mxu0 0
    %155 = vmatprep.subr.bf16.mxu0 0
    %156 = vmatpush1.bf16.msra.mxu0 0
    %157 = vmatprep.subr.bf16.mxu0 0
    %158 = vmatpush1.bf16.msra.mxu0 0
    %159 = vmatprep.subr.bf16.mxu0 0
    %160 = vmatpush1.bf16.msra.mxu0 0
    %161 = vmatprep.subr.bf16.mxu0 0
    %162 = vmatpush1.bf16.msra.mxu0 0
    %163 = vmatprep.subr.bf16.mxu0 0
    %164 = vmatpush1.bf16.msra.mxu0 0
    %165 = vmatprep.subr.bf16.mxu0 0
    %166 = vmatpush1.bf16.msra.mxu0 %v146
    %167 = vmatprep.subr.bf16.mxu0 0
    %168 = vmatpush1.bf16.msra.mxu0 %v145
    %169 = vmatprep.subr.bf16.mxu0 0
    %170 = vmatpush2.bf16.msra.mxu0 0
    %171 = vmatprep.subr.bf16.mxu0 0
    %172 = vmatpush2.bf16.msra.mxu0 0
    %173 = vmatprep.subr.bf16.mxu0 0
    %174 = vmatpush2.bf16.msra.mxu0 0
    %175 = vmatprep.subr.bf16.mxu0 0
    %176 = vmatpush2.bf16.msra.mxu0 0
    %177 = vmatprep.subr.bf16.mxu0 0
    %178 = vmatpush2.bf16.msra.mxu0 0
    %179 = vmatprep.subr.bf16.mxu0 0
    %180 = vmatpush2.bf16.msra.mxu0 0
    %181 = vmatprep.subr.bf16.mxu0 0
    %182 = vmatpush2.bf16.msra.mxu0 0
    %183 = vmatprep.subr.bf16.mxu0 0
    %184 = vmatpush2.bf16.msra.mxu0 0
    %185 = vmatprep.mubr.bf16.mxu0 0
    %186 = vmatmul.mubr.bf16.gmra.mxu0 %v151
    %v187 = vpop.f32.mrf.mxu0
    %v188 = vadd.f32 0.0, %v187
    %v189 = vpop.f32.mrf.mxu0
    %v190 = vpop.f32.mrf.mxu0
    %v191 = vadd.f32 0.0, %v190
    %v192 = vpop.f32.mrf.mxu0
    %193 = vdwg.mxu0
    %v194 = vld [vmem:[#allocation5] sm:$0xf]
    %v195 = vld [vmem:[#allocation5 + $0x4] sm:$0xf]
    %v196 = vld [vmem:[#allocation5 + $0x8] sm:$0xf]
    %v197 = vld [vmem:[#allocation5 + $0xc] sm:$0xf]
    %v198 = vld [vmem:[#allocation10] sm:$0xf]
    %v199 = vld [vmem:[#allocation10 + $0x4] sm:$0xf]
    %v200 = vld [vmem:[#allocation10 + $0x8] sm:$0xf]
    %v201 = vld [vmem:[#allocation10 + $0xc] sm:$0xf]
    %v206 = vunpack.c.l.b16 %v194
    %v207 = vunpack.c.l.b16 %v195
    %v208 = vunpack.c.l.b16 %v196
    %v209 = vunpack.c.l.b16 %v197
    %v210 = vpack.c.b16 %v207, %v206
    %v211 = vpack.c.b16 %v209, %v208
    %v216 = vunpack.c.l.b16 %v198
    %v217 = vunpack.c.l.b16 %v199
    %v218 = vunpack.c.l.b16 %v200
    %v219 = vunpack.c.l.b16 %v201
    %v220 = vpack.c.b16 %v217, %v216
    %v221 = vpack.c.b16 %v219, %v218
    %v225 = vsel %vm149, %v210, 0
    %v228 = vsel %vm149, %v211, 0
    %230 = vmatprep.subr.bf16.mxu0 0
    %231 = vmatpush1.bf16.msra.mxu0 0
    %232 = vmatprep.subr.bf16.mxu0 0
    %233 = vmatpush1.bf16.msra.mxu0 0
    %234 = vmatprep.subr.bf16.mxu0 0
    %235 = vmatpush1.bf16.msra.mxu0 0
    %236 = vmatprep.subr.bf16.mxu0 0
    %237 = vmatpush1.bf16.msra.mxu0 0
    %238 = vmatprep.subr.bf16.mxu0 0
    %239 = vmatpush1.bf16.msra.mxu0 0
    %240 = vmatprep.subr.bf16.mxu0 0
    %241 = vmatpush1.bf16.msra.mxu0 0
    %242 = vmatprep.subr.bf16.mxu0 0
    %243 = vmatpush1.bf16.msra.mxu0 %v221
    %244 = vmatprep.subr.bf16.mxu0 0
    %245 = vmatpush1.bf16.msra.mxu0 %v220
    %246 = vmatprep.subr.bf16.mxu0 0
    %247 = vmatpush2.bf16.msra.mxu0 0
    %248 = vmatprep.subr.bf16.mxu0 0
    %249 = vmatpush2.bf16.msra.mxu0 0
    %250 = vmatprep.subr.bf16.mxu0 0
    %251 = vmatpush2.bf16.msra.mxu0 0
    %252 = vmatprep.subr.bf16.mxu0 0
    %253 = vmatpush2.bf16.msra.mxu0 0
    %254 = vmatprep.subr.bf16.mxu0 0
    %255 = vmatpush2.bf16.msra.mxu0 0
    %256 = vmatprep.subr.bf16.mxu0 0
    %257 = vmatpush2.bf16.msra.mxu0 0
    %258 = vmatprep.subr.bf16.mxu0 0
    %259 = vmatpush2.bf16.msra.mxu0 0
    %260 = vmatprep.subr.bf16.mxu0 0
    %261 = vmatpush2.bf16.msra.mxu0 0
    %262 = vmatprep.mubr.bf16.mxu0 0
    %263 = vmatmul.mubr.bf16.gmra.mxu0 %v225
    %v264 = vpop.f32.mrf.mxu0
    %v265 = vadd.f32 0.0, %v264
    %v266 = vpop.f32.mrf.mxu0
    %v267 = vpop.f32.mrf.mxu0
    %v268 = vadd.f32 0.0, %v267
    %v269 = vpop.f32.mrf.mxu0
    %270 = vmatprep.mubr.bf16.mxu0 0
    %271 = vmatmul.mubr.bf16.gmra.mxu0 %v228
    %v272 = vpop.f32.mrf.mxu0
    %v273 = vadd.f32 0.0, %v272
    %v274 = vpop.f32.mrf.mxu0
    %v275 = vpop.f32.mrf.mxu0
    %v276 = vadd.f32 0.0, %v275
    %v277 = vpop.f32.mrf.mxu0
    %278 = vdwg.mxu0
    %v279 = vld [vmem:[#allocation7] sm:$0xf]
    %v280 = vld [vmem:[#allocation7 + $0x4] sm:$0xf]
    %v281 = vld [vmem:[#allocation7 + $0x8] sm:$0xf]
    %v282 = vld [vmem:[#allocation7 + $0xc] sm:$0xf]
    %v283 = vld [vmem:[#allocation11] sm:$0xf]
    %v284 = vld [vmem:[#allocation11 + $0x4] sm:$0xf]
    %v285 = vld [vmem:[#allocation11 + $0x8] sm:$0xf]
    %v286 = vld [vmem:[#allocation11 + $0xc] sm:$0xf]
    %v291 = vunpack.c.l.b16 %v279
    %v292 = vunpack.c.l.b16 %v280
    %v293 = vunpack.c.l.b16 %v281
    %v294 = vunpack.c.l.b16 %v282
    %v295 = vpack.c.b16 %v292, %v291
    %v296 = vpack.c.b16 %v294, %v293
    %v301 = vunpack.c.l.b16 %v283
    %v302 = vunpack.c.l.b16 %v284
    %v303 = vunpack.c.l.b16 %v285
    %v304 = vunpack.c.l.b16 %v286
    %v305 = vpack.c.b16 %v302, %v301
    %v306 = vpack.c.b16 %v304, %v303
    %v310 = vsel %vm149, %v295, 0
    %v313 = vsel %vm149, %v296, 0
    %315 = vmatprep.subr.bf16.mxu0 0
    %316 = vmatpush1.bf16.msra.mxu0 0
    %317 = vmatprep.subr.bf16.mxu0 0
    %318 = vmatpush1.bf16.msra.mxu0 0
    %319 = vmatprep.subr.bf16.mxu0 0
    %320 = vmatpush1.bf16.msra.mxu0 0
    %321 = vmatprep.subr.bf16.mxu0 0
    %322 = vmatpush1.bf16.msra.mxu0 0
    %323 = vmatprep.subr.bf16.mxu0 0
    %324 = vmatpush1.bf16.msra.mxu0 0
    %325 = vmatprep.subr.bf16.mxu0 0
    %326 = vmatpush1.bf16.msra.mxu0 0
    %327 = vmatprep.subr.bf16.mxu0 0
    %328 = vmatpush1.bf16.msra.mxu0 %v306
    %329 = vmatprep.subr.bf16.mxu0 0
    %330 = vmatpush1.bf16.msra.mxu0 %v305
    %331 = vmatprep.subr.bf16.mxu0 0
    %332 = vmatpush2.bf16.msra.mxu0 0
    %333 = vmatprep.subr.bf16.mxu0 0
    %334 = vmatpush2.bf16.msra.mxu0 0
    %335 = vmatprep.subr.bf16.mxu0 0
    %336 = vmatpush2.bf16.msra.mxu0 0
    %337 = vmatprep.subr.bf16.mxu0 0
    %338 = vmatpush2.bf16.msra.mxu0 0
    %339 = vmatprep.subr.bf16.mxu0 0
    %340 = vmatpush2.bf16.msra.mxu0 0
    %341 = vmatprep.subr.bf16.mxu0 0
    %342 = vmatpush2.bf16.msra.mxu0 0
    %343 = vmatprep.subr.bf16.mxu0 0
    %344 = vmatpush2.bf16.msra.mxu0 0
    %345 = vmatprep.subr.bf16.mxu0 0
    %346 = vmatpush2.bf16.msra.mxu0 0
    %347 = vmatprep.mubr.bf16.mxu0 0
    %348 = vmatmul.mubr.bf16.gmra.mxu0 %v310
    %v349 = vpop.f32.mrf.mxu0
    %v350 = vadd.f32 0.0, %v349
    %v351 = vpop.f32.mrf.mxu0
    %v352 = vpop.f32.mrf.mxu0
    %v353 = vadd.f32 0.0, %v352
    %v354 = vpop.f32.mrf.mxu0
    %355 = vmatprep.mubr.bf16.mxu0 0
    %356 = vmatmul.mubr.bf16.gmra.mxu0 %v313
    %v357 = vpop.f32.mrf.mxu0
    %v358 = vadd.f32 0.0, %v357
    %v359 = vpop.f32.mrf.mxu0
    %v360 = vpop.f32.mrf.mxu0
    %v361 = vadd.f32 0.0, %v360
    %v362 = vpop.f32.mrf.mxu0
    %363 = vdwg.mxu0
    %v364 = vpack.c.bf16 %v353, %v350
    %v365 = vpack.c.bf16 %v361, %v358
    %vm366 = vcmask 31744
    %v368 = vsel %vm366, %v188, 0
    %v371 = vsel %vm366, %v265, 0
    %v374 = vsel %vm366, %v268, 0
    %376 = vmatprep.subr.mxu0 0.0
    %377 = vmatpush1.xpose.msra.mxu0 0.0
    %378 = vmatprep.subr.mxu0 0.0
    %379 = vmatpush1.xpose.msra.mxu0 0.0
    %380 = vmatprep.subr.mxu0 0.0
    %381 = vmatpush1.xpose.msra.mxu0 0.0
    %382 = vmatprep.subr.mxu0 0.0
    %383 = vmatpush1.xpose.msra.mxu0 0.0
    %384 = vmatprep.subr.mxu0 0.0
    %385 = vmatpush1.xpose.msra.mxu0 0.0
    %386 = vmatprep.subr.mxu0 0.0
    %387 = vmatpush1.xpose.msra.mxu0 0.0
    %388 = vmatprep.subr.mxu0 0.0
    %389 = vmatpush1.xpose.msra.mxu0 0.0
    %390 = vmatprep.subr.mxu0 0.0
    %391 = vmatpush1.xpose.msra.mxu0 0.0
    %392 = vmatprep.subr.mxu0 0.0
    %393 = vmatpush1.xpose.msra.mxu0 0.0
    %394 = vmatprep.subr.mxu0 0.0
    %395 = vmatpush1.xpose.msra.mxu0 0.0
    %396 = vmatprep.subr.mxu0 0.0
    %397 = vmatpush1.xpose.msra.mxu0 0.0
    %398 = vmatprep.subr.mxu0 0.0
    %399 = vmatpush1.xpose.msra.mxu0 0.0
    %400 = vmatprep.subr.mxu0 0.0
    %401 = vmatpush1.xpose.msra.mxu0 0.0
    %402 = vmatprep.subr.mxu0 0.0
    %403 = vmatpush1.xpose.msra.mxu0 0.0
    %404 = vmatprep.subr.mxu0 0.0
    %405 = vmatpush1.xpose.msra.mxu0 %v374
    %406 = vmatprep.subr.mxu0 0.0
    %407 = vmatpush1.xpose.msra.mxu0 %v371
    %408 = vmatprep.subr.mxu0 0.0
    %409 = vmatpush2.xpose.msra.mxu0 0.0
    %410 = vmatprep.subr.mxu0 0.0
    %411 = vmatpush2.xpose.msra.mxu0 0.0
    %412 = vmatprep.subr.mxu0 0.0
    %413 = vmatpush2.xpose.msra.mxu0 0.0
    %414 = vmatprep.subr.mxu0 0.0
    %415 = vmatpush2.xpose.msra.mxu0 0.0
    %416 = vmatprep.subr.mxu0 0.0
    %417 = vmatpush2.xpose.msra.mxu0 0.0
    %418 = vmatprep.subr.mxu0 0.0
    %419 = vmatpush2.xpose.msra.mxu0 0.0
    %420 = vmatprep.subr.mxu0 0.0
    %421 = vmatpush2.xpose.msra.mxu0 0.0
    %422 = vmatprep.subr.mxu0 0.0
    %423 = vmatpush2.xpose.msra.mxu0 0.0
    %424 = vmatprep.subr.mxu0 0.0
    %425 = vmatpush2.xpose.msra.mxu0 0.0
    %426 = vmatprep.subr.mxu0 0.0
    %427 = vmatpush2.xpose.msra.mxu0 0.0
    %428 = vmatprep.subr.mxu0 0.0
    %429 = vmatpush2.xpose.msra.mxu0 0.0
    %430 = vmatprep.subr.mxu0 0.0
    %431 = vmatpush2.xpose.msra.mxu0 0.0
    %432 = vmatprep.subr.mxu0 0.0
    %433 = vmatpush2.xpose.msra.mxu0 0.0
    %434 = vmatprep.subr.mxu0 0.0
    %435 = vmatpush2.xpose.msra.mxu0 0.0
    %436 = vmatprep.subr.mxu0 0.0
    %437 = vmatpush2.xpose.msra.mxu0 0.0
    %438 = vmatprep.subr.mxu0 0.0
    %439 = vmatpush2.xpose.msra.mxu0 0.0
    %440 = vmatprep.mubr.f32.mxu0 0.0
    %441 = vmatmul.mubr.f32.gmra.mxu0 %v368
    %v442 = vpop.f32.mrf.mxu0
    %v443 = vadd.f32 0.0, %v442
    %v444 = vpop.f32.mrf.mxu0
    %445 = vdwg.mxu0
    %v447 = vsel %vm366, %v191, 0
    %v450 = vsel %vm366, %v273, 0
    %v453 = vsel %vm366, %v276, 0
    %455 = vmatprep.subr.mxu0 0.0
    %456 = vmatpush1.xpose.msra.mxu0 0.0
    %457 = vmatprep.subr.mxu0 0.0
    %458 = vmatpush1.xpose.msra.mxu0 0.0
    %459 = vmatprep.subr.mxu0 0.0
    %460 = vmatpush1.xpose.msra.mxu0 0.0
    %461 = vmatprep.subr.mxu0 0.0
    %462 = vmatpush1.xpose.msra.mxu0 0.0
    %463 = vmatprep.subr.mxu0 0.0
    %464 = vmatpush1.xpose.msra.mxu0 0.0
    %465 = vmatprep.subr.mxu0 0.0
    %466 = vmatpush1.xpose.msra.mxu0 0.0
    %467 = vmatprep.subr.mxu0 0.0
    %468 = vmatpush1.xpose.msra.mxu0 0.0
    %469 = vmatprep.subr.mxu0 0.0
    %470 = vmatpush1.xpose.msra.mxu0 0.0
    %471 = vmatprep.subr.mxu0 0.0
    %472 = vmatpush1.xpose.msra.mxu0 0.0
    %473 = vmatprep.subr.mxu0 0.0
    %474 = vmatpush1.xpose.msra.mxu0 0.0
    %475 = vmatprep.subr.mxu0 0.0
    %476 = vmatpush1.xpose.msra.mxu0 0.0
    %477 = vmatprep.subr.mxu0 0.0
    %478 = vmatpush1.xpose.msra.mxu0 0.0
    %479 = vmatprep.subr.mxu0 0.0
    %480 = vmatpush1.xpose.msra.mxu0 0.0
    %481 = vmatprep.subr.mxu0 0.0
    %482 = vmatpush1.xpose.msra.mxu0 0.0
    %483 = vmatprep.subr.mxu0 0.0
    %484 = vmatpush1.xpose.msra.mxu0 %v453
    %485 = vmatprep.subr.mxu0 0.0
    %486 = vmatpush1.xpose.msra.mxu0 %v450
    %487 = vmatprep.subr.mxu0 0.0
    %488 = vmatpush2.xpose.msra.mxu0 0.0
    %489 = vmatprep.subr.mxu0 0.0
    %490 = vmatpush2.xpose.msra.mxu0 0.0
    %491 = vmatprep.subr.mxu0 0.0
    %492 = vmatpush2.xpose.msra.mxu0 0.0
    %493 = vmatprep.subr.mxu0 0.0
    %494 = vmatpush2.xpose.msra.mxu0 0.0
    %495 = vmatprep.subr.mxu0 0.0
    %496 = vmatpush2.xpose.msra.mxu0 0.0
    %497 = vmatprep.subr.mxu0 0.0
    %498 = vmatpush2.xpose.msra.mxu0 0.0
    %499 = vmatprep.subr.mxu0 0.0
    %500 = vmatpush2.xpose.msra.mxu0 0.0
    %501 = vmatprep.subr.mxu0 0.0
    %502 = vmatpush2.xpose.msra.mxu0 0.0
    %503 = vmatprep.subr.mxu0 0.0
    %504 = vmatpush2.xpose.msra.mxu0 0.0
    %505 = vmatprep.subr.mxu0 0.0
    %506 = vmatpush2.xpose.msra.mxu0 0.0
    %507 = vmatprep.subr.mxu0 0.0
    %508 = vmatpush2.xpose.msra.mxu0 0.0
    %509 = vmatprep.subr.mxu0 0.0
    %510 = vmatpush2.xpose.msra.mxu0 0.0
    %511 = vmatprep.subr.mxu0 0.0
    %512 = vmatpush2.xpose.msra.mxu0 0.0
    %513 = vmatprep.subr.mxu0 0.0
    %514 = vmatpush2.xpose.msra.mxu0 0.0
    %515 = vmatprep.subr.mxu0 0.0
    %516 = vmatpush2.xpose.msra.mxu0 0.0
    %517 = vmatprep.subr.mxu0 0.0
    %518 = vmatpush2.xpose.msra.mxu0 0.0
    %519 = vmatprep.mubr.f32.mxu0 0.0
    %520 = vmatmul.mubr.f32.gmra.mxu0 %v447
    %v521 = vpop.f32.mrf.mxu0
    %v522 = vadd.f32 0.0, %v521
    %v523 = vpop.f32.mrf.mxu0
    %524 = vdwg.mxu0
    %vm525 = vcmask 130048
    %v526 = vsel %vm525, %v443, -inf
    %527 = vmax.xlane.f32.xlu0 %v526
    %v528 = vpop.xlane.xlu0 %527
    %v529 = vsel %vm525, %v522, -inf
    %530 = vmax.xlane.f32.xlu0 %v529
    %v531 = vpop.xlane.xlu0 %530
    %v532 = vsub.f32 %v443, %v528
    %v533 = vsub.f32 %v522, %v531
    %v534 = vmul.f32 %v532, 1.442695
    %v535 = vpow.pop %v534
    %v536 = vmul.f32 %v533, 1.442695
    %v537 = vpow.pop %v536
    %v538 = vsel %vm525, %v535, 0.0
    %539 = vadd.xlane.f32.xlu0 %v538
    %v540 = vpop.xlane.xlu0 %539
    %v541 = vsel %vm525, %v537, 0.0
    %542 = vadd.xlane.f32.xlu0 %v541
    %v543 = vpop.xlane.xlu0 %542
    %v544 = vpack.c.bf16 %v535, %v535
    %v545 = vpack.c.bf16 %v537, %v537
    %v547 = vsel %vm525, %v544, 0
    %549 = vmatprep.subr.bf16.mxu0 0
    %550 = vmatpush1.bf16.msra.mxu0 0
    %551 = vmatprep.subr.bf16.mxu0 0
    %552 = vmatpush1.bf16.msra.mxu0 0
    %553 = vmatprep.subr.bf16.mxu0 0
    %554 = vmatpush1.bf16.msra.mxu0 0
    %555 = vmatprep.subr.bf16.mxu0 0
    %556 = vmatpush1.bf16.msra.mxu0 0
    %557 = vmatprep.subr.bf16.mxu0 0
    %558 = vmatpush1.bf16.msra.mxu0 0
    %559 = vmatprep.subr.bf16.mxu0 0
    %560 = vmatpush1.bf16.msra.mxu0 0
    %561 = vmatprep.subr.bf16.mxu0 0
    %562 = vmatpush1.bf16.msra.mxu0 0
    %563 = vmatprep.subr.bf16.mxu0 0
    %564 = vmatpush1.bf16.msra.mxu0 %v364
    %565 = vmatprep.subr.bf16.mxu0 0
    %566 = vmatpush2.bf16.msra.mxu0 0
    %567 = vmatprep.subr.bf16.mxu0 0
    %568 = vmatpush2.bf16.msra.mxu0 0
    %569 = vmatprep.subr.bf16.mxu0 0
    %570 = vmatpush2.bf16.msra.mxu0 0
    %571 = vmatprep.subr.bf16.mxu0 0
    %572 = vmatpush2.bf16.msra.mxu0 0
    %573 = vmatprep.subr.bf16.mxu0 0
    %574 = vmatpush2.bf16.msra.mxu0 0
    %575 = vmatprep.subr.bf16.mxu0 0
    %576 = vmatpush2.bf16.msra.mxu0 0
    %577 = vmatprep.subr.bf16.mxu0 0
    %578 = vmatpush2.bf16.msra.mxu0 0
    %579 = vmatprep.subr.bf16.mxu0 0
    %580 = vmatpush2.bf16.msra.mxu0 0
    %581 = vmatprep.mubr.bf16.mxu0 0
    %582 = vmatmul.mubr.bf16.gmra.mxu0 %v547
    %v583 = vpop.f32.mrf.mxu0
    %v584 = vadd.f32 0.0, %v583
    %v585 = vpop.f32.mrf.mxu0
    %v586 = vpop.f32.mrf.mxu0
    %v587 = vpop.f32.mrf.mxu0
    %588 = vdwg.mxu0
    %v590 = vsel %vm525, %v545, 0
    %592 = vmatprep.subr.bf16.mxu0 0
    %593 = vmatpush1.bf16.msra.mxu0 0
    %594 = vmatprep.subr.bf16.mxu0 0
    %595 = vmatpush1.bf16.msra.mxu0 0
    %596 = vmatprep.subr.bf16.mxu0 0
    %597 = vmatpush1.bf16.msra.mxu0 0
    %598 = vmatprep.subr.bf16.mxu0 0
    %599 = vmatpush1.bf16.msra.mxu0 0
    %600 = vmatprep.subr.bf16.mxu0 0
    %601 = vmatpush1.bf16.msra.mxu0 0
    %602 = vmatprep.subr.bf16.mxu0 0
    %603 = vmatpush1.bf16.msra.mxu0 0
    %604 = vmatprep.subr.bf16.mxu0 0
    %605 = vmatpush1.bf16.msra.mxu0 0
    %606 = vmatprep.subr.bf16.mxu0 0
    %607 = vmatpush1.bf16.msra.mxu0 %v365
    %608 = vmatprep.subr.bf16.mxu0 0
    %609 = vmatpush2.bf16.msra.mxu0 0
    %610 = vmatprep.subr.bf16.mxu0 0
    %611 = vmatpush2.bf16.msra.mxu0 0
    %612 = vmatprep.subr.bf16.mxu0 0
    %613 = vmatpush2.bf16.msra.mxu0 0
    %614 = vmatprep.subr.bf16.mxu0 0
    %615 = vmatpush2.bf16.msra.mxu0 0
    %616 = vmatprep.subr.bf16.mxu0 0
    %617 = vmatpush2.bf16.msra.mxu0 0
    %618 = vmatprep.subr.bf16.mxu0 0
    %619 = vmatpush2.bf16.msra.mxu0 0
    %620 = vmatprep.subr.bf16.mxu0 0
    %621 = vmatpush2.bf16.msra.mxu0 0
    %622 = vmatprep.subr.bf16.mxu0 0
    %623 = vmatpush2.bf16.msra.mxu0 0
    %624 = vmatprep.mubr.bf16.mxu0 0
    %625 = vmatmul.mubr.bf16.gmra.mxu0 %v590
    %v626 = vpop.f32.mrf.mxu0
    %v627 = vadd.f32 0.0, %v626
    %v628 = vpop.f32.mrf.mxu0
    %v629 = vpop.f32.mrf.mxu0
    %v630 = vpop.f32.mrf.mxu0
    %631 = vdwg.mxu0
    %v632 = vrcp.pop %v540
    %v633 = vrcp.pop %v543
    %v634 = vmul.f32 %v584, %v632
    %v635 = vmul.f32 %v627, %v633
    %636 = vrot.lane.b32.xlu0 %v188, 124
    %v637 = vpop.permute.xlu0 %636
    %638 = vrot.lane.b32.xlu0 %v265, 124
    %v639 = vpop.permute.xlu0 %638
    %640 = vrot.lane.b32.xlu0 %v268, 124
    %v641 = vpop.permute.xlu0 %640
    %v642 = vsel %vm366, %v637, 0
    %v644 = vsel %vm366, %v639, 0
    %v646 = vsel %vm366, %v641, 0
    %648 = vmatprep.subr.mxu0 0.0
    %649 = vmatpush1.xpose.msra.mxu0 0.0
    %650 = vmatprep.subr.mxu0 0.0
    %651 = vmatpush1.xpose.msra.mxu0 0.0
    %652 = vmatprep.subr.mxu0 0.0
    %653 = vmatpush1.xpose.msra.mxu0 0.0
    %654 = vmatprep.subr.mxu0 0.0
    %655 = vmatpush1.xpose.msra.mxu0 0.0
    %656 = vmatprep.subr.mxu0 0.0
    %657 = vmatpush1.xpose.msra.mxu0 0.0
    %658 = vmatprep.subr.mxu0 0.0
    %659 = vmatpush1.xpose.msra.mxu0 0.0
    %660 = vmatprep.subr.mxu0 0.0
    %661 = vmatpush1.xpose.msra.mxu0 0.0
    %662 = vmatprep.subr.mxu0 0.0
    %663 = vmatpush1.xpose.msra.mxu0 0.0
    %664 = vmatprep.subr.mxu0 0.0
    %665 = vmatpush1.xpose.msra.mxu0 0.0
    %666 = vmatprep.subr.mxu0 0.0
    %667 = vmatpush1.xpose.msra.mxu0 0.0
    %668 = vmatprep.subr.mxu0 0.0
    %669 = vmatpush1.xpose.msra.mxu0 0.0
    %670 = vmatprep.subr.mxu0 0.0
    %671 = vmatpush1.xpose.msra.mxu0 0.0
    %672 = vmatprep.subr.mxu0 0.0
    %673 = vmatpush1.xpose.msra.mxu0 0.0
    %674 = vmatprep.subr.mxu0 0.0
    %675 = vmatpush1.xpose.msra.mxu0 0.0
    %676 = vmatprep.subr.mxu0 0.0
    %677 = vmatpush1.xpose.msra.mxu0 %v646
    %678 = vmatprep.subr.mxu0 0.0
    %679 = vmatpush1.xpose.msra.mxu0 %v644
    %680 = vmatprep.subr.mxu0 0.0
    %681 = vmatpush2.xpose.msra.mxu0 0.0
    %682 = vmatprep.subr.mxu0 0.0
    %683 = vmatpush2.xpose.msra.mxu0 0.0
    %684 = vmatprep.subr.mxu0 0.0
    %685 = vmatpush2.xpose.msra.mxu0 0.0
    %686 = vmatprep.subr.mxu0 0.0
    %687 = vmatpush2.xpose.msra.mxu0 0.0
    %688 = vmatprep.subr.mxu0 0.0
    %689 = vmatpush2.xpose.msra.mxu0 0.0
    %690 = vmatprep.subr.mxu0 0.0
    %691 = vmatpush2.xpose.msra.mxu0 0.0
    %692 = vmatprep.subr.mxu0 0.0
    %693 = vmatpush2.xpose.msra.mxu0 0.0
    %694 = vmatprep.subr.mxu0 0.0
    %695 = vmatpush2.xpose.msra.mxu0 0.0
    %696 = vmatprep.subr.mxu0 0.0
    %697 = vmatpush2.xpose.msra.mxu0 0.0
    %698 = vmatprep.subr.mxu0 0.0
    %699 = vmatpush2.xpose.msra.mxu0 0.0
    %700 = vmatprep.subr.mxu0 0.0
    %701 = vmatpush2.xpose.msra.mxu0 0.0
    %702 = vmatprep.subr.mxu0 0.0
    %703 = vmatpush2.xpose.msra.mxu0 0.0
    %704 = vmatprep.subr.mxu0 0.0
    %705 = vmatpush2.xpose.msra.mxu0 0.0
    %706 = vmatprep.subr.mxu0 0.0
    %707 = vmatpush2.xpose.msra.mxu0 0.0
    %708 = vmatprep.subr.mxu0 0.0
    %709 = vmatpush2.xpose.msra.mxu0 0.0
    %710 = vmatprep.subr.mxu0 0.0
    %711 = vmatpush2.xpose.msra.mxu0 0.0
    %712 = vmatprep.mubr.f32.mxu0 0.0
    %713 = vmatmul.mubr.f32.gmra.mxu0 %v642
    %v714 = vpop.f32.mrf.mxu0
    %v715 = vadd.f32 0.0, %v714
    %v716 = vpop.f32.mrf.mxu0
    %717 = vdwg.mxu0
    %718 = vrot.lane.b32.xlu0 %v191, 124
    %v719 = vpop.permute.xlu0 %718
    %720 = vrot.lane.b32.xlu0 %v273, 124
    %v721 = vpop.permute.xlu0 %720
    %722 = vrot.lane.b32.xlu0 %v276, 124
    %v723 = vpop.permute.xlu0 %722
    %v724 = vsel %vm366, %v719, 0
    %v726 = vsel %vm366, %v721, 0
    %v728 = vsel %vm366, %v723, 0
    %730 = vmatprep.subr.mxu0 0.0
    %731 = vmatpush1.xpose.msra.mxu0 0.0
    %732 = vmatprep.subr.mxu0 0.0
    %733 = vmatpush1.xpose.msra.mxu0 0.0
    %734 = vmatprep.subr.mxu0 0.0
    %735 = vmatpush1.xpose.msra.mxu0 0.0
    %736 = vmatprep.subr.mxu0 0.0
    %737 = vmatpush1.xpose.msra.mxu0 0.0
    %738 = vmatprep.subr.mxu0 0.0
    %739 = vmatpush1.xpose.msra.mxu0 0.0
    %740 = vmatprep.subr.mxu0 0.0
    %741 = vmatpush1.xpose.msra.mxu0 0.0
    %742 = vmatprep.subr.mxu0 0.0
    %743 = vmatpush1.xpose.msra.mxu0 0.0
    %744 = vmatprep.subr.mxu0 0.0
    %745 = vmatpush1.xpose.msra.mxu0 0.0
    %746 = vmatprep.subr.mxu0 0.0
    %747 = vmatpush1.xpose.msra.mxu0 0.0
    %748 = vmatprep.subr.mxu0 0.0
    %749 = vmatpush1.xpose.msra.mxu0 0.0
    %750 = vmatprep.subr.mxu0 0.0
    %751 = vmatpush1.xpose.msra.mxu0 0.0
    %752 = vmatprep.subr.mxu0 0.0
    %753 = vmatpush1.xpose.msra.mxu0 0.0
    %754 = vmatprep.subr.mxu0 0.0
    %755 = vmatpush1.xpose.msra.mxu0 0.0
    %756 = vmatprep.subr.mxu0 0.0
    %757 = vmatpush1.xpose.msra.mxu0 0.0
    %758 = vmatprep.subr.mxu0 0.0
    %759 = vmatpush1.xpose.msra.mxu0 %v728
    %760 = vmatprep.subr.mxu0 0.0
    %761 = vmatpush1.xpose.msra.mxu0 %v726
    %762 = vmatprep.subr.mxu0 0.0
    %763 = vmatpush2.xpose.msra.mxu0 0.0
    %764 = vmatprep.subr.mxu0 0.0
    %765 = vmatpush2.xpose.msra.mxu0 0.0
    %766 = vmatprep.subr.mxu0 0.0
    %767 = vmatpush2.xpose.msra.mxu0 0.0
    %768 = vmatprep.subr.mxu0 0.0
    %769 = vmatpush2.xpose.msra.mxu0 0.0
    %770 = vmatprep.subr.mxu0 0.0
    %771 = vmatpush2.xpose.msra.mxu0 0.0
    %772 = vmatprep.subr.mxu0 0.0
    %773 = vmatpush2.xpose.msra.mxu0 0.0
    %774 = vmatprep.subr.mxu0 0.0
    %775 = vmatpush2.xpose.msra.mxu0 0.0
    %776 = vmatprep.subr.mxu0 0.0
    %777 = vmatpush2.xpose.msra.mxu0 0.0
    %778 = vmatprep.subr.mxu0 0.0
    %779 = vmatpush2.xpose.msra.mxu0 0.0
    %780 = vmatprep.subr.mxu0 0.0
    %781 = vmatpush2.xpose.msra.mxu0 0.0
    %782 = vmatprep.subr.mxu0 0.0
    %783 = vmatpush2.xpose.msra.mxu0 0.0
    %784 = vmatprep.subr.mxu0 0.0
    %785 = vmatpush2.xpose.msra.mxu0 0.0
    %786 = vmatprep.subr.mxu0 0.0
    %787 = vmatpush2.xpose.msra.mxu0 0.0
    %788 = vmatprep.subr.mxu0 0.0
    %789 = vmatpush2.xpose.msra.mxu0 0.0
    %790 = vmatprep.subr.mxu0 0.0
    %791 = vmatpush2.xpose.msra.mxu0 0.0
    %792 = vmatprep.subr.mxu0 0.0
    %793 = vmatpush2.xpose.msra.mxu0 0.0
    %794 = vmatprep.mubr.f32.mxu0 0.0
    %795 = vmatmul.mubr.f32.gmra.mxu0 %v724
    %v796 = vpop.f32.mrf.mxu0
    %v797 = vadd.f32 0.0, %v796
    %v798 = vpop.f32.mrf.mxu0
    %799 = vdwg.mxu0
    %v800 = vsel %vm525, %v715, -inf
    %801 = vmax.xlane.f32.xlu0 %v800
    %v802 = vpop.xlane.xlu0 %801
    %v803 = vsel %vm525, %v797, -inf
    %804 = vmax.xlane.f32.xlu0 %v803
    %v805 = vpop.xlane.xlu0 %804
    %v806 = vsub.f32 %v715, %v802
    %v807 = vsub.f32 %v797, %v805
    %v808 = vmul.f32 %v806, 1.442695
    %v809 = vpow.pop %v808
    %v810 = vmul.f32 %v807, 1.442695
    %v811 = vpow.pop %v810
    %v812 = vsel %vm525, %v809, 0.0
    %813 = vadd.xlane.f32.xlu0 %v812
    %v814 = vpop.xlane.xlu0 %813
    %v815 = vsel %vm525, %v811, 0.0
    %816 = vadd.xlane.f32.xlu0 %v815
    %v817 = vpop.xlane.xlu0 %816
    %v818 = vpack.c.bf16 %v809, %v809
    %v819 = vpack.c.bf16 %v811, %v811
    %821 = vrot.lane.b32.xlu0 %v364, 124
    %v822 = vpop.permute.xlu0 %821
    %v825 = vsel %vm525, %v818, 0
    %827 = vmatprep.subr.bf16.mxu0 0
    %828 = vmatpush1.bf16.msra.mxu0 0
    %829 = vmatprep.subr.bf16.mxu0 0
    %830 = vmatpush1.bf16.msra.mxu0 0
    %831 = vmatprep.subr.bf16.mxu0 0
    %832 = vmatpush1.bf16.msra.mxu0 0
    %833 = vmatprep.subr.bf16.mxu0 0
    %834 = vmatpush1.bf16.msra.mxu0 0
    %835 = vmatprep.subr.bf16.mxu0 0
    %836 = vmatpush1.bf16.msra.mxu0 0
    %837 = vmatprep.subr.bf16.mxu0 0
    %838 = vmatpush1.bf16.msra.mxu0 0
    %839 = vmatprep.subr.bf16.mxu0 0
    %840 = vmatpush1.bf16.msra.mxu0 0
    %841 = vmatprep.subr.bf16.mxu0 0
    %842 = vmatpush1.bf16.msra.mxu0 %v822
    %843 = vmatprep.subr.bf16.mxu0 0
    %844 = vmatpush2.bf16.msra.mxu0 0
    %845 = vmatprep.subr.bf16.mxu0 0
    %846 = vmatpush2.bf16.msra.mxu0 0
    %847 = vmatprep.subr.bf16.mxu0 0
    %848 = vmatpush2.bf16.msra.mxu0 0
    %849 = vmatprep.subr.bf16.mxu0 0
    %850 = vmatpush2.bf16.msra.mxu0 0
    %851 = vmatprep.subr.bf16.mxu0 0
    %852 = vmatpush2.bf16.msra.mxu0 0
    %853 = vmatprep.subr.bf16.mxu0 0
    %854 = vmatpush2.bf16.msra.mxu0 0
    %855 = vmatprep.subr.bf16.mxu0 0
    %856 = vmatpush2.bf16.msra.mxu0 0
    %857 = vmatprep.subr.bf16.mxu0 0
    %858 = vmatpush2.bf16.msra.mxu0 0
    %859 = vmatprep.mubr.bf16.mxu0 0
    %860 = vmatmul.mubr.bf16.gmra.mxu0 %v825
    %v861 = vpop.f32.mrf.mxu0
    %v862 = vadd.f32 0.0, %v861
    %v863 = vpop.f32.mrf.mxu0
    %v864 = vpop.f32.mrf.mxu0
    %v865 = vpop.f32.mrf.mxu0
    %866 = vdwg.mxu0
    %868 = vrot.lane.b32.xlu0 %v365, 124
    %v869 = vpop.permute.xlu0 %868
    %v872 = vsel %vm525, %v819, 0
    %874 = vmatprep.subr.bf16.mxu0 0
    %875 = vmatpush1.bf16.msra.mxu0 0
    %876 = vmatprep.subr.bf16.mxu0 0
    %877 = vmatpush1.bf16.msra.mxu0 0
    %878 = vmatprep.subr.bf16.mxu0 0
    %879 = vmatpush1.bf16.msra.mxu0 0
    %880 = vmatprep.subr.bf16.mxu0 0
    %881 = vmatpush1.bf16.msra.mxu0 0
    %882 = vmatprep.subr.bf16.mxu0 0
    %883 = vmatpush1.bf16.msra.mxu0 0
    %884 = vmatprep.subr.bf16.mxu0 0
    %885 = vmatpush1.bf16.msra.mxu0 0
    %886 = vmatprep.subr.bf16.mxu0 0
    %887 = vmatpush1.bf16.msra.mxu0 0
    %888 = vmatprep.subr.bf16.mxu0 0
    %889 = vmatpush1.bf16.msra.mxu0 %v869
    %890 = vmatprep.subr.bf16.mxu0 0
    %891 = vmatpush2.bf16.msra.mxu0 0
    %892 = vmatprep.subr.bf16.mxu0 0
    %893 = vmatpush2.bf16.msra.mxu0 0
    %894 = vmatprep.subr.bf16.mxu0 0
    %895 = vmatpush2.bf16.msra.mxu0 0
    %896 = vmatprep.subr.bf16.mxu0 0
    %897 = vmatpush2.bf16.msra.mxu0 0
    %898 = vmatprep.subr.bf16.mxu0 0
    %899 = vmatpush2.bf16.msra.mxu0 0
    %900 = vmatprep.subr.bf16.mxu0 0
    %901 = vmatpush2.bf16.msra.mxu0 0
    %902 = vmatprep.subr.bf16.mxu0 0
    %903 = vmatpush2.bf16.msra.mxu0 0
    %904 = vmatprep.subr.bf16.mxu0 0
    %905 = vmatpush2.bf16.msra.mxu0 0
    %906 = vmatprep.mubr.bf16.mxu0 0
    %907 = vmatmul.mubr.bf16.gmra.mxu0 %v872
    %v908 = vpop.f32.mrf.mxu0
    %v909 = vadd.f32 0.0, %v908
    %v910 = vpop.f32.mrf.mxu0
    %v911 = vpop.f32.mrf.mxu0
    %v912 = vpop.f32.mrf.mxu0
    %913 = vdwg.mxu0
    %v914 = vrcp.pop %v814
    %v915 = vrcp.pop %v817
    %v916 = vmul.f32 %v862, %v914
    %v917 = vmul.f32 %v909, %v915
    %918 = vrot.lane.b32.xlu0 %v188, 120
    %v919 = vpop.permute.xlu0 %918
    %920 = vrot.lane.b32.xlu0 %v265, 120
    %v921 = vpop.permute.xlu0 %920
    %922 = vrot.lane.b32.xlu0 %v268, 120
    %v923 = vpop.permute.xlu0 %922
    %v924 = vsel %vm366, %v919, 0
    %v926 = vsel %vm366, %v921, 0
    %v928 = vsel %vm366, %v923, 0
    %930 = vmatprep.subr.mxu0 0.0
    %931 = vmatpush1.xpose.msra.mxu0 0.0
    %932 = vmatprep.subr.mxu0 0.0
    %933 = vmatpush1.xpose.msra.mxu0 0.0
    %934 = vmatprep.subr.mxu0 0.0
    %935 = vmatpush1.xpose.msra.mxu0 0.0
    %936 = vmatprep.subr.mxu0 0.0
    %937 = vmatpush1.xpose.msra.mxu0 0.0
    %938 = vmatprep.subr.mxu0 0.0
    %939 = vmatpush1.xpose.msra.mxu0 0.0
    %940 = vmatprep.subr.mxu0 0.0
    %941 = vmatpush1.xpose.msra.mxu0 0.0
    %942 = vmatprep.subr.mxu0 0.0
    %943 = vmatpush1.xpose.msra.mxu0 0.0
    %944 = vmatprep.subr.mxu0 0.0
    %945 = vmatpush1.xpose.msra.mxu0 0.0
    %946 = vmatprep.subr.mxu0 0.0
    %947 = vmatpush1.xpose.msra.mxu0 0.0
    %948 = vmatprep.subr.mxu0 0.0
    %949 = vmatpush1.xpose.msra.mxu0 0.0
    %950 = vmatprep.subr.mxu0 0.0
    %951 = vmatpush1.xpose.msra.mxu0 0.0
    %952 = vmatprep.subr.mxu0 0.0
    %953 = vmatpush1.xpose.msra.mxu0 0.0
    %954 = vmatprep.subr.mxu0 0.0
    %955 = vmatpush1.xpose.msra.mxu0 0.0
    %956 = vmatprep.subr.mxu0 0.0
    %957 = vmatpush1.xpose.msra.mxu0 0.0
    %958 = vmatprep.subr.mxu0 0.0
    %959 = vmatpush1.xpose.msra.mxu0 %v928
    %960 = vmatprep.subr.mxu0 0.0
    %961 = vmatpush1.xpose.msra.mxu0 %v926
    %962 = vmatprep.subr.mxu0 0.0
    %963 = vmatpush2.xpose.msra.mxu0 0.0
    %964 = vmatprep.subr.mxu0 0.0
    %965 = vmatpush2.xpose.msra.mxu0 0.0
    %966 = vmatprep.subr.mxu0 0.0
    %967 = vmatpush2.xpose.msra.mxu0 0.0
    %968 = vmatprep.subr.mxu0 0.0
    %969 = vmatpush2.xpose.msra.mxu0 0.0
    %970 = vmatprep.subr.mxu0 0.0
    %971 = vmatpush2.xpose.msra.mxu0 0.0
    %972 = vmatprep.subr.mxu0 0.0
    %973 = vmatpush2.xpose.msra.mxu0 0.0
    %974 = vmatprep.subr.mxu0 0.0
    %975 = vmatpush2.xpose.msra.mxu0 0.0
    %976 = vmatprep.subr.mxu0 0.0
    %977 = vmatpush2.xpose.msra.mxu0 0.0
    %978 = vmatprep.subr.mxu0 0.0
    %979 = vmatpush2.xpose.msra.mxu0 0.0
    %980 = vmatprep.subr.mxu0 0.0
    %981 = vmatpush2.xpose.msra.mxu0 0.0
    %982 = vmatprep.subr.mxu0 0.0
    %983 = vmatpush2.xpose.msra.mxu0 0.0
    %984 = vmatprep.subr.mxu0 0.0
    %985 = vmatpush2.xpose.msra.mxu0 0.0
    %986 = vmatprep.subr.mxu0 0.0
    %987 = vmatpush2.xpose.msra.mxu0 0.0
    %988 = vmatprep.subr.mxu0 0.0
    %989 = vmatpush2.xpose.msra.mxu0 0.0
    %990 = vmatprep.subr.mxu0 0.0
    %991 = vmatpush2.xpose.msra.mxu0 0.0
    %992 = vmatprep.subr.mxu0 0.0
    %993 = vmatpush2.xpose.msra.mxu0 0.0
    %994 = vmatprep.mubr.f32.mxu0 0.0
    %995 = vmatmul.mubr.f32.gmra.mxu0 %v924
    %v996 = vpop.f32.mrf.mxu0
    %v997 = vadd.f32 0.0, %v996
    %v998 = vpop.f32.mrf.mxu0
    %999 = vdwg.mxu0
    %1000 = vrot.lane.b32.xlu0 %v191, 120
    %v1001 = vpop.permute.xlu0 %1000
    %1002 = vrot.lane.b32.xlu0 %v273, 120
    %v1003 = vpop.permute.xlu0 %1002
    %1004 = vrot.lane.b32.xlu0 %v276, 120
    %v1005 = vpop.permute.xlu0 %1004
    %v1006 = vsel %vm366, %v1001, 0
    %v1008 = vsel %vm366, %v1003, 0
    %v1010 = vsel %vm366, %v1005, 0
    %1012 = vmatprep.subr.mxu0 0.0
    %1013 = vmatpush1.xpose.msra.mxu0 0.0
    %1014 = vmatprep.subr.mxu0 0.0
    %1015 = vmatpush1.xpose.msra.mxu0 0.0
    %1016 = vmatprep.subr.mxu0 0.0
    %1017 = vmatpush1.xpose.msra.mxu0 0.0
    %1018 = vmatprep.subr.mxu0 0.0
    %1019 = vmatpush1.xpose.msra.mxu0 0.0
    %1020 = vmatprep.subr.mxu0 0.0
    %1021 = vmatpush1.xpose.msra.mxu0 0.0
    %1022 = vmatprep.subr.mxu0 0.0
    %1023 = vmatpush1.xpose.msra.mxu0 0.0
    %1024 = vmatprep.subr.mxu0 0.0
    %1025 = vmatpush1.xpose.msra.mxu0 0.0
    %1026 = vmatprep.subr.mxu0 0.0
    %1027 = vmatpush1.xpose.msra.mxu0 0.0
    %1028 = vmatprep.subr.mxu0 0.0
    %1029 = vmatpush1.xpose.msra.mxu0 0.0
    %1030 = vmatprep.subr.mxu0 0.0
    %1031 = vmatpush1.xpose.msra.mxu0 0.0
    %1032 = vmatprep.subr.mxu0 0.0
    %1033 = vmatpush1.xpose.msra.mxu0 0.0
    %1034 = vmatprep.subr.mxu0 0.0
    %1035 = vmatpush1.xpose.msra.mxu0 0.0
    %1036 = vmatprep.subr.mxu0 0.0
    %1037 = vmatpush1.xpose.msra.mxu0 0.0
    %1038 = vmatprep.subr.mxu0 0.0
    %1039 = vmatpush1.xpose.msra.mxu0 0.0
    %1040 = vmatprep.subr.mxu0 0.0
    %1041 = vmatpush1.xpose.msra.mxu0 %v1010
    %1042 = vmatprep.subr.mxu0 0.0
    %1043 = vmatpush1.xpose.msra.mxu0 %v1008
    %1044 = vmatprep.subr.mxu0 0.0
    %1045 = vmatpush2.xpose.msra.mxu0 0.0
    %1046 = vmatprep.subr.mxu0 0.0
    %1047 = vmatpush2.xpose.msra.mxu0 0.0
    %1048 = vmatprep.subr.mxu0 0.0
    %1049 = vmatpush2.xpose.msra.mxu0 0.0
    %1050 = vmatprep.subr.mxu0 0.0
    %1051 = vmatpush2.xpose.msra.mxu0 0.0
    %1052 = vmatprep.subr.mxu0 0.0
    %1053 = vmatpush2.xpose.msra.mxu0 0.0
    %1054 = vmatprep.subr.mxu0 0.0
    %1055 = vmatpush2.xpose.msra.mxu0 0.0
    %1056 = vmatprep.subr.mxu0 0.0
    %1057 = vmatpush2.xpose.msra.mxu0 0.0
    %1058 = vmatprep.subr.mxu0 0.0
    %1059 = vmatpush2.xpose.msra.mxu0 0.0
    %1060 = vmatprep.subr.mxu0 0.0
    %1061 = vmatpush2.xpose.msra.mxu0 0.0
    %1062 = vmatprep.subr.mxu0 0.0
    %1063 = vmatpush2.xpose.msra.mxu0 0.0
    %1064 = vmatprep.subr.mxu0 0.0
    %1065 = vmatpush2.xpose.msra.mxu0 0.0
    %1066 = vmatprep.subr.mxu0 0.0
    %1067 = vmatpush2.xpose.msra.mxu0 0.0
    %1068 = vmatprep.subr.mxu0 0.0
    %1069 = vmatpush2.xpose.msra.mxu0 0.0
    %1070 = vmatprep.subr.mxu0 0.0
    %1071 = vmatpush2.xpose.msra.mxu0 0.0
    %1072 = vmatprep.subr.mxu0 0.0
    %1073 = vmatpush2.xpose.msra.mxu0 0.0
    %1074 = vmatprep.subr.mxu0 0.0
    %1075 = vmatpush2.xpose.msra.mxu0 0.0
    %1076 = vmatprep.mubr.f32.mxu0 0.0
    %1077 = vmatmul.mubr.f32.gmra.mxu0 %v1006
    %v1078 = vpop.f32.mrf.mxu0
    %v1079 = vadd.f32 0.0, %v1078
    %v1080 = vpop.f32.mrf.mxu0
    %1081 = vdwg.mxu0
    %v1082 = vsel %vm525, %v997, -inf
    %1083 = vmax.xlane.f32.xlu0 %v1082
    %v1084 = vpop.xlane.xlu0 %1083
    %v1085 = vsel %vm525, %v1079, -inf
    %1086 = vmax.xlane.f32.xlu0 %v1085
    %v1087 = vpop.xlane.xlu0 %1086
    %v1088 = vsub.f32 %v997, %v1084
    %v1089 = vsub.f32 %v1079, %v1087
    %v1090 = vmul.f32 %v1088, 1.442695
    %v1091 = vpow.pop %v1090
    %v1092 = vmul.f32 %v1089, 1.442695
    %v1093 = vpow.pop %v1092
    %v1094 = vsel %vm525, %v1091, 0.0
    %1095 = vadd.xlane.f32.xlu0 %v1094
    %v1096 = vpop.xlane.xlu0 %1095
    %v1097 = vsel %vm525, %v1093, 0.0
    %1098 = vadd.xlane.f32.xlu0 %v1097
    %v1099 = vpop.xlane.xlu0 %1098
    %v1100 = vpack.c.bf16 %v1091, %v1091
    %v1101 = vpack.c.bf16 %v1093, %v1093
    %1102 = vrot.lane.b32.xlu0 %v364, 120
    %v1103 = vpop.permute.xlu0 %1102
    %v1106 = vsel %vm525, %v1100, 0
    %1108 = vmatprep.subr.bf16.mxu0 0
    %1109 = vmatpush1.bf16.msra.mxu0 0
    %1110 = vmatprep.subr.bf16.mxu0 0
    %1111 = vmatpush1.bf16.msra.mxu0 0
    %1112 = vmatprep.subr.bf16.mxu0 0
    %1113 = vmatpush1.bf16.msra.mxu0 0
    %1114 = vmatprep.subr.bf16.mxu0 0
    %1115 = vmatpush1.bf16.msra.mxu0 0
    %1116 = vmatprep.subr.bf16.mxu0 0
    %1117 = vmatpush1.bf16.msra.mxu0 0
    %1118 = vmatprep.subr.bf16.mxu0 0
    %1119 = vmatpush1.bf16.msra.mxu0 0
    %1120 = vmatprep.subr.bf16.mxu0 0
    %1121 = vmatpush1.bf16.msra.mxu0 0
    %1122 = vmatprep.subr.bf16.mxu0 0
    %1123 = vmatpush1.bf16.msra.mxu0 %v1103
    %1124 = vmatprep.subr.bf16.mxu0 0
    %1125 = vmatpush2.bf16.msra.mxu0 0
    %1126 = vmatprep.subr.bf16.mxu0 0
    %1127 = vmatpush2.bf16.msra.mxu0 0
    %1128 = vmatprep.subr.bf16.mxu0 0
    %1129 = vmatpush2.bf16.msra.mxu0 0
    %1130 = vmatprep.subr.bf16.mxu0 0
    %1131 = vmatpush2.bf16.msra.mxu0 0
    %1132 = vmatprep.subr.bf16.mxu0 0
    %1133 = vmatpush2.bf16.msra.mxu0 0
    %1134 = vmatprep.subr.bf16.mxu0 0
    %1135 = vmatpush2.bf16.msra.mxu0 0
    %1136 = vmatprep.subr.bf16.mxu0 0
    %1137 = vmatpush2.bf16.msra.mxu0 0
    %1138 = vmatprep.subr.bf16.mxu0 0
    %1139 = vmatpush2.bf16.msra.mxu0 0
    %1140 = vmatprep.mubr.bf16.mxu0 0
    %1141 = vmatmul.mubr.bf16.gmra.mxu0 %v1106
    %v1142 = vpop.f32.mrf.mxu0
    %v1143 = vadd.f32 0.0, %v1142
    %v1144 = vpop.f32.mrf.mxu0
    %v1145 = vpop.f32.mrf.mxu0
    %v1146 = vpop.f32.mrf.mxu0
    %1147 = vdwg.mxu0
    %1148 = vrot.lane.b32.xlu0 %v365, 120
    %v1149 = vpop.permute.xlu0 %1148
    %v1152 = vsel %vm525, %v1101, 0
    %1154 = vmatprep.subr.bf16.mxu0 0
    %1155 = vmatpush1.bf16.msra.mxu0 0
    %1156 = vmatprep.subr.bf16.mxu0 0
    %1157 = vmatpush1.bf16.msra.mxu0 0
    %1158 = vmatprep.subr.bf16.mxu0 0
    %1159 = vmatpush1.bf16.msra.mxu0 0
    %1160 = vmatprep.subr.bf16.mxu0 0
    %1161 = vmatpush1.bf16.msra.mxu0 0
    %1162 = vmatprep.subr.bf16.mxu0 0
    %1163 = vmatpush1.bf16.msra.mxu0 0
    %1164 = vmatprep.subr.bf16.mxu0 0
    %1165 = vmatpush1.bf16.msra.mxu0 0
    %1166 = vmatprep.subr.bf16.mxu0 0
    %1167 = vmatpush1.bf16.msra.mxu0 0
    %1168 = vmatprep.subr.bf16.mxu0 0
    %1169 = vmatpush1.bf16.msra.mxu0 %v1149
    %1170 = vmatprep.subr.bf16.mxu0 0
    %1171 = vmatpush2.bf16.msra.mxu0 0
    %1172 = vmatprep.subr.bf16.mxu0 0
    %1173 = vmatpush2.bf16.msra.mxu0 0
    %1174 = vmatprep.subr.bf16.mxu0 0
    %1175 = vmatpush2.bf16.msra.mxu0 0
    %1176 = vmatprep.subr.bf16.mxu0 0
    %1177 = vmatpush2.bf16.msra.mxu0 0
    %1178 = vmatprep.subr.bf16.mxu0 0
    %1179 = vmatpush2.bf16.msra.mxu0 0
    %1180 = vmatprep.subr.bf16.mxu0 0
    %1181 = vmatpush2.bf16.msra.mxu0 0
    %1182 = vmatprep.subr.bf16.mxu0 0
    %1183 = vmatpush2.bf16.msra.mxu0 0
    %1184 = vmatprep.subr.bf16.mxu0 0
    %1185 = vmatpush2.bf16.msra.mxu0 0
    %1186 = vmatprep.mubr.bf16.mxu0 0
    %1187 = vmatmul.mubr.bf16.gmra.mxu0 %v1152
    %v1188 = vpop.f32.mrf.mxu0
    %v1189 = vadd.f32 0.0, %v1188
    %v1190 = vpop.f32.mrf.mxu0
    %v1191 = vpop.f32.mrf.mxu0
    %v1192 = vpop.f32.mrf.mxu0
    %1193 = vdwg.mxu0
    %v1194 = vrcp.pop %v1096
    %v1195 = vrcp.pop %v1099
    %v1196 = vmul.f32 %v1143, %v1194
    %v1197 = vmul.f32 %v1189, %v1195
    %1198 = vrot.lane.b32.xlu0 %v188, 116
    %v1199 = vpop.permute.xlu0 %1198
    %1200 = vrot.lane.b32.xlu0 %v265, 116
    %v1201 = vpop.permute.xlu0 %1200
    %1202 = vrot.lane.b32.xlu0 %v268, 116
    %v1203 = vpop.permute.xlu0 %1202
    %v1204 = vsel %vm366, %v1199, 0
    %v1206 = vsel %vm366, %v1201, 0
    %v1208 = vsel %vm366, %v1203, 0
    %1210 = vmatprep.subr.mxu0 0.0
    %1211 = vmatpush1.xpose.msra.mxu0 0.0
    %1212 = vmatprep.subr.mxu0 0.0
    %1213 = vmatpush1.xpose.msra.mxu0 0.0
    %1214 = vmatprep.subr.mxu0 0.0
    %1215 = vmatpush1.xpose.msra.mxu0 0.0
    %1216 = vmatprep.subr.mxu0 0.0
    %1217 = vmatpush1.xpose.msra.mxu0 0.0
    %1218 = vmatprep.subr.mxu0 0.0
    %1219 = vmatpush1.xpose.msra.mxu0 0.0
    %1220 = vmatprep.subr.mxu0 0.0
    %1221 = vmatpush1.xpose.msra.mxu0 0.0
    %1222 = vmatprep.subr.mxu0 0.0
    %1223 = vmatpush1.xpose.msra.mxu0 0.0
    %1224 = vmatprep.subr.mxu0 0.0
    %1225 = vmatpush1.xpose.msra.mxu0 0.0
    %1226 = vmatprep.subr.mxu0 0.0
    %1227 = vmatpush1.xpose.msra.mxu0 0.0
    %1228 = vmatprep.subr.mxu0 0.0
    %1229 = vmatpush1.xpose.msra.mxu0 0.0
    %1230 = vmatprep.subr.mxu0 0.0
    %1231 = vmatpush1.xpose.msra.mxu0 0.0
    %1232 = vmatprep.subr.mxu0 0.0
    %1233 = vmatpush1.xpose.msra.mxu0 0.0
    %1234 = vmatprep.subr.mxu0 0.0
    %1235 = vmatpush1.xpose.msra.mxu0 0.0
    %1236 = vmatprep.subr.mxu0 0.0
    %1237 = vmatpush1.xpose.msra.mxu0 0.0
    %1238 = vmatprep.subr.mxu0 0.0
    %1239 = vmatpush1.xpose.msra.mxu0 %v1208
    %1240 = vmatprep.subr.mxu0 0.0
    %1241 = vmatpush1.xpose.msra.mxu0 %v1206
    %1242 = vmatprep.subr.mxu0 0.0
    %1243 = vmatpush2.xpose.msra.mxu0 0.0
    %1244 = vmatprep.subr.mxu0 0.0
    %1245 = vmatpush2.xpose.msra.mxu0 0.0
    %1246 = vmatprep.subr.mxu0 0.0
    %1247 = vmatpush2.xpose.msra.mxu0 0.0
    %1248 = vmatprep.subr.mxu0 0.0
    %1249 = vmatpush2.xpose.msra.mxu0 0.0
    %1250 = vmatprep.subr.mxu0 0.0
    %1251 = vmatpush2.xpose.msra.mxu0 0.0
    %1252 = vmatprep.subr.mxu0 0.0
    %1253 = vmatpush2.xpose.msra.mxu0 0.0
    %1254 = vmatprep.subr.mxu0 0.0
    %1255 = vmatpush2.xpose.msra.mxu0 0.0
    %1256 = vmatprep.subr.mxu0 0.0
    %1257 = vmatpush2.xpose.msra.mxu0 0.0
    %1258 = vmatprep.subr.mxu0 0.0
    %1259 = vmatpush2.xpose.msra.mxu0 0.0
    %1260 = vmatprep.subr.mxu0 0.0
    %1261 = vmatpush2.xpose.msra.mxu0 0.0
    %1262 = vmatprep.subr.mxu0 0.0
    %1263 = vmatpush2.xpose.msra.mxu0 0.0
    %1264 = vmatprep.subr.mxu0 0.0
    %1265 = vmatpush2.xpose.msra.mxu0 0.0
    %1266 = vmatprep.subr.mxu0 0.0
    %1267 = vmatpush2.xpose.msra.mxu0 0.0
    %1268 = vmatprep.subr.mxu0 0.0
    %1269 = vmatpush2.xpose.msra.mxu0 0.0
    %1270 = vmatprep.subr.mxu0 0.0
    %1271 = vmatpush2.xpose.msra.mxu0 0.0
    %1272 = vmatprep.subr.mxu0 0.0
    %1273 = vmatpush2.xpose.msra.mxu0 0.0
    %1274 = vmatprep.mubr.f32.mxu0 0.0
    %1275 = vmatmul.mubr.f32.gmra.mxu0 %v1204
    %v1276 = vpop.f32.mrf.mxu0
    %v1277 = vadd.f32 0.0, %v1276
    %v1278 = vpop.f32.mrf.mxu0
    %1279 = vdwg.mxu0
    %1280 = vrot.lane.b32.xlu0 %v191, 116
    %v1281 = vpop.permute.xlu0 %1280
    %1282 = vrot.lane.b32.xlu0 %v273, 116
    %v1283 = vpop.permute.xlu0 %1282
    %1284 = vrot.lane.b32.xlu0 %v276, 116
    %v1285 = vpop.permute.xlu0 %1284
    %v1286 = vsel %vm366, %v1281, 0
    %v1288 = vsel %vm366, %v1283, 0
    %v1290 = vsel %vm366, %v1285, 0
    %1292 = vmatprep.subr.mxu0 0.0
    %1293 = vmatpush1.xpose.msra.mxu0 0.0
    %1294 = vmatprep.subr.mxu0 0.0
    %1295 = vmatpush1.xpose.msra.mxu0 0.0
    %1296 = vmatprep.subr.mxu0 0.0
    %1297 = vmatpush1.xpose.msra.mxu0 0.0
    %1298 = vmatprep.subr.mxu0 0.0
    %1299 = vmatpush1.xpose.msra.mxu0 0.0
    %1300 = vmatprep.subr.mxu0 0.0
    %1301 = vmatpush1.xpose.msra.mxu0 0.0
    %1302 = vmatprep.subr.mxu0 0.0
    %1303 = vmatpush1.xpose.msra.mxu0 0.0
    %1304 = vmatprep.subr.mxu0 0.0
    %1305 = vmatpush1.xpose.msra.mxu0 0.0
    %1306 = vmatprep.subr.mxu0 0.0
    %1307 = vmatpush1.xpose.msra.mxu0 0.0
    %1308 = vmatprep.subr.mxu0 0.0
    %1309 = vmatpush1.xpose.msra.mxu0 0.0
    %1310 = vmatprep.subr.mxu0 0.0
    %1311 = vmatpush1.xpose.msra.mxu0 0.0
    %1312 = vmatprep.subr.mxu0 0.0
    %1313 = vmatpush1.xpose.msra.mxu0 0.0
    %1314 = vmatprep.subr.mxu0 0.0
    %1315 = vmatpush1.xpose.msra.mxu0 0.0
    %1316 = vmatprep.subr.mxu0 0.0
    %1317 = vmatpush1.xpose.msra.mxu0 0.0
    %1318 = vmatprep.subr.mxu0 0.0
    %1319 = vmatpush1.xpose.msra.mxu0 0.0
    %1320 = vmatprep.subr.mxu0 0.0
    %1321 = vmatpush1.xpose.msra.mxu0 %v1290
    %1322 = vmatprep.subr.mxu0 0.0
    %1323 = vmatpush1.xpose.msra.mxu0 %v1288
    %1324 = vmatprep.subr.mxu0 0.0
    %1325 = vmatpush2.xpose.msra.mxu0 0.0
    %1326 = vmatprep.subr.mxu0 0.0
    %1327 = vmatpush2.xpose.msra.mxu0 0.0
    %1328 = vmatprep.subr.mxu0 0.0
    %1329 = vmatpush2.xpose.msra.mxu0 0.0
    %1330 = vmatprep.subr.mxu0 0.0
    %1331 = vmatpush2.xpose.msra.mxu0 0.0
    %1332 = vmatprep.subr.mxu0 0.0
    %1333 = vmatpush2.xpose.msra.mxu0 0.0
    %1334 = vmatprep.subr.mxu0 0.0
    %1335 = vmatpush2.xpose.msra.mxu0 0.0
    %1336 = vmatprep.subr.mxu0 0.0
    %1337 = vmatpush2.xpose.msra.mxu0 0.0
    %1338 = vmatprep.subr.mxu0 0.0
    %1339 = vmatpush2.xpose.msra.mxu0 0.0
    %1340 = vmatprep.subr.mxu0 0.0
    %1341 = vmatpush2.xpose.msra.mxu0 0.0
    %1342 = vmatprep.subr.mxu0 0.0
    %1343 = vmatpush2.xpose.msra.mxu0 0.0
    %1344 = vmatprep.subr.mxu0 0.0
    %1345 = vmatpush2.xpose.msra.mxu0 0.0
    %1346 = vmatprep.subr.mxu0 0.0
    %1347 = vmatpush2.xpose.msra.mxu0 0.0
    %1348 = vmatprep.subr.mxu0 0.0
    %1349 = vmatpush2.xpose.msra.mxu0 0.0
    %1350 = vmatprep.subr.mxu0 0.0
    %1351 = vmatpush2.xpose.msra.mxu0 0.0
    %1352 = vmatprep.subr.mxu0 0.0
    %1353 = vmatpush2.xpose.msra.mxu0 0.0
    %1354 = vmatprep.subr.mxu0 0.0
    %1355 = vmatpush2.xpose.msra.mxu0 0.0
    %1356 = vmatprep.mubr.f32.mxu0 0.0
    %1357 = vmatmul.mubr.f32.gmra.mxu0 %v1286
    %v1358 = vpop.f32.mrf.mxu0
    %v1359 = vadd.f32 0.0, %v1358
    %v1360 = vpop.f32.mrf.mxu0
    %1361 = vdwg.mxu0
    %v1362 = vsel %vm525, %v1277, -inf
    %1363 = vmax.xlane.f32.xlu0 %v1362
    %v1364 = vpop.xlane.xlu0 %1363
    %v1365 = vsel %vm525, %v1359, -inf
    %1366 = vmax.xlane.f32.xlu0 %v1365
    %v1367 = vpop.xlane.xlu0 %1366
    %v1368 = vsub.f32 %v1277, %v1364
    %v1369 = vsub.f32 %v1359, %v1367
    %v1370 = vmul.f32 %v1368, 1.442695
    %v1371 = vpow.pop %v1370
    %v1372 = vmul.f32 %v1369, 1.442695
    %v1373 = vpow.pop %v1372
    %v1374 = vsel %vm525, %v1371, 0.0
    %1375 = vadd.xlane.f32.xlu0 %v1374
    %v1376 = vpop.xlane.xlu0 %1375
    %v1377 = vsel %vm525, %v1373, 0.0
    %1378 = vadd.xlane.f32.xlu0 %v1377
    %v1379 = vpop.xlane.xlu0 %1378
    %v1380 = vpack.c.bf16 %v1371, %v1371
    %v1381 = vpack.c.bf16 %v1373, %v1373
    %1382 = vrot.lane.b32.xlu0 %v364, 116
    %v1383 = vpop.permute.xlu0 %1382
    %v1386 = vsel %vm525, %v1380, 0
    %1388 = vmatprep.subr.bf16.mxu0 0
    %1389 = vmatpush1.bf16.msra.mxu0 0
    %1390 = vmatprep.subr.bf16.mxu0 0
    %1391 = vmatpush1.bf16.msra.mxu0 0
    %1392 = vmatprep.subr.bf16.mxu0 0
    %1393 = vmatpush1.bf16.msra.mxu0 0
    %1394 = vmatprep.subr.bf16.mxu0 0
    %1395 = vmatpush1.bf16.msra.mxu0 0
    %1396 = vmatprep.subr.bf16.mxu0 0
    %1397 = vmatpush1.bf16.msra.mxu0 0
    %1398 = vmatprep.subr.bf16.mxu0 0
    %1399 = vmatpush1.bf16.msra.mxu0 0
    %1400 = vmatprep.subr.bf16.mxu0 0
    %1401 = vmatpush1.bf16.msra.mxu0 0
    %1402 = vmatprep.subr.bf16.mxu0 0
    %1403 = vmatpush1.bf16.msra.mxu0 %v1383
    %1404 = vmatprep.subr.bf16.mxu0 0
    %1405 = vmatpush2.bf16.msra.mxu0 0
    %1406 = vmatprep.subr.bf16.mxu0 0
    %1407 = vmatpush2.bf16.msra.mxu0 0
    %1408 = vmatprep.subr.bf16.mxu0 0
    %1409 = vmatpush2.bf16.msra.mxu0 0
    %1410 = vmatprep.subr.bf16.mxu0 0
    %1411 = vmatpush2.bf16.msra.mxu0 0
    %1412 = vmatprep.subr.bf16.mxu0 0
    %1413 = vmatpush2.bf16.msra.mxu0 0
    %1414 = vmatprep.subr.bf16.mxu0 0
    %1415 = vmatpush2.bf16.msra.mxu0 0
    %1416 = vmatprep.subr.bf16.mxu0 0
    %1417 = vmatpush2.bf16.msra.mxu0 0
    %1418 = vmatprep.subr.bf16.mxu0 0
    %1419 = vmatpush2.bf16.msra.mxu0 0
    %1420 = vmatprep.mubr.bf16.mxu0 0
    %1421 = vmatmul.mubr.bf16.gmra.mxu0 %v1386
    %v1422 = vpop.f32.mrf.mxu0
    %v1423 = vadd.f32 0.0, %v1422
    %v1424 = vpop.f32.mrf.mxu0
    %v1425 = vpop.f32.mrf.mxu0
    %v1426 = vpop.f32.mrf.mxu0
    %1427 = vdwg.mxu0
    %1428 = vrot.lane.b32.xlu0 %v365, 116
    %v1429 = vpop.permute.xlu0 %1428
    %v1432 = vsel %vm525, %v1381, 0
    %1434 = vmatprep.subr.bf16.mxu0 0
    %1435 = vmatpush1.bf16.msra.mxu0 0
    %1436 = vmatprep.subr.bf16.mxu0 0
    %1437 = vmatpush1.bf16.msra.mxu0 0
    %1438 = vmatprep.subr.bf16.mxu0 0
    %1439 = vmatpush1.bf16.msra.mxu0 0
    %1440 = vmatprep.subr.bf16.mxu0 0
    %1441 = vmatpush1.bf16.msra.mxu0 0
    %1442 = vmatprep.subr.bf16.mxu0 0
    %1443 = vmatpush1.bf16.msra.mxu0 0
    %1444 = vmatprep.subr.bf16.mxu0 0
    %1445 = vmatpush1.bf16.msra.mxu0 0
    %1446 = vmatprep.subr.bf16.mxu0 0
    %1447 = vmatpush1.bf16.msra.mxu0 0
    %1448 = vmatprep.subr.bf16.mxu0 0
    %1449 = vmatpush1.bf16.msra.mxu0 %v1429
    %1450 = vmatprep.subr.bf16.mxu0 0
    %1451 = vmatpush2.bf16.msra.mxu0 0
    %1452 = vmatprep.subr.bf16.mxu0 0
    %1453 = vmatpush2.bf16.msra.mxu0 0
    %1454 = vmatprep.subr.bf16.mxu0 0
    %1455 = vmatpush2.bf16.msra.mxu0 0
    %1456 = vmatprep.subr.bf16.mxu0 0
    %1457 = vmatpush2.bf16.msra.mxu0 0
    %1458 = vmatprep.subr.bf16.mxu0 0
    %1459 = vmatpush2.bf16.msra.mxu0 0
    %1460 = vmatprep.subr.bf16.mxu0 0
    %1461 = vmatpush2.bf16.msra.mxu0 0
    %1462 = vmatprep.subr.bf16.mxu0 0
    %1463 = vmatpush2.bf16.msra.mxu0 0
    %1464 = vmatprep.subr.bf16.mxu0 0
    %1465 = vmatpush2.bf16.msra.mxu0 0
    %1466 = vmatprep.mubr.bf16.mxu0 0
    %1467 = vmatmul.mubr.bf16.gmra.mxu0 %v1432
    %v1468 = vpop.f32.mrf.mxu0
    %v1469 = vadd.f32 0.0, %v1468
    %v1470 = vpop.f32.mrf.mxu0
    %v1471 = vpop.f32.mrf.mxu0
    %v1472 = vpop.f32.mrf.mxu0
    %1473 = vdwg.mxu0
    %v1474 = vrcp.pop %v1376
    %v1475 = vrcp.pop %v1379
    %v1476 = vmul.f32 %v1423, %v1474
    %v1477 = vmul.f32 %v1469, %v1475
    %1478 = vrot.lane.b32.xlu0 %v188, 112
    %v1479 = vpop.permute.xlu0 %1478
    %1480 = vrot.lane.b32.xlu0 %v265, 112
    %v1481 = vpop.permute.xlu0 %1480
    %1482 = vrot.lane.b32.xlu0 %v268, 112
    %v1483 = vpop.permute.xlu0 %1482
    %v1484 = vsel %vm366, %v1479, 0
    %v1486 = vsel %vm366, %v1481, 0
    %v1488 = vsel %vm366, %v1483, 0
    %1490 = vmatprep.subr.mxu0 0.0
    %1491 = vmatpush1.xpose.msra.mxu0 0.0
    %1492 = vmatprep.subr.mxu0 0.0
    %1493 = vmatpush1.xpose.msra.mxu0 0.0
    %1494 = vmatprep.subr.mxu0 0.0
    %1495 = vmatpush1.xpose.msra.mxu0 0.0
    %1496 = vmatprep.subr.mxu0 0.0
    %1497 = vmatpush1.xpose.msra.mxu0 0.0
    %1498 = vmatprep.subr.mxu0 0.0
    %1499 = vmatpush1.xpose.msra.mxu0 0.0
    %1500 = vmatprep.subr.mxu0 0.0
    %1501 = vmatpush1.xpose.msra.mxu0 0.0
    %1502 = vmatprep.subr.mxu0 0.0
    %1503 = vmatpush1.xpose.msra.mxu0 0.0
    %1504 = vmatprep.subr.mxu0 0.0
    %1505 = vmatpush1.xpose.msra.mxu0 0.0
    %1506 = vmatprep.subr.mxu0 0.0
    %1507 = vmatpush1.xpose.msra.mxu0 0.0
    %1508 = vmatprep.subr.mxu0 0.0
    %1509 = vmatpush1.xpose.msra.mxu0 0.0
    %1510 = vmatprep.subr.mxu0 0.0
    %1511 = vmatpush1.xpose.msra.mxu0 0.0
    %1512 = vmatprep.subr.mxu0 0.0
    %1513 = vmatpush1.xpose.msra.mxu0 0.0
    %1514 = vmatprep.subr.mxu0 0.0
    %1515 = vmatpush1.xpose.msra.mxu0 0.0
    %1516 = vmatprep.subr.mxu0 0.0
    %1517 = vmatpush1.xpose.msra.mxu0 0.0
    %1518 = vmatprep.subr.mxu0 0.0
    %1519 = vmatpush1.xpose.msra.mxu0 %v1488
    %1520 = vmatprep.subr.mxu0 0.0
    %1521 = vmatpush1.xpose.msra.mxu0 %v1486
    %1522 = vmatprep.subr.mxu0 0.0
    %1523 = vmatpush2.xpose.msra.mxu0 0.0
    %1524 = vmatprep.subr.mxu0 0.0
    %1525 = vmatpush2.xpose.msra.mxu0 0.0
    %1526 = vmatprep.subr.mxu0 0.0
    %1527 = vmatpush2.xpose.msra.mxu0 0.0
    %1528 = vmatprep.subr.mxu0 0.0
    %1529 = vmatpush2.xpose.msra.mxu0 0.0
    %1530 = vmatprep.subr.mxu0 0.0
    %1531 = vmatpush2.xpose.msra.mxu0 0.0
    %1532 = vmatprep.subr.mxu0 0.0
    %1533 = vmatpush2.xpose.msra.mxu0 0.0
    %1534 = vmatprep.subr.mxu0 0.0
    %1535 = vmatpush2.xpose.msra.mxu0 0.0
    %1536 = vmatprep.subr.mxu0 0.0
    %1537 = vmatpush2.xpose.msra.mxu0 0.0
    %1538 = vmatprep.subr.mxu0 0.0
    %1539 = vmatpush2.xpose.msra.mxu0 0.0
    %1540 = vmatprep.subr.mxu0 0.0
    %1541 = vmatpush2.xpose.msra.mxu0 0.0
    %1542 = vmatprep.subr.mxu0 0.0
    %1543 = vmatpush2.xpose.msra.mxu0 0.0
    %1544 = vmatprep.subr.mxu0 0.0
    %1545 = vmatpush2.xpose.msra.mxu0 0.0
    %1546 = vmatprep.subr.mxu0 0.0
    %1547 = vmatpush2.xpose.msra.mxu0 0.0
    %1548 = vmatprep.subr.mxu0 0.0
    %1549 = vmatpush2.xpose.msra.mxu0 0.0
    %1550 = vmatprep.subr.mxu0 0.0
    %1551 = vmatpush2.xpose.msra.mxu0 0.0
    %1552 = vmatprep.subr.mxu0 0.0
    %1553 = vmatpush2.xpose.msra.mxu0 0.0
    %1554 = vmatprep.mubr.f32.mxu0 0.0
    %1555 = vmatmul.mubr.f32.gmra.mxu0 %v1484
    %v1556 = vpop.f32.mrf.mxu0
    %v1557 = vadd.f32 0.0, %v1556
    %v1558 = vpop.f32.mrf.mxu0
    %1559 = vdwg.mxu0
    %1560 = vrot.lane.b32.xlu0 %v191, 112
    %v1561 = vpop.permute.xlu0 %1560
    %1562 = vrot.lane.b32.xlu0 %v273, 112
    %v1563 = vpop.permute.xlu0 %1562
    %1564 = vrot.lane.b32.xlu0 %v276, 112
    %v1565 = vpop.permute.xlu0 %1564
    %v1566 = vsel %vm366, %v1561, 0
    %v1568 = vsel %vm366, %v1563, 0
    %v1570 = vsel %vm366, %v1565, 0
    %1572 = vmatprep.subr.mxu0 0.0
    %1573 = vmatpush1.xpose.msra.mxu0 0.0
    %1574 = vmatprep.subr.mxu0 0.0
    %1575 = vmatpush1.xpose.msra.mxu0 0.0
    %1576 = vmatprep.subr.mxu0 0.0
    %1577 = vmatpush1.xpose.msra.mxu0 0.0
    %1578 = vmatprep.subr.mxu0 0.0
    %1579 = vmatpush1.xpose.msra.mxu0 0.0
    %1580 = vmatprep.subr.mxu0 0.0
    %1581 = vmatpush1.xpose.msra.mxu0 0.0
    %1582 = vmatprep.subr.mxu0 0.0
    %1583 = vmatpush1.xpose.msra.mxu0 0.0
    %1584 = vmatprep.subr.mxu0 0.0
    %1585 = vmatpush1.xpose.msra.mxu0 0.0
    %1586 = vmatprep.subr.mxu0 0.0
    %1587 = vmatpush1.xpose.msra.mxu0 0.0
    %1588 = vmatprep.subr.mxu0 0.0
    %1589 = vmatpush1.xpose.msra.mxu0 0.0
    %1590 = vmatprep.subr.mxu0 0.0
    %1591 = vmatpush1.xpose.msra.mxu0 0.0
    %1592 = vmatprep.subr.mxu0 0.0
    %1593 = vmatpush1.xpose.msra.mxu0 0.0
    %1594 = vmatprep.subr.mxu0 0.0
    %1595 = vmatpush1.xpose.msra.mxu0 0.0
    %1596 = vmatprep.subr.mxu0 0.0
    %1597 = vmatpush1.xpose.msra.mxu0 0.0
    %1598 = vmatprep.subr.mxu0 0.0
    %1599 = vmatpush1.xpose.msra.mxu0 0.0
    %1600 = vmatprep.subr.mxu0 0.0
    %1601 = vmatpush1.xpose.msra.mxu0 %v1570
    %1602 = vmatprep.subr.mxu0 0.0
    %1603 = vmatpush1.xpose.msra.mxu0 %v1568
    %1604 = vmatprep.subr.mxu0 0.0
    %1605 = vmatpush2.xpose.msra.mxu0 0.0
    %1606 = vmatprep.subr.mxu0 0.0
    %1607 = vmatpush2.xpose.msra.mxu0 0.0
    %1608 = vmatprep.subr.mxu0 0.0
    %1609 = vmatpush2.xpose.msra.mxu0 0.0
    %1610 = vmatprep.subr.mxu0 0.0
    %1611 = vmatpush2.xpose.msra.mxu0 0.0
    %1612 = vmatprep.subr.mxu0 0.0
    %1613 = vmatpush2.xpose.msra.mxu0 0.0
    %1614 = vmatprep.subr.mxu0 0.0
    %1615 = vmatpush2.xpose.msra.mxu0 0.0
    %1616 = vmatprep.subr.mxu0 0.0
    %1617 = vmatpush2.xpose.msra.mxu0 0.0
    %1618 = vmatprep.subr.mxu0 0.0
    %1619 = vmatpush2.xpose.msra.mxu0 0.0
    %1620 = vmatprep.subr.mxu0 0.0
    %1621 = vmatpush2.xpose.msra.mxu0 0.0
    %1622 = vmatprep.subr.mxu0 0.0
    %1623 = vmatpush2.xpose.msra.mxu0 0.0
    %1624 = vmatprep.subr.mxu0 0.0
    %1625 = vmatpush2.xpose.msra.mxu0 0.0
    %1626 = vmatprep.subr.mxu0 0.0
    %1627 = vmatpush2.xpose.msra.mxu0 0.0
    %1628 = vmatprep.subr.mxu0 0.0
    %1629 = vmatpush2.xpose.msra.mxu0 0.0
    %1630 = vmatprep.subr.mxu0 0.0
    %1631 = vmatpush2.xpose.msra.mxu0 0.0
    %1632 = vmatprep.subr.mxu0 0.0
    %1633 = vmatpush2.xpose.msra.mxu0 0.0
    %1634 = vmatprep.subr.mxu0 0.0
    %1635 = vmatpush2.xpose.msra.mxu0 0.0
    %1636 = vmatprep.mubr.f32.mxu0 0.0
    %1637 = vmatmul.mubr.f32.gmra.mxu0 %v1566
    %v1638 = vpop.f32.mrf.mxu0
    %v1639 = vadd.f32 0.0, %v1638
    %v1640 = vpop.f32.mrf.mxu0
    %1641 = vdwg.mxu0
    %v1642 = vsel %vm525, %v1557, -inf
    %1643 = vmax.xlane.f32.xlu0 %v1642
    %v1644 = vpop.xlane.xlu0 %1643
    %v1645 = vsel %vm525, %v1639, -inf
    %1646 = vmax.xlane.f32.xlu0 %v1645
    %v1647 = vpop.xlane.xlu0 %1646
    %v1648 = vsub.f32 %v1557, %v1644
    %v1649 = vsub.f32 %v1639, %v1647
    %v1650 = vmul.f32 %v1648, 1.442695
    %v1651 = vpow.pop %v1650
    %v1652 = vmul.f32 %v1649, 1.442695
    %v1653 = vpow.pop %v1652
    %v1654 = vsel %vm525, %v1651, 0.0
    %1655 = vadd.xlane.f32.xlu0 %v1654
    %v1656 = vpop.xlane.xlu0 %1655
    %v1657 = vsel %vm525, %v1653, 0.0
    %1658 = vadd.xlane.f32.xlu0 %v1657
    %v1659 = vpop.xlane.xlu0 %1658
    %v1660 = vpack.c.bf16 %v1651, %v1651
    %v1661 = vpack.c.bf16 %v1653, %v1653
    %1662 = vrot.lane.b32.xlu0 %v364, 112
    %v1663 = vpop.permute.xlu0 %1662
    %v1666 = vsel %vm525, %v1660, 0
    %1668 = vmatprep.subr.bf16.mxu0 0
    %1669 = vmatpush1.bf16.msra.mxu0 0
    %1670 = vmatprep.subr.bf16.mxu0 0
    %1671 = vmatpush1.bf16.msra.mxu0 0
    %1672 = vmatprep.subr.bf16.mxu0 0
    %1673 = vmatpush1.bf16.msra.mxu0 0
    %1674 = vmatprep.subr.bf16.mxu0 0
    %1675 = vmatpush1.bf16.msra.mxu0 0
    %1676 = vmatprep.subr.bf16.mxu0 0
    %1677 = vmatpush1.bf16.msra.mxu0 0
    %1678 = vmatprep.subr.bf16.mxu0 0
    %1679 = vmatpush1.bf16.msra.mxu0 0
    %1680 = vmatprep.subr.bf16.mxu0 0
    %1681 = vmatpush1.bf16.msra.mxu0 0
    %1682 = vmatprep.subr.bf16.mxu0 0
    %1683 = vmatpush1.bf16.msra.mxu0 %v1663
    %1684 = vmatprep.subr.bf16.mxu0 0
    %1685 = vmatpush2.bf16.msra.mxu0 0
    %1686 = vmatprep.subr.bf16.mxu0 0
    %1687 = vmatpush2.bf16.msra.mxu0 0
    %1688 = vmatprep.subr.bf16.mxu0 0
    %1689 = vmatpush2.bf16.msra.mxu0 0
    %1690 = vmatprep.subr.bf16.mxu0 0
    %1691 = vmatpush2.bf16.msra.mxu0 0
    %1692 = vmatprep.subr.bf16.mxu0 0
    %1693 = vmatpush2.bf16.msra.mxu0 0
    %1694 = vmatprep.subr.bf16.mxu0 0
    %1695 = vmatpush2.bf16.msra.mxu0 0
    %1696 = vmatprep.subr.bf16.mxu0 0
    %1697 = vmatpush2.bf16.msra.mxu0 0
    %1698 = vmatprep.subr.bf16.mxu0 0
    %1699 = vmatpush2.bf16.msra.mxu0 0
    %1700 = vmatprep.mubr.bf16.mxu0 0
    %1701 = vmatmul.mubr.bf16.gmra.mxu0 %v1666
    %v1702 = vpop.f32.mrf.mxu0
    %v1703 = vadd.f32 0.0, %v1702
    %v1704 = vpop.f32.mrf.mxu0
    %v1705 = vpop.f32.mrf.mxu0
    %v1706 = vpop.f32.mrf.mxu0
    %1707 = vdwg.mxu0
    %1708 = vrot.lane.b32.xlu0 %v365, 112
    %v1709 = vpop.permute.xlu0 %1708
    %v1712 = vsel %vm525, %v1661, 0
    %1714 = vmatprep.subr.bf16.mxu0 0
    %1715 = vmatpush1.bf16.msra.mxu0 0
    %1716 = vmatprep.subr.bf16.mxu0 0
    %1717 = vmatpush1.bf16.msra.mxu0 0
    %1718 = vmatprep.subr.bf16.mxu0 0
    %1719 = vmatpush1.bf16.msra.mxu0 0
    %1720 = vmatprep.subr.bf16.mxu0 0
    %1721 = vmatpush1.bf16.msra.mxu0 0
    %1722 = vmatprep.subr.bf16.mxu0 0
    %1723 = vmatpush1.bf16.msra.mxu0 0
    %1724 = vmatprep.subr.bf16.mxu0 0
    %1725 = vmatpush1.bf16.msra.mxu0 0
    %1726 = vmatprep.subr.bf16.mxu0 0
    %1727 = vmatpush1.bf16.msra.mxu0 0
    %1728 = vmatprep.subr.bf16.mxu0 0
    %1729 = vmatpush1.bf16.msra.mxu0 %v1709
    %1730 = vmatprep.subr.bf16.mxu0 0
    %1731 = vmatpush2.bf16.msra.mxu0 0
    %1732 = vmatprep.subr.bf16.mxu0 0
    %1733 = vmatpush2.bf16.msra.mxu0 0
    %1734 = vmatprep.subr.bf16.mxu0 0
    %1735 = vmatpush2.bf16.msra.mxu0 0
    %1736 = vmatprep.subr.bf16.mxu0 0
    %1737 = vmatpush2.bf16.msra.mxu0 0
    %1738 = vmatprep.subr.bf16.mxu0 0
    %1739 = vmatpush2.bf16.msra.mxu0 0
    %1740 = vmatprep.subr.bf16.mxu0 0
    %1741 = vmatpush2.bf16.msra.mxu0 0
    %1742 = vmatprep.subr.bf16.mxu0 0
    %1743 = vmatpush2.bf16.msra.mxu0 0
    %1744 = vmatprep.subr.bf16.mxu0 0
    %1745 = vmatpush2.bf16.msra.mxu0 0
    %1746 = vmatprep.mubr.bf16.mxu0 0
    %1747 = vmatmul.mubr.bf16.gmra.mxu0 %v1712
    %v1748 = vpop.f32.mrf.mxu0
    %v1749 = vadd.f32 0.0, %v1748
    %v1750 = vpop.f32.mrf.mxu0
    %v1751 = vpop.f32.mrf.mxu0
    %v1752 = vpop.f32.mrf.mxu0
    %1753 = vdwg.mxu0
    %v1754 = vrcp.pop %v1656
    %v1755 = vrcp.pop %v1659
    %v1756 = vmul.f32 %v1703, %v1754
    %v1757 = vmul.f32 %v1749, %v1755
    %1758 = vrot.lane.b32.xlu0 %v188, 108
    %v1759 = vpop.permute.xlu0 %1758
    %1760 = vrot.lane.b32.xlu0 %v265, 108
    %v1761 = vpop.permute.xlu0 %1760
    %1762 = vrot.lane.b32.xlu0 %v268, 108
    %v1763 = vpop.permute.xlu0 %1762
    %v1764 = vsel %vm366, %v1759, 0
    %v1766 = vsel %vm366, %v1761, 0
    %v1768 = vsel %vm366, %v1763, 0
    %1770 = vmatprep.subr.mxu0 0.0
    %1771 = vmatpush1.xpose.msra.mxu0 0.0
    %1772 = vmatprep.subr.mxu0 0.0
    %1773 = vmatpush1.xpose.msra.mxu0 0.0
    %1774 = vmatprep.subr.mxu0 0.0
    %1775 = vmatpush1.xpose.msra.mxu0 0.0
    %1776 = vmatprep.subr.mxu0 0.0
    %1777 = vmatpush1.xpose.msra.mxu0 0.0
    %1778 = vmatprep.subr.mxu0 0.0
    %1779 = vmatpush1.xpose.msra.mxu0 0.0
    %1780 = vmatprep.subr.mxu0 0.0
    %1781 = vmatpush1.xpose.msra.mxu0 0.0
    %1782 = vmatprep.subr.mxu0 0.0
    %1783 = vmatpush1.xpose.msra.mxu0 0.0
    %1784 = vmatprep.subr.mxu0 0.0
    %1785 = vmatpush1.xpose.msra.mxu0 0.0
    %1786 = vmatprep.subr.mxu0 0.0
    %1787 = vmatpush1.xpose.msra.mxu0 0.0
    %1788 = vmatprep.subr.mxu0 0.0
    %1789 = vmatpush1.xpose.msra.mxu0 0.0
    %1790 = vmatprep.subr.mxu0 0.0
    %1791 = vmatpush1.xpose.msra.mxu0 0.0
    %1792 = vmatprep.subr.mxu0 0.0
    %1793 = vmatpush1.xpose.msra.mxu0 0.0
    %1794 = vmatprep.subr.mxu0 0.0
    %1795 = vmatpush1.xpose.msra.mxu0 0.0
    %1796 = vmatprep.subr.mxu0 0.0
    %1797 = vmatpush1.xpose.msra.mxu0 0.0
    %1798 = vmatprep.subr.mxu0 0.0
    %1799 = vmatpush1.xpose.msra.mxu0 %v1768
    %1800 = vmatprep.subr.mxu0 0.0
    %1801 = vmatpush1.xpose.msra.mxu0 %v1766
    %1802 = vmatprep.subr.mxu0 0.0
    %1803 = vmatpush2.xpose.msra.mxu0 0.0
    %1804 = vmatprep.subr.mxu0 0.0
    %1805 = vmatpush2.xpose.msra.mxu0 0.0
    %1806 = vmatprep.subr.mxu0 0.0
    %1807 = vmatpush2.xpose.msra.mxu0 0.0
    %1808 = vmatprep.subr.mxu0 0.0
    %1809 = vmatpush2.xpose.msra.mxu0 0.0
    %1810 = vmatprep.subr.mxu0 0.0
    %1811 = vmatpush2.xpose.msra.mxu0 0.0
    %1812 = vmatprep.subr.mxu0 0.0
    %1813 = vmatpush2.xpose.msra.mxu0 0.0
    %1814 = vmatprep.subr.mxu0 0.0
    %1815 = vmatpush2.xpose.msra.mxu0 0.0
    %1816 = vmatprep.subr.mxu0 0.0
    %1817 = vmatpush2.xpose.msra.mxu0 0.0
    %1818 = vmatprep.subr.mxu0 0.0
    %1819 = vmatpush2.xpose.msra.mxu0 0.0
    %1820 = vmatprep.subr.mxu0 0.0
    %1821 = vmatpush2.xpose.msra.mxu0 0.0
    %1822 = vmatprep.subr.mxu0 0.0
    %1823 = vmatpush2.xpose.msra.mxu0 0.0
    %1824 = vmatprep.subr.mxu0 0.0
    %1825 = vmatpush2.xpose.msra.mxu0 0.0
    %1826 = vmatprep.subr.mxu0 0.0
    %1827 = vmatpush2.xpose.msra.mxu0 0.0
    %1828 = vmatprep.subr.mxu0 0.0
    %1829 = vmatpush2.xpose.msra.mxu0 0.0
    %1830 = vmatprep.subr.mxu0 0.0
    %1831 = vmatpush2.xpose.msra.mxu0 0.0
    %1832 = vmatprep.subr.mxu0 0.0
    %1833 = vmatpush2.xpose.msra.mxu0 0.0
    %1834 = vmatprep.mubr.f32.mxu0 0.0
    %1835 = vmatmul.mubr.f32.gmra.mxu0 %v1764
    %v1836 = vpop.f32.mrf.mxu0
    %v1837 = vadd.f32 0.0, %v1836
    %v1838 = vpop.f32.mrf.mxu0
    %1839 = vdwg.mxu0
    %1840 = vrot.lane.b32.xlu0 %v191, 108
    %v1841 = vpop.permute.xlu0 %1840
    %1842 = vrot.lane.b32.xlu0 %v273, 108
    %v1843 = vpop.permute.xlu0 %1842
    %1844 = vrot.lane.b32.xlu0 %v276, 108
    %v1845 = vpop.permute.xlu0 %1844
    %v1846 = vsel %vm366, %v1841, 0
    %v1848 = vsel %vm366, %v1843, 0
    %v1850 = vsel %vm366, %v1845, 0
    %1852 = vmatprep.subr.mxu0 0.0
    %1853 = vmatpush1.xpose.msra.mxu0 0.0
    %1854 = vmatprep.subr.mxu0 0.0
    %1855 = vmatpush1.xpose.msra.mxu0 0.0
    %1856 = vmatprep.subr.mxu0 0.0
    %1857 = vmatpush1.xpose.msra.mxu0 0.0
    %1858 = vmatprep.subr.mxu0 0.0
    %1859 = vmatpush1.xpose.msra.mxu0 0.0
    %1860 = vmatprep.subr.mxu0 0.0
    %1861 = vmatpush1.xpose.msra.mxu0 0.0
    %1862 = vmatprep.subr.mxu0 0.0
    %1863 = vmatpush1.xpose.msra.mxu0 0.0
    %1864 = vmatprep.subr.mxu0 0.0
    %1865 = vmatpush1.xpose.msra.mxu0 0.0
    %1866 = vmatprep.subr.mxu0 0.0
    %1867 = vmatpush1.xpose.msra.mxu0 0.0
    %1868 = vmatprep.subr.mxu0 0.0
    %1869 = vmatpush1.xpose.msra.mxu0 0.0
    %1870 = vmatprep.subr.mxu0 0.0
    %1871 = vmatpush1.xpose.msra.mxu0 0.0
    %1872 = vmatprep.subr.mxu0 0.0
    %1873 = vmatpush1.xpose.msra.mxu0 0.0
    %1874 = vmatprep.subr.mxu0 0.0
    %1875 = vmatpush1.xpose.msra.mxu0 0.0
    %1876 = vmatprep.subr.mxu0 0.0
    %1877 = vmatpush1.xpose.msra.mxu0 0.0
    %1878 = vmatprep.subr.mxu0 0.0
    %1879 = vmatpush1.xpose.msra.mxu0 0.0
    %1880 = vmatprep.subr.mxu0 0.0
    %1881 = vmatpush1.xpose.msra.mxu0 %v1850
    %1882 = vmatprep.subr.mxu0 0.0
    %1883 = vmatpush1.xpose.msra.mxu0 %v1848
    %1884 = vmatprep.subr.mxu0 0.0
    %1885 = vmatpush2.xpose.msra.mxu0 0.0
    %1886 = vmatprep.subr.mxu0 0.0
    %1887 = vmatpush2.xpose.msra.mxu0 0.0
    %1888 = vmatprep.subr.mxu0 0.0
    %1889 = vmatpush2.xpose.msra.mxu0 0.0
    %1890 = vmatprep.subr.mxu0 0.0
    %1891 = vmatpush2.xpose.msra.mxu0 0.0
    %1892 = vmatprep.subr.mxu0 0.0
    %1893 = vmatpush2.xpose.msra.mxu0 0.0
    %1894 = vmatprep.subr.mxu0 0.0
    %1895 = vmatpush2.xpose.msra.mxu0 0.0
    %1896 = vmatprep.subr.mxu0 0.0
    %1897 = vmatpush2.xpose.msra.mxu0 0.0
    %1898 = vmatprep.subr.mxu0 0.0
    %1899 = vmatpush2.xpose.msra.mxu0 0.0
    %1900 = vmatprep.subr.mxu0 0.0
    %1901 = vmatpush2.xpose.msra.mxu0 0.0
    %1902 = vmatprep.subr.mxu0 0.0
    %1903 = vmatpush2.xpose.msra.mxu0 0.0
    %1904 = vmatprep.subr.mxu0 0.0
    %1905 = vmatpush2.xpose.msra.mxu0 0.0
    %1906 = vmatprep.subr.mxu0 0.0
    %1907 = vmatpush2.xpose.msra.mxu0 0.0
    %1908 = vmatprep.subr.mxu0 0.0
    %1909 = vmatpush2.xpose.msra.mxu0 0.0
    %1910 = vmatprep.subr.mxu0 0.0
    %1911 = vmatpush2.xpose.msra.mxu0 0.0
    %1912 = vmatprep.subr.mxu0 0.0
    %1913 = vmatpush2.xpose.msra.mxu0 0.0
    %1914 = vmatprep.subr.mxu0 0.0
    %1915 = vmatpush2.xpose.msra.mxu0 0.0
    %1916 = vmatprep.mubr.f32.mxu0 0.0
    %1917 = vmatmul.mubr.f32.gmra.mxu0 %v1846
    %v1918 = vpop.f32.mrf.mxu0
    %v1919 = vadd.f32 0.0, %v1918
    %v1920 = vpop.f32.mrf.mxu0
    %1921 = vdwg.mxu0
    %v1922 = vsel %vm525, %v1837, -inf
    %1923 = vmax.xlane.f32.xlu0 %v1922
    %v1924 = vpop.xlane.xlu0 %1923
    %v1925 = vsel %vm525, %v1919, -inf
    %1926 = vmax.xlane.f32.xlu0 %v1925
    %v1927 = vpop.xlane.xlu0 %1926
    %v1928 = vsub.f32 %v1837, %v1924
    %v1929 = vsub.f32 %v1919, %v1927
    %v1930 = vmul.f32 %v1928, 1.442695
    %v1931 = vpow.pop %v1930
    %v1932 = vmul.f32 %v1929, 1.442695
    %v1933 = vpow.pop %v1932
    %v1934 = vsel %vm525, %v1931, 0.0
    %1935 = vadd.xlane.f32.xlu0 %v1934
    %v1936 = vpop.xlane.xlu0 %1935
    %v1937 = vsel %vm525, %v1933, 0.0
    %1938 = vadd.xlane.f32.xlu0 %v1937
    %v1939 = vpop.xlane.xlu0 %1938
    %v1940 = vpack.c.bf16 %v1931, %v1931
    %v1941 = vpack.c.bf16 %v1933, %v1933
    %1942 = vrot.lane.b32.xlu0 %v364, 108
    %v1943 = vpop.permute.xlu0 %1942
    %v1946 = vsel %vm525, %v1940, 0
    %1948 = vmatprep.subr.bf16.mxu0 0
    %1949 = vmatpush1.bf16.msra.mxu0 0
    %1950 = vmatprep.subr.bf16.mxu0 0
    %1951 = vmatpush1.bf16.msra.mxu0 0
    %1952 = vmatprep.subr.bf16.mxu0 0
    %1953 = vmatpush1.bf16.msra.mxu0 0
    %1954 = vmatprep.subr.bf16.mxu0 0
    %1955 = vmatpush1.bf16.msra.mxu0 0
    %1956 = vmatprep.subr.bf16.mxu0 0
    %1957 = vmatpush1.bf16.msra.mxu0 0
    %1958 = vmatprep.subr.bf16.mxu0 0
    %1959 = vmatpush1.bf16.msra.mxu0 0
    %1960 = vmatprep.subr.bf16.mxu0 0
    %1961 = vmatpush1.bf16.msra.mxu0 0
    %1962 = vmatprep.subr.bf16.mxu0 0
    %1963 = vmatpush1.bf16.msra.mxu0 %v1943
    %1964 = vmatprep.subr.bf16.mxu0 0
    %1965 = vmatpush2.bf16.msra.mxu0 0
    %1966 = vmatprep.subr.bf16.mxu0 0
    %1967 = vmatpush2.bf16.msra.mxu0 0
    %1968 = vmatprep.subr.bf16.mxu0 0
    %1969 = vmatpush2.bf16.msra.mxu0 0
    %1970 = vmatprep.subr.bf16.mxu0 0
    %1971 = vmatpush2.bf16.msra.mxu0 0
    %1972 = vmatprep.subr.bf16.mxu0 0
    %1973 = vmatpush2.bf16.msra.mxu0 0
    %1974 = vmatprep.subr.bf16.mxu0 0
    %1975 = vmatpush2.bf16.msra.mxu0 0
    %1976 = vmatprep.subr.bf16.mxu0 0
    %1977 = vmatpush2.bf16.msra.mxu0 0
    %1978 = vmatprep.subr.bf16.mxu0 0
    %1979 = vmatpush2.bf16.msra.mxu0 0
    %1980 = vmatprep.mubr.bf16.mxu0 0
    %1981 = vmatmul.mubr.bf16.gmra.mxu0 %v1946
    %v1982 = vpop.f32.mrf.mxu0
    %v1983 = vadd.f32 0.0, %v1982
    %v1984 = vpop.f32.mrf.mxu0
    %v1985 = vpop.f32.mrf.mxu0
    %v1986 = vpop.f32.mrf.mxu0
    %1987 = vdwg.mxu0
    %1988 = vrot.lane.b32.xlu0 %v365, 108
    %v1989 = vpop.permute.xlu0 %1988
    %v1992 = vsel %vm525, %v1941, 0
    %1994 = vmatprep.subr.bf16.mxu0 0
    %1995 = vmatpush1.bf16.msra.mxu0 0
    %1996 = vmatprep.subr.bf16.mxu0 0
    %1997 = vmatpush1.bf16.msra.mxu0 0
    %1998 = vmatprep.subr.bf16.mxu0 0
    %1999 = vmatpush1.bf16.msra.mxu0 0
    %2000 = vmatprep.subr.bf16.mxu0 0
    %2001 = vmatpush1.bf16.msra.mxu0 0
    %2002 = vmatprep.subr.bf16.mxu0 0
    %2003 = vmatpush1.bf16.msra.mxu0 0
    %2004 = vmatprep.subr.bf16.mxu0 0
    %2005 = vmatpush1.bf16.msra.mxu0 0
    %2006 = vmatprep.subr.bf16.mxu0 0
    %2007 = vmatpush1.bf16.msra.mxu0 0
    %2008 = vmatprep.subr.bf16.mxu0 0
    %2009 = vmatpush1.bf16.msra.mxu0 %v1989
    %2010 = vmatprep.subr.bf16.mxu0 0
    %2011 = vmatpush2.bf16.msra.mxu0 0
    %2012 = vmatprep.subr.bf16.mxu0 0
    %2013 = vmatpush2.bf16.msra.mxu0 0
    %2014 = vmatprep.subr.bf16.mxu0 0
    %2015 = vmatpush2.bf16.msra.mxu0 0
    %2016 = vmatprep.subr.bf16.mxu0 0
    %2017 = vmatpush2.bf16.msra.mxu0 0
    %2018 = vmatprep.subr.bf16.mxu0 0
    %2019 = vmatpush2.bf16.msra.mxu0 0
    %2020 = vmatprep.subr.bf16.mxu0 0
    %2021 = vmatpush2.bf16.msra.mxu0 0
    %2022 = vmatprep.subr.bf16.mxu0 0
    %2023 = vmatpush2.bf16.msra.mxu0 0
    %2024 = vmatprep.subr.bf16.mxu0 0
    %2025 = vmatpush2.bf16.msra.mxu0 0
    %2026 = vmatprep.mubr.bf16.mxu0 0
    %2027 = vmatmul.mubr.bf16.gmra.mxu0 %v1992
    %v2028 = vpop.f32.mrf.mxu0
    %v2029 = vadd.f32 0.0, %v2028
    %v2030 = vpop.f32.mrf.mxu0
    %v2031 = vpop.f32.mrf.mxu0
    %v2032 = vpop.f32.mrf.mxu0
    %2033 = vdwg.mxu0
    %v2034 = vrcp.pop %v1936
    %v2035 = vrcp.pop %v1939
    %v2036 = vmul.f32 %v1983, %v2034
    %v2037 = vmul.f32 %v2029, %v2035
    %2038 = vrot.lane.b32.xlu0 %v188, 104
    %v2039 = vpop.permute.xlu0 %2038
    %2040 = vrot.lane.b32.xlu0 %v265, 104
    %v2041 = vpop.permute.xlu0 %2040
    %2042 = vrot.lane.b32.xlu0 %v268, 104
    %v2043 = vpop.permute.xlu0 %2042
    %v2044 = vsel %vm366, %v2039, 0
    %v2046 = vsel %vm366, %v2041, 0
    %v2048 = vsel %vm366, %v2043, 0
    %2050 = vmatprep.subr.mxu0 0.0
    %2051 = vmatpush1.xpose.msra.mxu0 0.0
    %2052 = vmatprep.subr.mxu0 0.0
    %2053 = vmatpush1.xpose.msra.mxu0 0.0
    %2054 = vmatprep.subr.mxu0 0.0
    %2055 = vmatpush1.xpose.msra.mxu0 0.0
    %2056 = vmatprep.subr.mxu0 0.0
    %2057 = vmatpush1.xpose.msra.mxu0 0.0
    %2058 = vmatprep.subr.mxu0 0.0
    %2059 = vmatpush1.xpose.msra.mxu0 0.0
    %2060 = vmatprep.subr.mxu0 0.0
    %2061 = vmatpush1.xpose.msra.mxu0 0.0
    %2062 = vmatprep.subr.mxu0 0.0
    %2063 = vmatpush1.xpose.msra.mxu0 0.0
    %2064 = vmatprep.subr.mxu0 0.0
    %2065 = vmatpush1.xpose.msra.mxu0 0.0
    %2066 = vmatprep.subr.mxu0 0.0
    %2067 = vmatpush1.xpose.msra.mxu0 0.0
    %2068 = vmatprep.subr.mxu0 0.0
    %2069 = vmatpush1.xpose.msra.mxu0 0.0
    %2070 = vmatprep.subr.mxu0 0.0
    %2071 = vmatpush1.xpose.msra.mxu0 0.0
    %2072 = vmatprep.subr.mxu0 0.0
    %2073 = vmatpush1.xpose.msra.mxu0 0.0
    %2074 = vmatprep.subr.mxu0 0.0
    %2075 = vmatpush1.xpose.msra.mxu0 0.0
    %2076 = vmatprep.subr.mxu0 0.0
    %2077 = vmatpush1.xpose.msra.mxu0 0.0
    %2078 = vmatprep.subr.mxu0 0.0
    %2079 = vmatpush1.xpose.msra.mxu0 %v2048
    %2080 = vmatprep.subr.mxu0 0.0
    %2081 = vmatpush1.xpose.msra.mxu0 %v2046
    %2082 = vmatprep.subr.mxu0 0.0
    %2083 = vmatpush2.xpose.msra.mxu0 0.0
    %2084 = vmatprep.subr.mxu0 0.0
    %2085 = vmatpush2.xpose.msra.mxu0 0.0
    %2086 = vmatprep.subr.mxu0 0.0
    %2087 = vmatpush2.xpose.msra.mxu0 0.0
    %2088 = vmatprep.subr.mxu0 0.0
    %2089 = vmatpush2.xpose.msra.mxu0 0.0
    %2090 = vmatprep.subr.mxu0 0.0
    %2091 = vmatpush2.xpose.msra.mxu0 0.0
    %2092 = vmatprep.subr.mxu0 0.0
    %2093 = vmatpush2.xpose.msra.mxu0 0.0
    %2094 = vmatprep.subr.mxu0 0.0
    %2095 = vmatpush2.xpose.msra.mxu0 0.0
    %2096 = vmatprep.subr.mxu0 0.0
    %2097 = vmatpush2.xpose.msra.mxu0 0.0
    %2098 = vmatprep.subr.mxu0 0.0
    %2099 = vmatpush2.xpose.msra.mxu0 0.0
    %2100 = vmatprep.subr.mxu0 0.0
    %2101 = vmatpush2.xpose.msra.mxu0 0.0
    %2102 = vmatprep.subr.mxu0 0.0
    %2103 = vmatpush2.xpose.msra.mxu0 0.0
    %2104 = vmatprep.subr.mxu0 0.0
    %2105 = vmatpush2.xpose.msra.mxu0 0.0
    %2106 = vmatprep.subr.mxu0 0.0
    %2107 = vmatpush2.xpose.msra.mxu0 0.0
    %2108 = vmatprep.subr.mxu0 0.0
    %2109 = vmatpush2.xpose.msra.mxu0 0.0
    %2110 = vmatprep.subr.mxu0 0.0
    %2111 = vmatpush2.xpose.msra.mxu0 0.0
    %2112 = vmatprep.subr.mxu0 0.0
    %2113 = vmatpush2.xpose.msra.mxu0 0.0
    %2114 = vmatprep.mubr.f32.mxu0 0.0
    %2115 = vmatmul.mubr.f32.gmra.mxu0 %v2044
    %v2116 = vpop.f32.mrf.mxu0
    %v2117 = vadd.f32 0.0, %v2116
    %v2118 = vpop.f32.mrf.mxu0
    %2119 = vdwg.mxu0
    %2120 = vrot.lane.b32.xlu0 %v191, 104
    %v2121 = vpop.permute.xlu0 %2120
    %2122 = vrot.lane.b32.xlu0 %v273, 104
    %v2123 = vpop.permute.xlu0 %2122
    %2124 = vrot.lane.b32.xlu0 %v276, 104
    %v2125 = vpop.permute.xlu0 %2124
    %v2126 = vsel %vm366, %v2121, 0
    %v2128 = vsel %vm366, %v2123, 0
    %v2130 = vsel %vm366, %v2125, 0
    %2132 = vmatprep.subr.mxu0 0.0
    %2133 = vmatpush1.xpose.msra.mxu0 0.0
    %2134 = vmatprep.subr.mxu0 0.0
    %2135 = vmatpush1.xpose.msra.mxu0 0.0
    %2136 = vmatprep.subr.mxu0 0.0
    %2137 = vmatpush1.xpose.msra.mxu0 0.0
    %2138 = vmatprep.subr.mxu0 0.0
    %2139 = vmatpush1.xpose.msra.mxu0 0.0
    %2140 = vmatprep.subr.mxu0 0.0
    %2141 = vmatpush1.xpose.msra.mxu0 0.0
    %2142 = vmatprep.subr.mxu0 0.0
    %2143 = vmatpush1.xpose.msra.mxu0 0.0
    %2144 = vmatprep.subr.mxu0 0.0
    %2145 = vmatpush1.xpose.msra.mxu0 0.0
    %2146 = vmatprep.subr.mxu0 0.0
    %2147 = vmatpush1.xpose.msra.mxu0 0.0
    %2148 = vmatprep.subr.mxu0 0.0
    %2149 = vmatpush1.xpose.msra.mxu0 0.0
    %2150 = vmatprep.subr.mxu0 0.0
    %2151 = vmatpush1.xpose.msra.mxu0 0.0
    %2152 = vmatprep.subr.mxu0 0.0
    %2153 = vmatpush1.xpose.msra.mxu0 0.0
    %2154 = vmatprep.subr.mxu0 0.0
    %2155 = vmatpush1.xpose.msra.mxu0 0.0
    %2156 = vmatprep.subr.mxu0 0.0
    %2157 = vmatpush1.xpose.msra.mxu0 0.0
    %2158 = vmatprep.subr.mxu0 0.0
    %2159 = vmatpush1.xpose.msra.mxu0 0.0
    %2160 = vmatprep.subr.mxu0 0.0
    %2161 = vmatpush1.xpose.msra.mxu0 %v2130
    %2162 = vmatprep.subr.mxu0 0.0
    %2163 = vmatpush1.xpose.msra.mxu0 %v2128
    %2164 = vmatprep.subr.mxu0 0.0
    %2165 = vmatpush2.xpose.msra.mxu0 0.0
    %2166 = vmatprep.subr.mxu0 0.0
    %2167 = vmatpush2.xpose.msra.mxu0 0.0
    %2168 = vmatprep.subr.mxu0 0.0
    %2169 = vmatpush2.xpose.msra.mxu0 0.0
    %2170 = vmatprep.subr.mxu0 0.0
    %2171 = vmatpush2.xpose.msra.mxu0 0.0
    %2172 = vmatprep.subr.mxu0 0.0
    %2173 = vmatpush2.xpose.msra.mxu0 0.0
    %2174 = vmatprep.subr.mxu0 0.0
    %2175 = vmatpush2.xpose.msra.mxu0 0.0
    %2176 = vmatprep.subr.mxu0 0.0
    %2177 = vmatpush2.xpose.msra.mxu0 0.0
    %2178 = vmatprep.subr.mxu0 0.0
    %2179 = vmatpush2.xpose.msra.mxu0 0.0
    %2180 = vmatprep.subr.mxu0 0.0
    %2181 = vmatpush2.xpose.msra.mxu0 0.0
    %2182 = vmatprep.subr.mxu0 0.0
    %2183 = vmatpush2.xpose.msra.mxu0 0.0
    %2184 = vmatprep.subr.mxu0 0.0
    %2185 = vmatpush2.xpose.msra.mxu0 0.0
    %2186 = vmatprep.subr.mxu0 0.0
    %2187 = vmatpush2.xpose.msra.mxu0 0.0
    %2188 = vmatprep.subr.mxu0 0.0
    %2189 = vmatpush2.xpose.msra.mxu0 0.0
    %2190 = vmatprep.subr.mxu0 0.0
    %2191 = vmatpush2.xpose.msra.mxu0 0.0
    %2192 = vmatprep.subr.mxu0 0.0
    %2193 = vmatpush2.xpose.msra.mxu0 0.0
    %2194 = vmatprep.subr.mxu0 0.0
    %2195 = vmatpush2.xpose.msra.mxu0 0.0
    %2196 = vmatprep.mubr.f32.mxu0 0.0
    %2197 = vmatmul.mubr.f32.gmra.mxu0 %v2126
    %v2198 = vpop.f32.mrf.mxu0
    %v2199 = vadd.f32 0.0, %v2198
    %v2200 = vpop.f32.mrf.mxu0
    %2201 = vdwg.mxu0
    %v2202 = vsel %vm525, %v2117, -inf
    %2203 = vmax.xlane.f32.xlu0 %v2202
    %v2204 = vpop.xlane.xlu0 %2203
    %v2205 = vsel %vm525, %v2199, -inf
    %2206 = vmax.xlane.f32.xlu0 %v2205
    %v2207 = vpop.xlane.xlu0 %2206
    %v2208 = vsub.f32 %v2117, %v2204
    %v2209 = vsub.f32 %v2199, %v2207
    %v2210 = vmul.f32 %v2208, 1.442695
    %v2211 = vpow.pop %v2210
    %v2212 = vmul.f32 %v2209, 1.442695
    %v2213 = vpow.pop %v2212
    %v2214 = vsel %vm525, %v2211, 0.0
    %2215 = vadd.xlane.f32.xlu0 %v2214
    %v2216 = vpop.xlane.xlu0 %2215
    %v2217 = vsel %vm525, %v2213, 0.0
    %2218 = vadd.xlane.f32.xlu0 %v2217
    %v2219 = vpop.xlane.xlu0 %2218
    %v2220 = vpack.c.bf16 %v2211, %v2211
    %v2221 = vpack.c.bf16 %v2213, %v2213
    %2222 = vrot.lane.b32.xlu0 %v364, 104
    %v2223 = vpop.permute.xlu0 %2222
    %v2226 = vsel %vm525, %v2220, 0
    %2228 = vmatprep.subr.bf16.mxu0 0
    %2229 = vmatpush1.bf16.msra.mxu0 0
    %2230 = vmatprep.subr.bf16.mxu0 0
    %2231 = vmatpush1.bf16.msra.mxu0 0
    %2232 = vmatprep.subr.bf16.mxu0 0
    %2233 = vmatpush1.bf16.msra.mxu0 0
    %2234 = vmatprep.subr.bf16.mxu0 0
    %2235 = vmatpush1.bf16.msra.mxu0 0
    %2236 = vmatprep.subr.bf16.mxu0 0
    %2237 = vmatpush1.bf16.msra.mxu0 0
    %2238 = vmatprep.subr.bf16.mxu0 0
    %2239 = vmatpush1.bf16.msra.mxu0 0
    %2240 = vmatprep.subr.bf16.mxu0 0
    %2241 = vmatpush1.bf16.msra.mxu0 0
    %2242 = vmatprep.subr.bf16.mxu0 0
    %2243 = vmatpush1.bf16.msra.mxu0 %v2223
    %2244 = vmatprep.subr.bf16.mxu0 0
    %2245 = vmatpush2.bf16.msra.mxu0 0
    %2246 = vmatprep.subr.bf16.mxu0 0
    %2247 = vmatpush2.bf16.msra.mxu0 0
    %2248 = vmatprep.subr.bf16.mxu0 0
    %2249 = vmatpush2.bf16.msra.mxu0 0
    %2250 = vmatprep.subr.bf16.mxu0 0
    %2251 = vmatpush2.bf16.msra.mxu0 0
    %2252 = vmatprep.subr.bf16.mxu0 0
    %2253 = vmatpush2.bf16.msra.mxu0 0
    %2254 = vmatprep.subr.bf16.mxu0 0
    %2255 = vmatpush2.bf16.msra.mxu0 0
    %2256 = vmatprep.subr.bf16.mxu0 0
    %2257 = vmatpush2.bf16.msra.mxu0 0
    %2258 = vmatprep.subr.bf16.mxu0 0
    %2259 = vmatpush2.bf16.msra.mxu0 0
    %2260 = vmatprep.mubr.bf16.mxu0 0
    %2261 = vmatmul.mubr.bf16.gmra.mxu0 %v2226
    %v2262 = vpop.f32.mrf.mxu0
    %v2263 = vadd.f32 0.0, %v2262
    %v2264 = vpop.f32.mrf.mxu0
    %v2265 = vpop.f32.mrf.mxu0
    %v2266 = vpop.f32.mrf.mxu0
    %2267 = vdwg.mxu0
    %2268 = vrot.lane.b32.xlu0 %v365, 104
    %v2269 = vpop.permute.xlu0 %2268
    %v2272 = vsel %vm525, %v2221, 0
    %2274 = vmatprep.subr.bf16.mxu0 0
    %2275 = vmatpush1.bf16.msra.mxu0 0
    %2276 = vmatprep.subr.bf16.mxu0 0
    %2277 = vmatpush1.bf16.msra.mxu0 0
    %2278 = vmatprep.subr.bf16.mxu0 0
    %2279 = vmatpush1.bf16.msra.mxu0 0
    %2280 = vmatprep.subr.bf16.mxu0 0
    %2281 = vmatpush1.bf16.msra.mxu0 0
    %2282 = vmatprep.subr.bf16.mxu0 0
    %2283 = vmatpush1.bf16.msra.mxu0 0
    %2284 = vmatprep.subr.bf16.mxu0 0
    %2285 = vmatpush1.bf16.msra.mxu0 0
    %2286 = vmatprep.subr.bf16.mxu0 0
    %2287 = vmatpush1.bf16.msra.mxu0 0
    %2288 = vmatprep.subr.bf16.mxu0 0
    %2289 = vmatpush1.bf16.msra.mxu0 %v2269
    %2290 = vmatprep.subr.bf16.mxu0 0
    %2291 = vmatpush2.bf16.msra.mxu0 0
    %2292 = vmatprep.subr.bf16.mxu0 0
    %2293 = vmatpush2.bf16.msra.mxu0 0
    %2294 = vmatprep.subr.bf16.mxu0 0
    %2295 = vmatpush2.bf16.msra.mxu0 0
    %2296 = vmatprep.subr.bf16.mxu0 0
    %2297 = vmatpush2.bf16.msra.mxu0 0
    %2298 = vmatprep.subr.bf16.mxu0 0
    %2299 = vmatpush2.bf16.msra.mxu0 0
    %2300 = vmatprep.subr.bf16.mxu0 0
    %2301 = vmatpush2.bf16.msra.mxu0 0
    %2302 = vmatprep.subr.bf16.mxu0 0
    %2303 = vmatpush2.bf16.msra.mxu0 0
    %2304 = vmatprep.subr.bf16.mxu0 0
    %2305 = vmatpush2.bf16.msra.mxu0 0
    %2306 = vmatprep.mubr.bf16.mxu0 0
    %2307 = vmatmul.mubr.bf16.gmra.mxu0 %v2272
    %v2308 = vpop.f32.mrf.mxu0
    %v2309 = vadd.f32 0.0, %v2308
    %v2310 = vpop.f32.mrf.mxu0
    %v2311 = vpop.f32.mrf.mxu0
    %v2312 = vpop.f32.mrf.mxu0
    %2313 = vdwg.mxu0
    %v2314 = vrcp.pop %v2216
    %v2315 = vrcp.pop %v2219
    %v2316 = vmul.f32 %v2263, %v2314
    %v2317 = vmul.f32 %v2309, %v2315
    %2318 = vrot.lane.b32.xlu0 %v188, 100
    %v2319 = vpop.permute.xlu0 %2318
    %2320 = vrot.lane.b32.xlu0 %v265, 100
    %v2321 = vpop.permute.xlu0 %2320
    %2322 = vrot.lane.b32.xlu0 %v268, 100
    %v2323 = vpop.permute.xlu0 %2322
    %v2324 = vsel %vm366, %v2319, 0
    %v2326 = vsel %vm366, %v2321, 0
    %v2328 = vsel %vm366, %v2323, 0
    %2330 = vmatprep.subr.mxu0 0.0
    %2331 = vmatpush1.xpose.msra.mxu0 0.0
    %2332 = vmatprep.subr.mxu0 0.0
    %2333 = vmatpush1.xpose.msra.mxu0 0.0
    %2334 = vmatprep.subr.mxu0 0.0
    %2335 = vmatpush1.xpose.msra.mxu0 0.0
    %2336 = vmatprep.subr.mxu0 0.0
    %2337 = vmatpush1.xpose.msra.mxu0 0.0
    %2338 = vmatprep.subr.mxu0 0.0
    %2339 = vmatpush1.xpose.msra.mxu0 0.0
    %2340 = vmatprep.subr.mxu0 0.0
    %2341 = vmatpush1.xpose.msra.mxu0 0.0
    %2342 = vmatprep.subr.mxu0 0.0
    %2343 = vmatpush1.xpose.msra.mxu0 0.0
    %2344 = vmatprep.subr.mxu0 0.0
    %2345 = vmatpush1.xpose.msra.mxu0 0.0
    %2346 = vmatprep.subr.mxu0 0.0
    %2347 = vmatpush1.xpose.msra.mxu0 0.0
    %2348 = vmatprep.subr.mxu0 0.0
    %2349 = vmatpush1.xpose.msra.mxu0 0.0
    %2350 = vmatprep.subr.mxu0 0.0
    %2351 = vmatpush1.xpose.msra.mxu0 0.0
    %2352 = vmatprep.subr.mxu0 0.0
    %2353 = vmatpush1.xpose.msra.mxu0 0.0
    %2354 = vmatprep.subr.mxu0 0.0
    %2355 = vmatpush1.xpose.msra.mxu0 0.0
    %2356 = vmatprep.subr.mxu0 0.0
    %2357 = vmatpush1.xpose.msra.mxu0 0.0
    %2358 = vmatprep.subr.mxu0 0.0
    %2359 = vmatpush1.xpose.msra.mxu0 %v2328
    %2360 = vmatprep.subr.mxu0 0.0
    %2361 = vmatpush1.xpose.msra.mxu0 %v2326
    %2362 = vmatprep.subr.mxu0 0.0
    %2363 = vmatpush2.xpose.msra.mxu0 0.0
    %2364 = vmatprep.subr.mxu0 0.0
    %2365 = vmatpush2.xpose.msra.mxu0 0.0
    %2366 = vmatprep.subr.mxu0 0.0
    %2367 = vmatpush2.xpose.msra.mxu0 0.0
    %2368 = vmatprep.subr.mxu0 0.0
    %2369 = vmatpush2.xpose.msra.mxu0 0.0
    %2370 = vmatprep.subr.mxu0 0.0
    %2371 = vmatpush2.xpose.msra.mxu0 0.0
    %2372 = vmatprep.subr.mxu0 0.0
    %2373 = vmatpush2.xpose.msra.mxu0 0.0
    %2374 = vmatprep.subr.mxu0 0.0
    %2375 = vmatpush2.xpose.msra.mxu0 0.0
    %2376 = vmatprep.subr.mxu0 0.0
    %2377 = vmatpush2.xpose.msra.mxu0 0.0
    %2378 = vmatprep.subr.mxu0 0.0
    %2379 = vmatpush2.xpose.msra.mxu0 0.0
    %2380 = vmatprep.subr.mxu0 0.0
    %2381 = vmatpush2.xpose.msra.mxu0 0.0
    %2382 = vmatprep.subr.mxu0 0.0
    %2383 = vmatpush2.xpose.msra.mxu0 0.0
    %2384 = vmatprep.subr.mxu0 0.0
    %2385 = vmatpush2.xpose.msra.mxu0 0.0
    %2386 = vmatprep.subr.mxu0 0.0
    %2387 = vmatpush2.xpose.msra.mxu0 0.0
    %2388 = vmatprep.subr.mxu0 0.0
    %2389 = vmatpush2.xpose.msra.mxu0 0.0
    %2390 = vmatprep.subr.mxu0 0.0
    %2391 = vmatpush2.xpose.msra.mxu0 0.0
    %2392 = vmatprep.subr.mxu0 0.0
    %2393 = vmatpush2.xpose.msra.mxu0 0.0
    %2394 = vmatprep.mubr.f32.mxu0 0.0
    %2395 = vmatmul.mubr.f32.gmra.mxu0 %v2324
    %v2396 = vpop.f32.mrf.mxu0
    %v2397 = vadd.f32 0.0, %v2396
    %v2398 = vpop.f32.mrf.mxu0
    %2399 = vdwg.mxu0
    %2400 = vrot.lane.b32.xlu0 %v191, 100
    %v2401 = vpop.permute.xlu0 %2400
    %2402 = vrot.lane.b32.xlu0 %v273, 100
    %v2403 = vpop.permute.xlu0 %2402
    %2404 = vrot.lane.b32.xlu0 %v276, 100
    %v2405 = vpop.permute.xlu0 %2404
    %v2406 = vsel %vm366, %v2401, 0
    %v2408 = vsel %vm366, %v2403, 0
    %v2410 = vsel %vm366, %v2405, 0
    %2412 = vmatprep.subr.mxu0 0.0
    %2413 = vmatpush1.xpose.msra.mxu0 0.0
    %2414 = vmatprep.subr.mxu0 0.0
    %2415 = vmatpush1.xpose.msra.mxu0 0.0
    %2416 = vmatprep.subr.mxu0 0.0
    %2417 = vmatpush1.xpose.msra.mxu0 0.0
    %2418 = vmatprep.subr.mxu0 0.0
    %2419 = vmatpush1.xpose.msra.mxu0 0.0
    %2420 = vmatprep.subr.mxu0 0.0
    %2421 = vmatpush1.xpose.msra.mxu0 0.0
    %2422 = vmatprep.subr.mxu0 0.0
    %2423 = vmatpush1.xpose.msra.mxu0 0.0
    %2424 = vmatprep.subr.mxu0 0.0
    %2425 = vmatpush1.xpose.msra.mxu0 0.0
    %2426 = vmatprep.subr.mxu0 0.0
    %2427 = vmatpush1.xpose.msra.mxu0 0.0
    %2428 = vmatprep.subr.mxu0 0.0
    %2429 = vmatpush1.xpose.msra.mxu0 0.0
    %2430 = vmatprep.subr.mxu0 0.0
    %2431 = vmatpush1.xpose.msra.mxu0 0.0
    %2432 = vmatprep.subr.mxu0 0.0
    %2433 = vmatpush1.xpose.msra.mxu0 0.0
    %2434 = vmatprep.subr.mxu0 0.0
    %2435 = vmatpush1.xpose.msra.mxu0 0.0
    %2436 = vmatprep.subr.mxu0 0.0
    %2437 = vmatpush1.xpose.msra.mxu0 0.0
    %2438 = vmatprep.subr.mxu0 0.0
    %2439 = vmatpush1.xpose.msra.mxu0 0.0
    %2440 = vmatprep.subr.mxu0 0.0
    %2441 = vmatpush1.xpose.msra.mxu0 %v2410
    %2442 = vmatprep.subr.mxu0 0.0
    %2443 = vmatpush1.xpose.msra.mxu0 %v2408
    %2444 = vmatprep.subr.mxu0 0.0
    %2445 = vmatpush2.xpose.msra.mxu0 0.0
    %2446 = vmatprep.subr.mxu0 0.0
    %2447 = vmatpush2.xpose.msra.mxu0 0.0
    %2448 = vmatprep.subr.mxu0 0.0
    %2449 = vmatpush2.xpose.msra.mxu0 0.0
    %2450 = vmatprep.subr.mxu0 0.0
    %2451 = vmatpush2.xpose.msra.mxu0 0.0
    %2452 = vmatprep.subr.mxu0 0.0
    %2453 = vmatpush2.xpose.msra.mxu0 0.0
    %2454 = vmatprep.subr.mxu0 0.0
    %2455 = vmatpush2.xpose.msra.mxu0 0.0
    %2456 = vmatprep.subr.mxu0 0.0
    %2457 = vmatpush2.xpose.msra.mxu0 0.0
    %2458 = vmatprep.subr.mxu0 0.0
    %2459 = vmatpush2.xpose.msra.mxu0 0.0
    %2460 = vmatprep.subr.mxu0 0.0
    %2461 = vmatpush2.xpose.msra.mxu0 0.0
    %2462 = vmatprep.subr.mxu0 0.0
    %2463 = vmatpush2.xpose.msra.mxu0 0.0
    %2464 = vmatprep.subr.mxu0 0.0
    %2465 = vmatpush2.xpose.msra.mxu0 0.0
    %2466 = vmatprep.subr.mxu0 0.0
    %2467 = vmatpush2.xpose.msra.mxu0 0.0
    %2468 = vmatprep.subr.mxu0 0.0
    %2469 = vmatpush2.xpose.msra.mxu0 0.0
    %2470 = vmatprep.subr.mxu0 0.0
    %2471 = vmatpush2.xpose.msra.mxu0 0.0
    %2472 = vmatprep.subr.mxu0 0.0
    %2473 = vmatpush2.xpose.msra.mxu0 0.0
    %2474 = vmatprep.subr.mxu0 0.0
    %2475 = vmatpush2.xpose.msra.mxu0 0.0
    %2476 = vmatprep.mubr.f32.mxu0 0.0
    %2477 = vmatmul.mubr.f32.gmra.mxu0 %v2406
    %v2478 = vpop.f32.mrf.mxu0
    %v2479 = vadd.f32 0.0, %v2478
    %v2480 = vpop.f32.mrf.mxu0
    %2481 = vdwg.mxu0
    %v2482 = vsel %vm525, %v2397, -inf
    %2483 = vmax.xlane.f32.xlu0 %v2482
    %v2484 = vpop.xlane.xlu0 %2483
    %v2485 = vsel %vm525, %v2479, -inf
    %2486 = vmax.xlane.f32.xlu0 %v2485
    %v2487 = vpop.xlane.xlu0 %2486
    %v2488 = vsub.f32 %v2397, %v2484
    %v2489 = vsub.f32 %v2479, %v2487
    %v2490 = vmul.f32 %v2488, 1.442695
    %v2491 = vpow.pop %v2490
    %v2492 = vmul.f32 %v2489, 1.442695
    %v2493 = vpow.pop %v2492
    %v2494 = vsel %vm525, %v2491, 0.0
    %2495 = vadd.xlane.f32.xlu0 %v2494
    %v2496 = vpop.xlane.xlu0 %2495
    %v2497 = vsel %vm525, %v2493, 0.0
    %2498 = vadd.xlane.f32.xlu0 %v2497
    %v2499 = vpop.xlane.xlu0 %2498
    %v2500 = vpack.c.bf16 %v2491, %v2491
    %v2501 = vpack.c.bf16 %v2493, %v2493
    %2502 = vrot.lane.b32.xlu0 %v364, 100
    %v2503 = vpop.permute.xlu0 %2502
    %v2506 = vsel %vm525, %v2500, 0
    %2508 = vmatprep.subr.bf16.mxu0 0
    %2509 = vmatpush1.bf16.msra.mxu0 0
    %2510 = vmatprep.subr.bf16.mxu0 0
    %2511 = vmatpush1.bf16.msra.mxu0 0
    %2512 = vmatprep.subr.bf16.mxu0 0
    %2513 = vmatpush1.bf16.msra.mxu0 0
    %2514 = vmatprep.subr.bf16.mxu0 0
    %2515 = vmatpush1.bf16.msra.mxu0 0
    %2516 = vmatprep.subr.bf16.mxu0 0
    %2517 = vmatpush1.bf16.msra.mxu0 0
    %2518 = vmatprep.subr.bf16.mxu0 0
    %2519 = vmatpush1.bf16.msra.mxu0 0
    %2520 = vmatprep.subr.bf16.mxu0 0
    %2521 = vmatpush1.bf16.msra.mxu0 0
    %2522 = vmatprep.subr.bf16.mxu0 0
    %2523 = vmatpush1.bf16.msra.mxu0 %v2503
    %2524 = vmatprep.subr.bf16.mxu0 0
    %2525 = vmatpush2.bf16.msra.mxu0 0
    %2526 = vmatprep.subr.bf16.mxu0 0
    %2527 = vmatpush2.bf16.msra.mxu0 0
    %2528 = vmatprep.subr.bf16.mxu0 0
    %2529 = vmatpush2.bf16.msra.mxu0 0
    %2530 = vmatprep.subr.bf16.mxu0 0
    %2531 = vmatpush2.bf16.msra.mxu0 0
    %2532 = vmatprep.subr.bf16.mxu0 0
    %2533 = vmatpush2.bf16.msra.mxu0 0
    %2534 = vmatprep.subr.bf16.mxu0 0
    %2535 = vmatpush2.bf16.msra.mxu0 0
    %2536 = vmatprep.subr.bf16.mxu0 0
    %2537 = vmatpush2.bf16.msra.mxu0 0
    %2538 = vmatprep.subr.bf16.mxu0 0
    %2539 = vmatpush2.bf16.msra.mxu0 0
    %2540 = vmatprep.mubr.bf16.mxu0 0
    %2541 = vmatmul.mubr.bf16.gmra.mxu0 %v2506
    %v2542 = vpop.f32.mrf.mxu0
    %v2543 = vadd.f32 0.0, %v2542
    %v2544 = vpop.f32.mrf.mxu0
    %v2545 = vpop.f32.mrf.mxu0
    %v2546 = vpop.f32.mrf.mxu0
    %2547 = vdwg.mxu0
    %2548 = vrot.lane.b32.xlu0 %v365, 100
    %v2549 = vpop.permute.xlu0 %2548
    %v2552 = vsel %vm525, %v2501, 0
    %2554 = vmatprep.subr.bf16.mxu0 0
    %2555 = vmatpush1.bf16.msra.mxu0 0
    %2556 = vmatprep.subr.bf16.mxu0 0
    %2557 = vmatpush1.bf16.msra.mxu0 0
    %2558 = vmatprep.subr.bf16.mxu0 0
    %2559 = vmatpush1.bf16.msra.mxu0 0
    %2560 = vmatprep.subr.bf16.mxu0 0
    %2561 = vmatpush1.bf16.msra.mxu0 0
    %2562 = vmatprep.subr.bf16.mxu0 0
    %2563 = vmatpush1.bf16.msra.mxu0 0
    %2564 = vmatprep.subr.bf16.mxu0 0
    %2565 = vmatpush1.bf16.msra.mxu0 0
    %2566 = vmatprep.subr.bf16.mxu0 0
    %2567 = vmatpush1.bf16.msra.mxu0 0
    %2568 = vmatprep.subr.bf16.mxu0 0
    %2569 = vmatpush1.bf16.msra.mxu0 %v2549
    %2570 = vmatprep.subr.bf16.mxu0 0
    %2571 = vmatpush2.bf16.msra.mxu0 0
    %2572 = vmatprep.subr.bf16.mxu0 0
    %2573 = vmatpush2.bf16.msra.mxu0 0
    %2574 = vmatprep.subr.bf16.mxu0 0
    %2575 = vmatpush2.bf16.msra.mxu0 0
    %2576 = vmatprep.subr.bf16.mxu0 0
    %2577 = vmatpush2.bf16.msra.mxu0 0
    %2578 = vmatprep.subr.bf16.mxu0 0
    %2579 = vmatpush2.bf16.msra.mxu0 0
    %2580 = vmatprep.subr.bf16.mxu0 0
    %2581 = vmatpush2.bf16.msra.mxu0 0
    %2582 = vmatprep.subr.bf16.mxu0 0
    %2583 = vmatpush2.bf16.msra.mxu0 0
    %2584 = vmatprep.subr.bf16.mxu0 0
    %2585 = vmatpush2.bf16.msra.mxu0 0
    %2586 = vmatprep.mubr.bf16.mxu0 0
    %2587 = vmatmul.mubr.bf16.gmra.mxu0 %v2552
    %v2588 = vpop.f32.mrf.mxu0
    %v2589 = vadd.f32 0.0, %v2588
    %v2590 = vpop.f32.mrf.mxu0
    %v2591 = vpop.f32.mrf.mxu0
    %v2592 = vpop.f32.mrf.mxu0
    %2593 = vdwg.mxu0
    %v2594 = vrcp.pop %v2496
    %v2595 = vrcp.pop %v2499
    %v2596 = vmul.f32 %v2543, %v2594
    %v2597 = vmul.f32 %v2589, %v2595
    %2600 = vrot.lane.b32.xlu0 %v916, 4
    %v2601 = vpop.permute.xlu0 %2600
    %2602 = vrot.lane.b32.xlu0 %v917, 4
    %v2603 = vpop.permute.xlu0 %2602
    %2608 = vrot.lane.b32.xlu0 %v1196, 8
    %v2609 = vpop.permute.xlu0 %2608
    %2610 = vrot.lane.b32.xlu0 %v1197, 8
    %v2611 = vpop.permute.xlu0 %2610
    %2616 = vrot.lane.b32.xlu0 %v1476, 12
    %v2617 = vpop.permute.xlu0 %2616
    %2618 = vrot.lane.b32.xlu0 %v1477, 12
    %v2619 = vpop.permute.xlu0 %2618
    %2624 = vrot.lane.b32.xlu0 %v1756, 16
    %v2625 = vpop.permute.xlu0 %2624
    %2626 = vrot.lane.b32.xlu0 %v1757, 16
    %v2627 = vpop.permute.xlu0 %2626
    %2632 = vrot.lane.b32.xlu0 %v2036, 20
    %v2633 = vpop.permute.xlu0 %2632
    %2634 = vrot.lane.b32.xlu0 %v2037, 20
    %v2635 = vpop.permute.xlu0 %2634
    %2640 = vrot.lane.b32.xlu0 %v2316, 24
    %v2641 = vpop.permute.xlu0 %2640
    %2642 = vrot.lane.b32.xlu0 %v2317, 24
    %v2643 = vpop.permute.xlu0 %2642
    %2648 = vrot.lane.b32.xlu0 %v2596, 28
    %v2649 = vpop.permute.xlu0 %2648
    %2650 = vrot.lane.b32.xlu0 %v2597, 28
    %v2651 = vpop.permute.xlu0 %2650
    %v2654 = vsel %vm366, %v634, %v2601
    %v2655 = vsel %vm366, %v635, %v2603
    %vm2656 = vcmask 64512
    %v2657 = vsel %vm2656, %v2654, %v2609
    %v2658 = vsel %vm2656, %v2655, %v2611
    %vm2659 = vcmask 97280
    %v2660 = vsel %vm2659, %v2657, %v2617
    %v2661 = vsel %vm2659, %v2658, %v2619
    %v2662 = vsel %vm525, %v2660, %v2625
    %v2663 = vsel %vm525, %v2661, %v2627
    %vm2664 = vcmask 162816
    %v2665 = vsel %vm2664, %v2662, %v2633
    %v2666 = vsel %vm2664, %v2663, %v2635
    %vm2667 = vcmask 195584
    %v2668 = vsel %vm2667, %v2665, %v2641
    %v2669 = vsel %vm2667, %v2666, %v2643
    %vm2670 = vcmask 228352
    %v2671 = vsel %vm2670, %v2668, %v2649
    %v2672 = vsel %vm2670, %v2669, %v2651
    %v2673 = vpack.c.bf16 %v2672, %v2671
    %v2674 = vld [vmem:[#allocation13] sm:$0xf]
    %v2675 = vld [vmem:[#allocation13 + $0x4] sm:$0xf]
    %v2676 = vld [vmem:[#allocation13 + $0x8] sm:$0xf]
    %v2677 = vld [vmem:[#allocation13 + $0xc] sm:$0xf]
    %v2678 = vld [vmem:[%s7] sm:$0x1]
    %v2680 = vlaneseq
    %v2681 = vshrl.u32 %v2680, 7
    %v2682 = vsub.s32 0, %v2681
    %v2683 = vrot.slane %v2678, %v2682
    %v2689 = vunpack.c.l.b16 %v2674
    %v2690 = vunpack.c.l.b16 %v2675
    %v2691 = vunpack.c.l.b16 %v2676
    %v2692 = vunpack.c.l.b16 %v2677
    %v2693 = vpack.c.b16 %v2690, %v2689
    %v2694 = vpack.c.b16 %v2692, %v2691
    %v2698 = vsel %vm149, %v2673, 0
    %2700 = vmatprep.subr.bf16.mxu0 0
    %2701 = vmatpush1.bf16.msra.mxu0 0
    %2702 = vmatprep.subr.bf16.mxu0 0
    %2703 = vmatpush1.bf16.msra.mxu0 0
    %2704 = vmatprep.subr.bf16.mxu0 0
    %2705 = vmatpush1.bf16.msra.mxu0 0
    %2706 = vmatprep.subr.bf16.mxu0 0
    %2707 = vmatpush1.bf16.msra.mxu0 0
    %2708 = vmatprep.subr.bf16.mxu0 0
    %2709 = vmatpush1.bf16.msra.mxu0 0
    %2710 = vmatprep.subr.bf16.mxu0 0
    %2711 = vmatpush1.bf16.msra.mxu0 0
    %2712 = vmatprep.subr.bf16.mxu0 0
    %2713 = vmatpush1.bf16.msra.mxu0 %v2694
    %2714 = vmatprep.subr.bf16.mxu0 0
    %2715 = vmatpush1.bf16.msra.mxu0 %v2693
    %2716 = vmatprep.subr.bf16.mxu0 0
    %2717 = vmatpush2.bf16.msra.mxu0 0
    %2718 = vmatprep.subr.bf16.mxu0 0
    %2719 = vmatpush2.bf16.msra.mxu0 0
    %2720 = vmatprep.subr.bf16.mxu0 0
    %2721 = vmatpush2.bf16.msra.mxu0 0
    %2722 = vmatprep.subr.bf16.mxu0 0
    %2723 = vmatpush2.bf16.msra.mxu0 0
    %2724 = vmatprep.subr.bf16.mxu0 0
    %2725 = vmatpush2.bf16.msra.mxu0 0
    %2726 = vmatprep.subr.bf16.mxu0 0
    %2727 = vmatpush2.bf16.msra.mxu0 0
    %2728 = vmatprep.subr.bf16.mxu0 0
    %2729 = vmatpush2.bf16.msra.mxu0 0
    %2730 = vmatprep.subr.bf16.mxu0 0
    %2731 = vmatpush2.bf16.msra.mxu0 0
    %2732 = vmatprep.mubr.bf16.mxu0 0
    %2733 = vmatmul.mubr.bf16.gmra.mxu0 %v2698
    %v2734 = vpop.f32.mrf.mxu0
    %v2735 = vadd.f32 %v2683, %v2734
    %v2736 = vpop.f32.mrf.mxu0
    %v2737 = vpop.f32.mrf.mxu0
    %v2738 = vadd.f32 %v2683, %v2737
    %v2739 = vpop.f32.mrf.mxu0
    %2740 = vdwg.mxu0
    %2741 = vst.msk [vmem:[#allocation14] sm:$0xff] %vm149, %v2735
    %2742 = vst.msk [vmem:[#allocation14 + $0x8] sm:$0xff] %vm149, %v2738
    // Predicated region
    $region62: #{tpu_custom_call.1} parent=1 // pred_check
      _
    $region63: #{tpu_custom_call.1} parent=1 // pred_check_branch
      %2744 = sbr.rel (0) target = $region65
    $region64: #{tpu_custom_call.1} parent=1 // pred_region
      %s2746 = ssub.s32 256, 256
      %2747 = vsyncadd [#allocation4], %s2746
      %s2748 = sshll.u32 [#allocation14], 4
      %s2749 = int_to_ptr.vmem [resolvable:$true] %s2748
      %2754 = dma.vmem_to_hbm [thread:$0]  %s2749, 256, %s8, [#allocation4], 128, 128, 8
    $region65: #{tpu_custom_call.1} parent=1 // pred_fallthru
      _
    // Predicated region
    $region66: #{tpu_custom_call.1} parent=1 // pred_check
      _
    $region67: #{tpu_custom_call.1} parent=1 // pred_check_branch
      %2756 = sbr.rel (0) target = $region69
    $region68: #{tpu_custom_call.1} parent=1 // pred_region
      %2757 = dma.done [#allocation4], 256
    $region69: #{tpu_custom_call.1} parent=1 // pred_fallthru
      _
    %2758 = vsyncpa [#allocation3], 1
    %2759 = vsyncpa [#allocation6], 1
    %2760 = vsyncpa [#allocation9], 1
    %2761 = vsyncpa [#allocation12], 1
    %2762 = vsyncpa [#allocation4], 1

</llo_original>
